<compile_context>
chip_gen: v7x
topology: tpu7x:2x2x1
jax: 0.10.0
libtpu: 0.0.40
codegen_flags: <defaults>
</compile_context>

<pallas_src>
import functools

import jax
import jax.numpy as jnp
import numpy as np
from jax.experimental import pallas as pl
from jax.experimental.pallas import tpu as pltpu

LN_EPS = 1e-5  # torch.nn.LayerNorm default


# ------------------------------- kernel ------------------------------------ #

def fused_ffn_kernel(atom_out_ref,                   # [n_atoms_pad, hidden] f32, VMEM resident
                     f_atoms_ref,                    # [TM, atom_fdim]   f32 tile
                     a2a_ref,                        # [TM, max_nbrs]    int32 tile
                     starts_ref, ends_ref, inv_ref,  # [num_mols, 1] scope bounds / 1/size
                     w1f_ref, w1a_ref, b1_ref,       # bf16, bf16, f32
                     w2_ref, b2_ref,                 # bf16, f32
                     gamma_ref, beta_ref,            # f32 LayerNorm params
                     feat_ref,                       # [num_mols, feat_dim] f32
                     mw1m_ref, mw1f_ref, mb1_ref,    # mol FFN (f32, tiny)
                     mw2_ref, mb2_ref,
                     o_ref,                          # [num_mols, num_tasks] f32 (resident output)
                     mol_acc_ref,                    # VMEM scratch: f32 readout accumulator
                     *, tm, n_atoms_pad, max_nbrs, num_mols):
    t = pl.program_id(0)

    @pl.when(t == 0)
    def _init():
        mol_acc_ref[...] = jnp.zeros_like(mol_acc_ref)

    # 1. select_neighbor_and_aggregate, vectorized: per-tile count matrix built with
    #    broadcasted_iota comparisons, then one MXU matmul against the resident
    #    atom_output.  Exact in f32 (counts are small integers).  No scalar loop.
    idx = a2a_ref[...]                                            # (tm, max_nbrs) int32
    atom_ids = jax.lax.broadcasted_iota(jnp.int32, (tm, n_atoms_pad), 1)
    counts = (idx[:, 0:1] == atom_ids).astype(jnp.float32)
    for j in range(1, max_nbrs):                                  # small static unroll
        counts = counts + (idx[:, j:j + 1] == atom_ids).astype(jnp.float32)
    aggr = jnp.dot(counts, atom_out_ref[...], preferred_element_type=jnp.float32)

    # 2-3. PositionwiseFeedForward on cat([f_atoms, aggr], -1); split-weight form is
    #      mathematically identical and avoids an in-kernel lane concat.
    #      bf16 operands on the MXU, f32 accumulation.
    h = (jnp.dot(f_atoms_ref[...].astype(jnp.bfloat16), w1f_ref[...],
                 preferred_element_type=jnp.float32)
         + jnp.dot(aggr.astype(jnp.bfloat16), w1a_ref[...],
                   preferred_element_type=jnp.float32)
         + b1_ref[...])
    h = jnp.maximum(h, 0.0)                                       # ReLU (dropout = identity)
    h = jnp.dot(h.astype(jnp.bfloat16), w2_ref[...],
                preferred_element_type=jnp.float32) + b2_ref[...]

    # 4. atom_from_atom_sublayer with inputs=None -> LayerNorm(h) in f32.
    mean = jnp.mean(h, axis=-1, keepdims=True)
    var = jnp.mean((h - mean) ** 2, axis=-1, keepdims=True)
    atom_emb = (h - mean) * jax.lax.rsqrt(var + LN_EPS) * gamma_ref[...] + beta_ref[...]

    # 5. mean readout for this atom tile: scopes are contiguous, so the per-tile
    #    readout weights are built in-kernel from (start, end, 1/size) -> no dense
    #    [num_mols, n_atoms] matrix in HBM.  Padded rows fall outside every scope.
    gids = t * tm + jax.lax.broadcasted_iota(jnp.int32, (num_mols, tm), 1)
    member = (gids >= starts_ref[...]) & (gids < ends_ref[...])
    w_read = member.astype(jnp.float32) * inv_ref[...]
    mol_acc_ref[...] += jnp.dot(w_read, atom_emb, preferred_element_type=jnp.float32)

    # 6-7. molecule head (tiny, kept f32) once all atom tiles are accumulated.
    @pl.when(t == pl.num_programs(0) - 1)
    def _finalize():
        mol = mol_acc_ref[...]
        hm = (jnp.dot(mol, mw1m_ref[...], preferred_element_type=jnp.float32)
              + jnp.dot(feat_ref[...], mw1f_ref[...], preferred_element_type=jnp.float32)
              + mb1_ref[...])
        hm = jnp.maximum(hm, 0.0)
        logits = jnp.dot(hm, mw2_ref[...], preferred_element_type=jnp.float32) + mb2_ref[...]
        o_ref[...] = jax.nn.sigmoid(logits)                       # classification head


# ------------------------------- wrapper ------------------------------------ #

def _resident(shape):
    """BlockSpec for a block that stays VMEM-resident across all grid steps."""
    return pl.BlockSpec(shape, lambda t: (0,) * len(shape))


def make_inference_params(params):
    """bf16 copies of the large atom-stage weights, built ONCE (not per forward call)."""
    ip = dict(params)
    ip["ffn_w1_f"] = params["ffn_w1_f"].astype(jnp.bfloat16)
    ip["ffn_w1_a"] = params["ffn_w1_a"].astype(jnp.bfloat16)
    ip["ffn_w2"] = params["ffn_w2"].astype(jnp.bfloat16)
    return ip


@functools.partial(jax.jit, static_argnames=("tm",))
def ffn_forward(atom_output, original_f_atoms, a2a, scope_starts, scope_sizes,
                features_batch, params, tm=256):
    n_atoms, hidden = atom_output.shape
    atom_fdim = original_f_atoms.shape[1]
    max_nbrs = a2a.shape[1]
    num_mols, feat_dim = features_batch.shape
    d_ff = params["ffn_w1_f"].shape[1]
    ffn_hidden = params["mol_w1_m"].shape[1]
    num_tasks = params["mol_w2"].shape[1]

    # Pad atoms to a multiple of the tile size.  Padded rows gather atom 0 (in range)
    # and sit outside every molecule scope, so they never leak into the readout.
    n_atoms_pad = ((n_atoms + tm - 1) // tm) * tm
    pad = n_atoms_pad - n_atoms
    if pad:
        atom_output = jnp.pad(atom_output, ((0, pad), (0, 0)))
        original_f_atoms = jnp.pad(original_f_atoms, ((0, pad), (0, 0)))
        a2a = jnp.pad(a2a, ((0, pad), (0, 0)))
    n_tiles = n_atoms_pad // tm

    a2a = a2a.astype(jnp.int32)

    # Contiguous-scope readout parameters (built with jittable ops, no host loop).
    starts = scope_starts.astype(jnp.int32).reshape(num_mols, 1)
    sizes = scope_sizes.astype(jnp.int32).reshape(num_mols, 1)
    ends = starts + sizes
    inv_size = jnp.where(sizes > 0,
                         1.0 / jnp.maximum(sizes, 1).astype(jnp.float32), 0.0)

    grid_spec = pltpu.PrefetchScalarGridSpec(
        num_scalar_prefetch=0,
        grid=(n_tiles,),
        in_specs=[
            pl.BlockSpec((n_atoms_pad, hidden), lambda t: (0, 0)),   # atom_output (aggregation source)
            pl.BlockSpec((tm, atom_fdim), lambda t: (t, 0)),         # original_f_atoms tile
            pl.BlockSpec((tm, max_nbrs), lambda t: (t, 0)),          # a2a tile (int32, VMEM)
            _resident((num_mols, 1)),                                # scope starts
            _resident((num_mols, 1)),                                # scope ends
            _resident((num_mols, 1)),                                # 1 / scope size
            _resident((atom_fdim, d_ff)),                            # w1f (bf16)
            _resident((hidden, d_ff)),                               # w1a (bf16)
            _resident((1, d_ff)),                                    # b1
            _resident((d_ff, hidden)),                               # w2 (bf16)
            _resident((1, hidden)),                                  # b2
            _resident((1, hidden)),                                  # ln_gamma
            _resident((1, hidden)),                                  # ln_beta
            _resident((num_mols, feat_dim)),                         # features_batch
            _resident((hidden, ffn_hidden)),                         # mol_w1_m
            _resident((feat_dim, ffn_hidden)),                       # mol_w1_f
            _resident((1, ffn_hidden)),                              # mol_b1
            _resident((ffn_hidden, num_tasks)),                      # mol_w2
            _resident((1, num_tasks)),                               # mol_b2
        ],
        out_specs=pl.BlockSpec((num_mols, num_tasks), lambda t: (0, 0)),
        scratch_shapes=[pltpu.VMEM((num_mols, hidden), jnp.float32)],  # readout accumulator
    )

    kernel = functools.partial(fused_ffn_kernel, tm=tm, n_atoms_pad=n_atoms_pad,
                               max_nbrs=max_nbrs, num_mols=num_mols)
    return pl.pallas_call(
        kernel,
        out_shape=jax.ShapeDtypeStruct((num_mols, num_tasks), jnp.float32),
        grid_spec=grid_spec,
        compiler_params=pltpu.CompilerParams(
            # The atom-tile axis carries the readout accumulator and the resident
            # output block, so it must run sequentially ("arbitrary").
            dimension_semantics=("arbitrary",),
            # Plenty for these shapes; raise toward 64-96 MiB on v5e/v6e for large
            # hidden / n_atoms (keep <=32 MiB on v7x, whose physical VMEM is 64 MiB).
            vmem_limit_bytes=32 * 1024 * 1024,
        ),
    )(atom_output, original_f_atoms, a2a, starts, ends, inv_size,
      params["ffn_w1_f"], params["ffn_w1_a"], params["ffn_b1"],
      params["ffn_w2"], params["ffn_b2"],
      params["ln_gamma"], params["ln_beta"],
      features_batch, params["mol_w1_m"], params["mol_w1_f"], params["mol_b1"],
      params["mol_w2"], params["mol_b2"])


# --------------------------- params / reference ----------------------------- #

def init_params(key, hidden, atom_fdim, feat_dim, ffn_hidden, num_tasks):
    """Deterministic nn.Linear-style init (uniform +-1/sqrt(fan_in)), f32 master copy."""
    d_ff = hidden * 4
    ks = jax.random.split(key, 8)

    def lin(k, fan_in, shape):
        bound = 1.0 / np.sqrt(fan_in)
        return jax.random.uniform(k, shape, jnp.float32, -bound, bound)

    ffn_w1 = lin(ks[0], atom_fdim + hidden, (atom_fdim + hidden, d_ff))
    mol_w1 = lin(ks[4], hidden + feat_dim, (hidden + feat_dim, ffn_hidden))
    return {
        # ffn_atom_from_atom: Linear(atom_fdim + hidden, 4*hidden) / Linear(4*hidden, hidden)
        "ffn_w1_f": ffn_w1[:atom_fdim],
        "ffn_w1_a": ffn_w1[atom_fdim:],
        "ffn_b1": lin(ks[1], atom_fdim + hidden, (1, d_ff)),
        "ffn_w2": lin(ks[2], d_ff, (d_ff, hidden)),
        "ffn_b2": lin(ks[3], d_ff, (1, hidden)),
        # atom_from_atom_sublayer LayerNorm
        "ln_gamma": jnp.ones((1, hidden), jnp.float32),
        "ln_beta": jnp.zeros((1, hidden), jnp.float32),
        # mol FFN: Linear(hidden + feat_dim, ffn_hidden) / Linear(ffn_hidden, num_tasks)
        "mol_w1_m": mol_w1[:hidden],
        "mol_w1_f": mol_w1[hidden:],
        "mol_b1": lin(ks[5], hidden + feat_dim, (1, ffn_hidden)),
        "mol_w2": lin(ks[6], ffn_hidden, (ffn_hidden, num_tasks)),
        "mol_b2": lin(ks[7], ffn_hidden, (1, num_tasks)),
    }


def reference_forward(atom_output, original_f_atoms, a2a, a_scope,
                      features_batch, params):
    """Pure-JAX f32 mirror of the PyTorch forward (eval mode)."""
    aggr = jnp.take(atom_output, a2a, axis=0).sum(axis=1)
    x = jnp.concatenate([original_f_atoms, aggr], axis=1)
    w1 = jnp.concatenate([params["ffn_w1_f"], params["ffn_w1_a"]], axis=0)
    h = jnp.maximum(x @ w1 + params["ffn_b1"], 0.0) @ params["ffn_w2"] + params["ffn_b2"]
    mean = h.mean(-1, keepdims=True)
    var = ((h - mean) ** 2).mean(-1, keepdims=True)
    atom_emb = (h - mean) / jnp.sqrt(var + LN_EPS) * params["ln_gamma"] + params["ln_beta"]
    mols = jnp.stack([atom_emb[s:s + n].sum(0) / n for (s, n) in a_scope])
    y = jnp.concatenate([mols, features_batch], axis=1)
    w1m = jnp.concatenate([params["mol_w1_m"], params["mol_w1_f"]], axis=0)
    logits = jnp.maximum(y @ w1m + params["mol_b1"], 0.0) @ params["mol_w2"] + params["mol_b2"]
    return jax.nn.sigmoid(logits)


# --------------------------------- main -------------------------------------- #

if __name__ == "__main__":
    hidden, atom_fdim, feat_dim = 32, 16, 8
    ffn_hidden, num_tasks = 64, 3
    n_atoms, max_nbrs, tm = 500, 4, 256          # n_atoms NOT a multiple of tm -> exercises padding
    a_scope = [(1, 166), (167, 166), (333, 167)]  # atom 0 is GROVER's padding atom
    num_mols = len(a_scope)

    key = jax.random.PRNGKey(0)
    k1, k2, k3, k4, kp = jax.random.split(key, 5)
    atom_output = jax.random.normal(k1, (n_atoms, hidden), jnp.float32)
    original_f_atoms = jax.random.normal(k2, (n_atoms, atom_fdim), jnp.float32)
    a2a = jax.random.randint(k3, (n_atoms, max_nbrs), 0, n_atoms, jnp.int32)
    features_batch = jax.random.normal(k4, (num_mols, feat_dim), jnp.float32)

    params = init_params(kp, hidden, atom_fdim, feat_dim, ffn_hidden, num_tasks)
    iparams = make_inference_params(params)       # bf16 weight copies built once

    scope_starts = jnp.asarray([s for s, _ in a_scope], jnp.int32)
    scope_sizes = jnp.asarray([n for _, n in a_scope], jnp.int32)

    out = ffn_forward(atom_output, original_f_atoms, a2a, scope_starts, scope_sizes,
                      features_batch, iparams, tm=tm)
    jax.block_until_ready(out)

    ref = reference_forward(atom_output, original_f_atoms, a2a, a_scope,
                            features_batch, params)
    # bf16 matmuls (f32 accumulation) vs f32 reference -> slightly looser tolerance.
    np.testing.assert_allclose(np.asarray(out), np.asarray(ref), atol=2e-2, rtol=2e-2)

    print("KERNEL_OK")
</pallas_src>

<mosaic_0001>
module attributes {stable_mosaic.version = 11 : i64} {
  func.func @fused_ffn_kernel(%arg0: i32, %arg1: memref<512x32xf32, #tpu.memory_space<vmem>>, %arg2: memref<256x16xf32, #tpu.memory_space<vmem>>, %arg3: memref<256x4xi32, #tpu.memory_space<vmem>>, %arg4: memref<3x1xi32, #tpu.memory_space<vmem>>, %arg5: memref<3x1xi32, #tpu.memory_space<vmem>>, %arg6: memref<3x1xf32, #tpu.memory_space<vmem>>, %arg7: memref<16x128xbf16, #tpu.memory_space<vmem>>, %arg8: memref<32x128xbf16, #tpu.memory_space<vmem>>, %arg9: memref<1x128xf32, #tpu.memory_space<vmem>>, %arg10: memref<128x32xbf16, #tpu.memory_space<vmem>>, %arg11: memref<1x32xf32, #tpu.memory_space<vmem>>, %arg12: memref<1x32xf32, #tpu.memory_space<vmem>>, %arg13: memref<1x32xf32, #tpu.memory_space<vmem>>, %arg14: memref<3x8xf32, #tpu.memory_space<vmem>>, %arg15: memref<32x64xf32, #tpu.memory_space<vmem>>, %arg16: memref<8x64xf32, #tpu.memory_space<vmem>>, %arg17: memref<1x64xf32, #tpu.memory_space<vmem>>, %arg18: memref<64x3xf32, #tpu.memory_space<vmem>>, %arg19: memref<1x3xf32, #tpu.memory_space<vmem>>, %arg20: memref<3x3xf32, #tpu.memory_space<vmem>>, %arg21: memref<3x32xf32, #tpu.memory_space<vmem>>) attributes {dimension_semantics = [#tpu.dimension_semantics<arbitrary>], iteration_bounds = array<i64: 2>, scalar_prefetch = 0 : i64, scratch_operands = 1 : i64, tpu.core_type = #tpu.core_type<tc>, window_params = [{pipeline_mode = #tpu.pipeline_mode<synchronous>, transform_indices = @transform_0, window_bounds = array<i64: 512, 32>}, {transform_indices = @transform_1, window_bounds = array<i64: 256, 16>}, {transform_indices = @transform_2, window_bounds = array<i64: 256, 4>}, {pipeline_mode = #tpu.pipeline_mode<synchronous>, transform_indices = @transform_3, window_bounds = array<i64: 3, 1>}, {pipeline_mode = #tpu.pipeline_mode<synchronous>, transform_indices = @transform_4, window_bounds = array<i64: 3, 1>}, {pipeline_mode = #tpu.pipeline_mode<synchronous>, transform_indices = @transform_5, window_bounds = array<i64: 3, 1>}, {pipeline_mode = #tpu.pipeline_mode<synchronous>, transform_indices = @transform_6, window_bounds = array<i64: 16, 128>}, {pipeline_mode = #tpu.pipeline_mode<synchronous>, transform_indices = @transform_7, window_bounds = array<i64: 32, 128>}, {pipeline_mode = #tpu.pipeline_mode<synchronous>, transform_indices = @transform_8, window_bounds = array<i64: 1, 128>}, {pipeline_mode = #tpu.pipeline_mode<synchronous>, transform_indices = @transform_9, window_bounds = array<i64: 128, 32>}, {pipeline_mode = #tpu.pipeline_mode<synchronous>, transform_indices = @transform_10, window_bounds = array<i64: 1, 32>}, {pipeline_mode = #tpu.pipeline_mode<synchronous>, transform_indices = @transform_11, window_bounds = array<i64: 1, 32>}, {pipeline_mode = #tpu.pipeline_mode<synchronous>, transform_indices = @transform_12, window_bounds = array<i64: 1, 32>}, {pipeline_mode = #tpu.pipeline_mode<synchronous>, transform_indices = @transform_13, window_bounds = array<i64: 3, 8>}, {pipeline_mode = #tpu.pipeline_mode<synchronous>, transform_indices = @transform_14, window_bounds = array<i64: 32, 64>}, {pipeline_mode = #tpu.pipeline_mode<synchronous>, transform_indices = @transform_15, window_bounds = array<i64: 8, 64>}, {pipeline_mode = #tpu.pipeline_mode<synchronous>, transform_indices = @transform_16, window_bounds = array<i64: 1, 64>}, {pipeline_mode = #tpu.pipeline_mode<synchronous>, transform_indices = @transform_17, window_bounds = array<i64: 64, 3>}, {pipeline_mode = #tpu.pipeline_mode<synchronous>, transform_indices = @transform_18, window_bounds = array<i64: 1, 3>}, {pipeline_mode = #tpu.pipeline_mode<synchronous>, transform_indices = @transform_19, window_bounds = array<i64: 3, 3>}]} {
    %c0_i32 = arith.constant 0 : i32
    %0 = arith.cmpi eq, %arg0, %c0_i32 : i32
    %1 = arith.extui %0 : i1 to i32
    %c0_i32_0 = arith.constant 0 : i32
    %2 = arith.cmpi ne, %1, %c0_i32_0 : i32
    scf.if %2 {
      %cst_41 = arith.constant 0.000000e+00 : f32
      %96 = vector.broadcast %cst_41 : f32 to vector<3x32xf32>
      %c0_42 = arith.constant 0 : index
      %c0_43 = arith.constant 0 : index
      %97 = vector.load %arg21[%c0_42, %c0_43] : memref<3x32xf32, #tpu.memory_space<vmem>>, vector<3x32xf32>
      tpu.vector_store %arg21[%c0_42, %c0_43], %96 {strides = array<i32>} : memref<3x32xf32, #tpu.memory_space<vmem>>, vector<3x32xf32>,
    } else {
    }
    %c0 = arith.constant 0 : index
    %c0_1 = arith.constant 0 : index
    %3 = vector.load %arg3[%c0, %c0_1] : memref<256x4xi32, #tpu.memory_space<vmem>>, vector<256x4xi32>
    %4 = tpu.iota {dimensions = array<i32: 1>} : vector<256x512xi32>
    %5 = vector.extract_strided_slice %3 {offsets = [0, 0], sizes = [256, 1], strides = [1, 1]} : vector<256x4xi32> to vector<256x1xi32>
    %6 = vector.broadcast %5 : vector<256x1xi32> to vector<256x512xi32>
    %7 = arith.cmpi eq, %6, %4 : vector<256x512xi32>
    %8 = arith.extui %7 : vector<256x512xi1> to vector<256x512xi32>
    %9 = arith.sitofp %8 : vector<256x512xi32> to vector<256x512xf32>
    %10 = vector.extract_strided_slice %3 {offsets = [0, 1], sizes = [256, 1], strides = [1, 1]} : vector<256x4xi32> to vector<256x1xi32>
    %11 = vector.broadcast %10 : vector<256x1xi32> to vector<256x512xi32>
    %12 = arith.cmpi eq, %11, %4 : vector<256x512xi32>
    %13 = arith.extui %12 : vector<256x512xi1> to vector<256x512xi32>
    %14 = arith.sitofp %13 : vector<256x512xi32> to vector<256x512xf32>
    %15 = arith.addf %9, %14 : vector<256x512xf32>
    %16 = vector.extract_strided_slice %3 {offsets = [0, 2], sizes = [256, 1], strides = [1, 1]} : vector<256x4xi32> to vector<256x1xi32>
    %17 = vector.broadcast %16 : vector<256x1xi32> to vector<256x512xi32>
    %18 = arith.cmpi eq, %17, %4 : vector<256x512xi32>
    %19 = arith.extui %18 : vector<256x512xi1> to vector<256x512xi32>
    %20 = arith.sitofp %19 : vector<256x512xi32> to vector<256x512xf32>
    %21 = arith.addf %15, %20 : vector<256x512xf32>
    %22 = vector.extract_strided_slice %3 {offsets = [0, 3], sizes = [256, 1], strides = [1, 1]} : vector<256x4xi32> to vector<256x1xi32>
    %23 = vector.broadcast %22 : vector<256x1xi32> to vector<256x512xi32>
    %24 = arith.cmpi eq, %23, %4 : vector<256x512xi32>
    %25 = arith.extui %24 : vector<256x512xi1> to vector<256x512xi32>
    %26 = arith.sitofp %25 : vector<256x512xi32> to vector<256x512xf32>
    %27 = arith.addf %21, %26 : vector<256x512xf32>
    %c0_2 = arith.constant 0 : index
    %c0_3 = arith.constant 0 : index
    %28 = vector.load %arg1[%c0_2, %c0_3] : memref<512x32xf32, #tpu.memory_space<vmem>>, vector<512x32xf32>
    %cst = arith.constant dense<0.000000e+00> : vector<256x32xf32>
    %29 = tpu.matmul %27, %28, %cst {dimension_numbers = #tpu.dot_dimension_numbers<[1], [0], [0], [1], [0, 0, 1, 1], [], []>} : vector<256x512xf32>, vector<512x32xf32>, vector<256x32xf32> -> vector<256x32xf32>
    %c0_4 = arith.constant 0 : index
    %c0_5 = arith.constant 0 : index
    %30 = vector.load %arg2[%c0_4, %c0_5] : memref<256x16xf32, #tpu.memory_space<vmem>>, vector<256x16xf32>
    %31 = arith.truncf %30 : vector<256x16xf32> to vector<256x16xbf16>
    %c0_6 = arith.constant 0 : index
    %c0_7 = arith.constant 0 : index
    %32 = vector.load %arg7[%c0_6, %c0_7] : memref<16x128xbf16, #tpu.memory_space<vmem>>, vector<16x128xbf16>
    %cst_8 = arith.constant dense<0.000000e+00> : vector<256x128xf32>
    %33 = tpu.matmul %31, %32, %cst_8 {dimension_numbers = #tpu.dot_dimension_numbers<[1], [0], [0], [1], [0, 0, 1, 1], [], []>} : vector<256x16xbf16>, vector<16x128xbf16>, vector<256x128xf32> -> vector<256x128xf32>
    %34 = arith.truncf %29 : vector<256x32xf32> to vector<256x32xbf16>
    %c0_9 = arith.constant 0 : index
    %c0_10 = arith.constant 0 : index
    %35 = vector.load %arg8[%c0_9, %c0_10] : memref<32x128xbf16, #tpu.memory_space<vmem>>, vector<32x128xbf16>
    %cst_11 = arith.constant dense<0.000000e+00> : vector<256x128xf32>
    %36 = tpu.matmul %34, %35, %cst_11 {dimension_numbers = #tpu.dot_dimension_numbers<[1], [0], [0], [1], [0, 0, 1, 1], [], []>} : vector<256x32xbf16>, vector<32x128xbf16>, vector<256x128xf32> -> vector<256x128xf32>
    %37 = arith.addf %33, %36 : vector<256x128xf32>
    %c0_12 = arith.constant 0 : index
    %c0_13 = arith.constant 0 : index
    %38 = vector.load %arg9[%c0_12, %c0_13] : memref<1x128xf32, #tpu.memory_space<vmem>>, vector<1x128xf32>
    %39 = vector.broadcast %38 : vector<1x128xf32> to vector<256x128xf32>
    %40 = arith.addf %37, %39 : vector<256x128xf32>
    %cst_14 = arith.constant 0.000000e+00 : f32
    %41 = vector.broadcast %cst_14 : f32 to vector<256x128xf32>
    %42 = arith.maximumf %40, %41 : vector<256x128xf32>
    %43 = arith.truncf %42 : vector<256x128xf32> to vector<256x128xbf16>
    %c0_15 = arith.constant 0 : index
    %c0_16 = arith.constant 0 : index
    %44 = vector.load %arg10[%c0_15, %c0_16] : memref<128x32xbf16, #tpu.memory_space<vmem>>, vector<128x32xbf16>
    %cst_17 = arith.constant dense<0.000000e+00> : vector<256x32xf32>
    %45 = tpu.matmul %43, %44, %cst_17 {dimension_numbers = #tpu.dot_dimension_numbers<[1], [0], [0], [1], [0, 0, 1, 1], [], []>} : vector<256x128xbf16>, vector<128x32xbf16>, vector<256x32xf32> -> vector<256x32xf32>
    %c0_18 = arith.constant 0 : index
    %c0_19 = arith.constant 0 : index
    %46 = vector.load %arg11[%c0_18, %c0_19] : memref<1x32xf32, #tpu.memory_space<vmem>>, vector<1x32xf32>
    %47 = vector.broadcast %46 : vector<1x32xf32> to vector<256x32xf32>
    %48 = arith.addf %45, %47 : vector<256x32xf32>
    %cst_20 = arith.constant dense<0.000000e+00> : vector<256xf32>
    %49 = vector.multi_reduction <add>, %48, %cst_20 [1] : vector<256x32xf32> to vector<256xf32>
    %50 = vector.shape_cast %49 : vector<256xf32> to vector<256x1xf32>
    %cst_21 = arith.constant 3.200000e+01 : f32
    %51 = vector.broadcast %cst_21 : f32 to vector<256x1xf32>
    %52 = arith.divf %50, %51 : vector<256x1xf32>
    %53 = vector.broadcast %52 : vector<256x1xf32> to vector<256x32xf32>
    %54 = arith.subf %48, %53 : vector<256x32xf32>
    %55 = arith.mulf %54, %54 : vector<256x32xf32>
    %cst_22 = arith.constant dense<0.000000e+00> : vector<256xf32>
    %56 = vector.multi_reduction <add>, %55, %cst_22 [1] : vector<256x32xf32> to vector<256xf32>
    %57 = vector.shape_cast %56 : vector<256xf32> to vector<256x1xf32>
    %cst_23 = arith.constant 3.200000e+01 : f32
    %58 = vector.broadcast %cst_23 : f32 to vector<256x1xf32>
    %59 = arith.divf %57, %58 : vector<256x1xf32>
    %60 = vector.broadcast %52 : vector<256x1xf32> to vector<256x32xf32>
    %61 = arith.subf %48, %60 : vector<256x32xf32>
    %cst_24 = arith.constant 9.99999974E-6 : f32
    %62 = vector.broadcast %cst_24 : f32 to vector<256x1xf32>
    %63 = arith.addf %59, %62 : vector<256x1xf32>
    %64 = math.rsqrt %63 : vector<256x1xf32>
    %65 = vector.broadcast %64 : vector<256x1xf32> to vector<256x32xf32>
    %66 = arith.mulf %61, %65 : vector<256x32xf32>
    %c0_25 = arith.constant 0 : index
    %c0_26 = arith.constant 0 : index
    %67 = vector.load %arg12[%c0_25, %c0_26] : memref<1x32xf32, #tpu.memory_space<vmem>>, vector<1x32xf32>
    %68 = vector.broadcast %67 : vector<1x32xf32> to vector<256x32xf32>
    %69 = arith.mulf %66, %68 : vector<256x32xf32>
    %c0_27 = arith.constant 0 : index
    %c0_28 = arith.constant 0 : index
    %70 = vector.load %arg13[%c0_27, %c0_28] : memref<1x32xf32, #tpu.memory_space<vmem>>, vector<1x32xf32>
    %71 = vector.broadcast %70 : vector<1x32xf32> to vector<256x32xf32>
    %72 = arith.addf %69, %71 : vector<256x32xf32>
    %c256_i32 = arith.constant 256 : i32
    %73 = arith.muli %arg0, %c256_i32 : i32
    %74 = tpu.iota {dimensions = array<i32: 1>} : vector<3x256xi32>
    %75 = vector.broadcast %73 : i32 to vector<3x256xi32>
    %76 = arith.addi %75, %74 : vector<3x256xi32>
    %c0_29 = arith.constant 0 : index
    %c0_30 = arith.constant 0 : index
    %77 = vector.load %arg4[%c0_29, %c0_30] : memref<3x1xi32, #tpu.memory_space<vmem>>, vector<3x1xi32>
    %78 = vector.broadcast %77 : vector<3x1xi32> to vector<3x256xi32>
    %79 = arith.cmpi sge, %76, %78 : vector<3x256xi32>
    %c0_31 = arith.constant 0 : index
    %c0_32 = arith.constant 0 : index
    %80 = vector.load %arg5[%c0_31, %c0_32] : memref<3x1xi32, #tpu.memory_space<vmem>>, vector<3x1xi32>
    %81 = vector.broadcast %80 : vector<3x1xi32> to vector<3x256xi32>
    %82 = arith.cmpi slt, %76, %81 : vector<3x256xi32>
    %83 = arith.andi %79, %82 : vector<3x256xi1>
    %84 = arith.extui %83 : vector<3x256xi1> to vector<3x256xi32>
    %85 = arith.sitofp %84 : vector<3x256xi32> to vector<3x256xf32>
    %c0_33 = arith.constant 0 : index
    %c0_34 = arith.constant 0 : index
    %86 = vector.load %arg6[%c0_33, %c0_34] : memref<3x1xf32, #tpu.memory_space<vmem>>, vector<3x1xf32>
    %87 = vector.broadcast %86 : vector<3x1xf32> to vector<3x256xf32>
    %88 = arith.mulf %85, %87 : vector<3x256xf32>
    %c0_35 = arith.constant 0 : index
    %c0_36 = arith.constant 0 : index
    %89 = vector.load %arg21[%c0_35, %c0_36] : memref<3x32xf32, #tpu.memory_space<vmem>>, vector<3x32xf32>
    %cst_37 = arith.constant dense<0.000000e+00> : vector<3x32xf32>
    %90 = tpu.matmul %88, %72, %cst_37 {dimension_numbers = #tpu.dot_dimension_numbers<[1], [0], [0], [1], [0, 0, 1, 1], [], []>} : vector<3x256xf32>, vector<256x32xf32>, vector<3x32xf32> -> vector<3x32xf32>
    %91 = arith.addf %89, %90 : vector<3x32xf32>
    %c0_38 = arith.constant 0 : index
    %c0_39 = arith.constant 0 : index
    %92 = vector.load %arg21[%c0_38, %c0_39] : memref<3x32xf32, #tpu.memory_space<vmem>>, vector<3x32xf32>
    tpu.vector_store %arg21[%c0_38, %c0_39], %91 {strides = array<i32>} : memref<3x32xf32, #tpu.memory_space<vmem>>, vector<3x32xf32>,
    %c1_i32 = arith.constant 1 : i32
    %93 = arith.cmpi eq, %arg0, %c1_i32 : i32
    %94 = arith.extui %93 : i1 to i32
    %c0_i32_40 = arith.constant 0 : i32
    %95 = arith.cmpi ne, %94, %c0_i32_40 : i32
    scf.if %95 {
      %c0_41 = arith.constant 0 : index
      %c0_42 = arith.constant 0 : index
      %96 = vector.load %arg21[%c0_41, %c0_42] : memref<3x32xf32, #tpu.memory_space<vmem>>, vector<3x32xf32>
      %c0_43 = arith.constant 0 : index
      %c0_44 = arith.constant 0 : index
      %97 = vector.load %arg15[%c0_43, %c0_44] : memref<32x64xf32, #tpu.memory_space<vmem>>, vector<32x64xf32>
      %cst_45 = arith.constant dense<0.000000e+00> : vector<3x64xf32>
      %98 = tpu.matmul %96, %97, %cst_45 {dimension_numbers = #tpu.dot_dimension_numbers<[1], [0], [0], [1], [0, 0, 1, 1], [], []>} : vector<3x32xf32>, vector<32x64xf32>, vector<3x64xf32> -> vector<3x64xf32>
      %c0_46 = arith.constant 0 : index
      %c0_47 = arith.constant 0 : index
      %99 = vector.load %arg14[%c0_46, %c0_47] : memref<3x8xf32, #tpu.memory_space<vmem>>, vector<3x8xf32>
      %c0_48 = arith.constant 0 : index
      %c0_49 = arith.constant 0 : index
      %100 = vector.load %arg16[%c0_48, %c0_49] : memref<8x64xf32, #tpu.memory_space<vmem>>, vector<8x64xf32>
      %cst_50 = arith.constant dense<0.000000e+00> : vector<3x64xf32>
      %101 = tpu.matmul %99, %100, %cst_50 {dimension_numbers = #tpu.dot_dimension_numbers<[1], [0], [0], [1], [0, 0, 1, 1], [], []>} : vector<3x8xf32>, vector<8x64xf32>, vector<3x64xf32> -> vector<3x64xf32>
      %102 = arith.addf %98, %101 : vector<3x64xf32>
      %c0_51 = arith.constant 0 : index
      %c0_52 = arith.constant 0 : index
      %103 = vector.load %arg17[%c0_51, %c0_52] : memref<1x64xf32, #tpu.memory_space<vmem>>, vector<1x64xf32>
      %104 = vector.broadcast %103 : vector<1x64xf32> to vector<3x64xf32>
      %105 = arith.addf %102, %104 : vector<3x64xf32>
      %cst_53 = arith.constant 0.000000e+00 : f32
      %106 = vector.broadcast %cst_53 : f32 to vector<3x64xf32>
      %107 = arith.maximumf %105, %106 : vector<3x64xf32>
      %c0_54 = arith.constant 0 : index
      %c0_55 = arith.constant 0 : index
      %108 = vector.load %arg18[%c0_54, %c0_55] : memref<64x3xf32, #tpu.memory_space<vmem>>, vector<64x3xf32>
      %cst_56 = arith.constant dense<0.000000e+00> : vector<3x3xf32>
      %109 = tpu.matmul %107, %108, %cst_56 {dimension_numbers = #tpu.dot_dimension_numbers<[1], [0], [0], [1], [0, 0, 1, 1], [], []>} : vector<3x64xf32>, vector<64x3xf32>, vector<3x3xf32> -> vector<3x3xf32>
      %c0_57 = arith.constant 0 : index
      %c0_58 = arith.constant 0 : index
      %110 = vector.load %arg19[%c0_57, %c0_58] : memref<1x3xf32, #tpu.memory_space<vmem>>, vector<1x3xf32>
      %111 = vector.broadcast %110 : vector<1x3xf32> to vector<3x3xf32>
      %112 = arith.addf %109, %111 : vector<3x3xf32>
      %113 = arith.negf %112 : vector<3x3xf32>
      %114 = math.exp %113 : vector<3x3xf32>
      %cst_59 = arith.constant 1.000000e+00 : f32
      %115 = vector.broadcast %cst_59 : f32 to vector<3x3xf32>
      %116 = arith.addf %115, %114 : vector<3x3xf32>
      %117 = arith.divf %115, %116 : vector<3x3xf32>
      %c0_60 = arith.constant 0 : index
      %c0_61 = arith.constant 0 : index
      %118 = vector.load %arg20[%c0_60, %c0_61] : memref<3x3xf32, #tpu.memory_space<vmem>>, vector<3x3xf32>
      tpu.vector_store %arg20[%c0_60, %c0_61], %117 {strides = array<i32>} : memref<3x3xf32, #tpu.memory_space<vmem>>, vector<3x3xf32>,
    } else {
    }
    return
  }
  func.func @transform_0(%arg0: i32) -> (i32, i32) {
    %c0_i32 = arith.constant 0 : i32
    %c0_i32_0 = arith.constant 0 : i32
    %c0_i32_1 = arith.constant 0 : i32
    return %c0_i32, %c0_i32_0 : i32, i32
  }
  func.func @transform_1(%arg0: i32) -> (i32, i32) {
    %c0_i32 = arith.constant 0 : i32
    %c0_i32_0 = arith.constant 0 : i32
    return %arg0, %c0_i32 : i32, i32
  }
  func.func @transform_2(%arg0: i32) -> (i32, i32) {
    %c0_i32 = arith.constant 0 : i32
    %c0_i32_0 = arith.constant 0 : i32
    return %arg0, %c0_i32 : i32, i32
  }
  func.func @transform_3(%arg0: i32) -> (i32, i32) {
    %c0_i32 = arith.constant 0 : i32
    %c0_i32_0 = arith.constant 0 : i32
    %c0_i32_1 = arith.constant 0 : i32
    return %c0_i32, %c0_i32_0 : i32, i32
  }
  func.func @transform_4(%arg0: i32) -> (i32, i32) {
    %c0_i32 = arith.constant 0 : i32
    %c0_i32_0 = arith.constant 0 : i32
    %c0_i32_1 = arith.constant 0 : i32
    return %c0_i32, %c0_i32_0 : i32, i32
  }
  func.func @transform_5(%arg0: i32) -> (i32, i32) {
    %c0_i32 = arith.constant 0 : i32
    %c0_i32_0 = arith.constant 0 : i32
    %c0_i32_1 = arith.constant 0 : i32
    return %c0_i32, %c0_i32_0 : i32, i32
  }
  func.func @transform_6(%arg0: i32) -> (i32, i32) {
    %c0_i32 = arith.constant 0 : i32
    %c0_i32_0 = arith.constant 0 : i32
    %c0_i32_1 = arith.constant 0 : i32
    return %c0_i32, %c0_i32_0 : i32, i32
  }
  func.func @transform_7(%arg0: i32) -> (i32, i32) {
    %c0_i32 = arith.constant 0 : i32
    %c0_i32_0 = arith.constant 0 : i32
    %c0_i32_1 = arith.constant 0 : i32
    return %c0_i32, %c0_i32_0 : i32, i32
  }
  func.func @transform_8(%arg0: i32) -> (i32, i32) {
    %c0_i32 = arith.constant 0 : i32
    %c0_i32_0 = arith.constant 0 : i32
    %c0_i32_1 = arith.constant 0 : i32
    return %c0_i32, %c0_i32_0 : i32, i32
  }
  func.func @transform_9(%arg0: i32) -> (i32, i32) {
    %c0_i32 = arith.constant 0 : i32
    %c0_i32_0 = arith.constant 0 : i32
    %c0_i32_1 = arith.constant 0 : i32
    return %c0_i32, %c0_i32_0 : i32, i32
  }
  func.func @transform_10(%arg0: i32) -> (i32, i32) {
    %c0_i32 = arith.constant 0 : i32
    %c0_i32_0 = arith.constant 0 : i32
    %c0_i32_1 = arith.constant 0 : i32
    return %c0_i32, %c0_i32_0 : i32, i32
  }
  func.func @transform_11(%arg0: i32) -> (i32, i32) {
    %c0_i32 = arith.constant 0 : i32
    %c0_i32_0 = arith.constant 0 : i32
    %c0_i32_1 = arith.constant 0 : i32
    return %c0_i32, %c0_i32_0 : i32, i32
  }
  func.func @transform_12(%arg0: i32) -> (i32, i32) {
    %c0_i32 = arith.constant 0 : i32
    %c0_i32_0 = arith.constant 0 : i32
    %c0_i32_1 = arith.constant 0 : i32
    return %c0_i32, %c0_i32_0 : i32, i32
  }
  func.func @transform_13(%arg0: i32) -> (i32, i32) {
    %c0_i32 = arith.constant 0 : i32
    %c0_i32_0 = arith.constant 0 : i32
    %c0_i32_1 = arith.constant 0 : i32
    return %c0_i32, %c0_i32_0 : i32, i32
  }
  func.func @transform_14(%arg0: i32) -> (i32, i32) {
    %c0_i32 = arith.constant 0 : i32
    %c0_i32_0 = arith.constant 0 : i32
    %c0_i32_1 = arith.constant 0 : i32
    return %c0_i32, %c0_i32_0 : i32, i32
  }
  func.func @transform_15(%arg0: i32) -> (i32, i32) {
    %c0_i32 = arith.constant 0 : i32
    %c0_i32_0 = arith.constant 0 : i32
    %c0_i32_1 = arith.constant 0 : i32
    return %c0_i32, %c0_i32_0 : i32, i32
  }
  func.func @transform_16(%arg0: i32) -> (i32, i32) {
    %c0_i32 = arith.constant 0 : i32
    %c0_i32_0 = arith.constant 0 : i32
    %c0_i32_1 = arith.constant 0 : i32
    return %c0_i32, %c0_i32_0 : i32, i32
  }
  func.func @transform_17(%arg0: i32) -> (i32, i32) {
    %c0_i32 = arith.constant 0 : i32
    %c0_i32_0 = arith.constant 0 : i32
    %c0_i32_1 = arith.constant 0 : i32
    return %c0_i32, %c0_i32_0 : i32, i32
  }
  func.func @transform_18(%arg0: i32) -> (i32, i32) {
    %c0_i32 = arith.constant 0 : i32
    %c0_i32_0 = arith.constant 0 : i32
    %c0_i32_1 = arith.constant 0 : i32
    return %c0_i32, %c0_i32_0 : i32, i32
  }
  func.func @transform_19(%arg0: i32) -> (i32, i32) {
    %c0_i32 = arith.constant 0 : i32
    %c0_i32_0 = arith.constant 0 : i32
    %c0_i32_1 = arith.constant 0 : i32
    return %c0_i32, %c0_i32_0 : i32, i32
  }
}

</mosaic_0001>

<llo_original>
// kernel: ffn_forward.1
$region0: #{ffn_forward.1}
  #allocation0 [shape = 'u32[]', space=smem, size = 0x4, offset = 0x4, fixed_abs, tag = 'smem constant byte address 0x4 - core index']
  #allocation1 [shape = 'u32[144,128]{1,0:T(1,128)}', space=vmem, size = 0x12000, scoped, tag = 'internal scratch']
  #allocation2 [shape = 'f32[3,32]{1,0:T(4,128)}', space=vmem, size = 0x800, scoped, tag = 'scratch operand']
  %s0 = inlined_call_operand.vmem [shape: f32[512,32], index: 0, kind: input, shape index: {}]
  %s1 = inlined_call_operand.vmem [shape: f32[512,16], index: 1, kind: input, shape index: {}]
  %s2 = inlined_call_operand.vmem [shape: s32[512,4], index: 2, kind: input, shape index: {}]
  %s3 = inlined_call_operand.vmem [shape: s32[3,1], index: 3, kind: input, shape index: {}]
  %s4 = inlined_call_operand.vmem [shape: s32[3,1], index: 4, kind: input, shape index: {}]
  %s5 = inlined_call_operand.vmem [shape: f32[3,1], index: 5, kind: input, shape index: {}]
  %s6 = inlined_call_operand.vmem [shape: bf16[16,128], index: 6, kind: input, shape index: {}]
  %s7 = inlined_call_operand.vmem [shape: bf16[32,128], index: 7, kind: input, shape index: {}]
  %s8 = inlined_call_operand.vmem [shape: f32[1,128], index: 8, kind: input, shape index: {}]
  %s9 = inlined_call_operand.vmem [shape: bf16[128,32], index: 9, kind: input, shape index: {}]
  %s10 = inlined_call_operand.vmem [shape: f32[1,32], index: 10, kind: input, shape index: {}]
  %s11 = inlined_call_operand.vmem [shape: f32[1,32], index: 11, kind: input, shape index: {}]
  %s12 = inlined_call_operand.vmem [shape: f32[1,32], index: 12, kind: input, shape index: {}]
  %s13 = inlined_call_operand.vmem [shape: f32[3,8], index: 13, kind: input, shape index: {}]
  %s14 = inlined_call_operand.vmem [shape: f32[32,64], index: 14, kind: input, shape index: {}]
  %s15 = inlined_call_operand.vmem [shape: f32[8,64], index: 15, kind: input, shape index: {}]
  %s16 = inlined_call_operand.vmem [shape: f32[1,64], index: 16, kind: input, shape index: {}]
  %s17 = inlined_call_operand.vmem [shape: f32[64,3], index: 17, kind: input, shape index: {}]
  %s18 = inlined_call_operand.vmem [shape: f32[1,3], index: 18, kind: input, shape index: {}]
  %s19 = inlined_call_operand.hbm [shape: f32[3,3], index: 19, kind: output, shape index: {}]
  %s20 = sld [smem:[#allocation0]]
  $region117: #{ffn_forward.1} parent=0
    _
  %s22 = ssub.s32 1, %s20
  %s23 = scalar_select 0, %s22, %s20
  $region1: #{ffn_forward.1} parent=0
    #allocation3 [shape = 'u8[2048]{0}', space=vmem, size = 0x800, scoped, tag = 'output window, operand 0, single buffered']
    #allocation4 [shape = 's32[2]{0}', space=sflag, size = 0x8, scoped, tag = 'scoped memory for ffn_forward.1']
    %24 = vsyncpa [#allocation4], 0
    loop: start=0, step=1, limit=4
    $region2: #{ffn_forward.1} parent=1 // loop_pre_header
      _
    $region3: #{ffn_forward.1} parent=1 // loop_header
      %s26 = sphi 0, %s30
      %p27 = scmp.ge.s32.totalorder %s26, 4
      %s34 = sphi 0, %s34
      %s36 = sphi 0, %s34
      %s37 = sphi 0, %s36
      %s51 = sphi 0, %s37
      %s57 = sphi 0, %s59
      %s60 = sphi 0, %s57
      %s61 = sphi 0, %s60
      %s77 = sphi 0, %s61
      %s83 = sphi 0, %s85
      %s86 = sphi 0, %s83
      %s87 = sphi 0, %s86
      %s103 = sphi 0, %s87
      %s107 = sphi 0, %s107
      %s109 = sphi 0, %s107
      %s110 = sphi 0, %s109
      %s124 = sphi 0, %s110
      %s128 = sphi 0, %s128
      %s130 = sphi 0, %s128
      %s131 = sphi 0, %s130
      %s145 = sphi 0, %s131
      %s149 = sphi 0, %s149
      %s151 = sphi 0, %s149
      %s152 = sphi 0, %s151
      %s166 = sphi 0, %s152
      %s170 = sphi 0, %s170
      %s172 = sphi 0, %s170
      %s173 = sphi 0, %s172
      %s187 = sphi 0, %s173
      %s191 = sphi 0, %s191
      %s193 = sphi 0, %s191
      %s194 = sphi 0, %s193
      %s208 = sphi 0, %s194
      %s212 = sphi 0, %s212
      %s214 = sphi 0, %s212
      %s215 = sphi 0, %s214
      %s229 = sphi 0, %s215
      %s233 = sphi 0, %s233
      %s235 = sphi 0, %s233
      %s236 = sphi 0, %s235
      %s250 = sphi 0, %s236
      %s254 = sphi 0, %s254
      %s256 = sphi 0, %s254
      %s257 = sphi 0, %s256
      %s271 = sphi 0, %s257
      %s275 = sphi 0, %s275
      %s277 = sphi 0, %s275
      %s278 = sphi 0, %s277
      %s292 = sphi 0, %s278
      %s296 = sphi 0, %s296
      %s298 = sphi 0, %s296
      %s299 = sphi 0, %s298
      %s313 = sphi 0, %s299
      %s317 = sphi 0, %s317
      %s319 = sphi 0, %s317
      %s320 = sphi 0, %s319
      %s334 = sphi 0, %s320
      %s338 = sphi 0, %s338
      %s340 = sphi 0, %s338
      %s341 = sphi 0, %s340
      %s355 = sphi 0, %s341
      %s359 = sphi 0, %s359
      %s361 = sphi 0, %s359
      %s362 = sphi 0, %s361
      %s376 = sphi 0, %s362
      %s380 = sphi 0, %s380
      %s382 = sphi 0, %s380
      %s383 = sphi 0, %s382
      %s397 = sphi 0, %s383
      %s401 = sphi 0, %s401
      %s403 = sphi 0, %s401
      %s404 = sphi 0, %s403
      %s418 = sphi 0, %s404
      %s422 = sphi 0, %s422
      %s424 = sphi 0, %s422
      %s425 = sphi 0, %s424
      %s439 = sphi 0, %s425
      %s443 = sphi 0, %s443
      %s445 = sphi 0, %s443
      %s446 = sphi 0, %s445
      %s460 = sphi 0, %s446
    $region4: #{ffn_forward.1} parent=1 // loop_header_branch
      %29 = sbr.rel (%p27) target = $region8
    $region5: #{ffn_forward.1} parent=1 // loop_body
      %s31 = ssub.s32 %s26, 1
      %s32 = ssub.s32 %s26, 2
      %s33 = sadd.s32 %s26, 1
      %s35 = sadd.s32 %s34, 1
      %p38 = scmp.eq.s32.totalorder %s26, 1
      %p39 = scmp.ne.s32.totalorder %s34, %s36
      %p40 = scmp.eq.s32.totalorder %s26, 0
      %p41 = por %p39, %p40
      %p42 = scmp.ne.s32.totalorder %s34, %s36
      %p43 = scmp.eq.s32.totalorder %s31, 1
      %p44 = por %p42, %p43
      %p45 = scmp.ne.s32.totalorder %s36, %s37
      %p46 = scmp.eq.s32.totalorder %s31, 0
      %p47 = por %p45, %p46
      %p48 = scmp.ne.s32.totalorder %s36, %s37
      %p49 = scmp.eq.s32.totalorder %s32, 1
      %p50 = por %p48, %p49
      %p52 = scmp.ne.s32.totalorder %s37, %s51
      %p53 = scmp.eq.s32.totalorder %s32, 0
      %p54 = por %p52, %p53
      %s55 = ssub.s32 %s26, %s33
      %p56 = scmp.eq.s32.totalorder %s55, 0
      %s58 = sadd.s32 %s57, 1
      %s59 = scalar_select %p56, %s57, %s58
      %p62 = pneg %p56
      %p63 = scmp.eq.s32.totalorder %s26, 1
      %p64 = por %p62, %p63
      %p65 = scmp.ne.s32.totalorder %s57, %s60
      %p66 = scmp.eq.s32.totalorder %s26, 0
      %p67 = por %p65, %p66
      %p68 = scmp.ne.s32.totalorder %s57, %s60
      %p69 = scmp.eq.s32.totalorder %s31, 1
      %p70 = por %p68, %p69
      %p71 = scmp.ne.s32.totalorder %s60, %s61
      %p72 = scmp.eq.s32.totalorder %s31, 0
      %p73 = por %p71, %p72
      %p74 = scmp.ne.s32.totalorder %s60, %s61
      %p75 = scmp.eq.s32.totalorder %s32, 1
      %p76 = por %p74, %p75
      %p78 = scmp.ne.s32.totalorder %s61, %s77
      %p79 = scmp.eq.s32.totalorder %s32, 0
      %p80 = por %p78, %p79
      %s81 = ssub.s32 %s26, %s33
      %p82 = scmp.eq.s32.totalorder %s81, 0
      %s84 = sadd.s32 %s83, 1
      %s85 = scalar_select %p82, %s83, %s84
      %p88 = pneg %p82
      %p89 = scmp.eq.s32.totalorder %s26, 1
      %p90 = por %p88, %p89
      %p91 = scmp.ne.s32.totalorder %s83, %s86
      %p92 = scmp.eq.s32.totalorder %s26, 0
      %p93 = por %p91, %p92
      %p94 = scmp.ne.s32.totalorder %s83, %s86
      %p95 = scmp.eq.s32.totalorder %s31, 1
      %p96 = por %p94, %p95
      %p97 = scmp.ne.s32.totalorder %s86, %s87
      %p98 = scmp.eq.s32.totalorder %s31, 0
      %p99 = por %p97, %p98
      %p100 = scmp.ne.s32.totalorder %s86, %s87
      %p101 = scmp.eq.s32.totalorder %s32, 1
      %p102 = por %p100, %p101
      %p104 = scmp.ne.s32.totalorder %s87, %s103
      %p105 = scmp.eq.s32.totalorder %s32, 0
      %p106 = por %p104, %p105
      %s108 = sadd.s32 %s107, 1
      %p111 = scmp.eq.s32.totalorder %s26, 1
      %p112 = scmp.ne.s32.totalorder %s107, %s109
      %p113 = scmp.eq.s32.totalorder %s26, 0
      %p114 = por %p112, %p113
      %p115 = scmp.ne.s32.totalorder %s107, %s109
      %p116 = scmp.eq.s32.totalorder %s31, 1
      %p117 = por %p115, %p116
      %p118 = scmp.ne.s32.totalorder %s109, %s110
      %p119 = scmp.eq.s32.totalorder %s31, 0
      %p120 = por %p118, %p119
      %p121 = scmp.ne.s32.totalorder %s109, %s110
      %p122 = scmp.eq.s32.totalorder %s32, 1
      %p123 = por %p121, %p122
      %p125 = scmp.ne.s32.totalorder %s110, %s124
      %p126 = scmp.eq.s32.totalorder %s32, 0
      %p127 = por %p125, %p126
      %s129 = sadd.s32 %s128, 1
      %p132 = scmp.eq.s32.totalorder %s26, 1
      %p133 = scmp.ne.s32.totalorder %s128, %s130
      %p134 = scmp.eq.s32.totalorder %s26, 0
      %p135 = por %p133, %p134
      %p136 = scmp.ne.s32.totalorder %s128, %s130
      %p137 = scmp.eq.s32.totalorder %s31, 1
      %p138 = por %p136, %p137
      %p139 = scmp.ne.s32.totalorder %s130, %s131
      %p140 = scmp.eq.s32.totalorder %s31, 0
      %p141 = por %p139, %p140
      %p142 = scmp.ne.s32.totalorder %s130, %s131
      %p143 = scmp.eq.s32.totalorder %s32, 1
      %p144 = por %p142, %p143
      %p146 = scmp.ne.s32.totalorder %s131, %s145
      %p147 = scmp.eq.s32.totalorder %s32, 0
      %p148 = por %p146, %p147
      %s150 = sadd.s32 %s149, 1
      %p153 = scmp.eq.s32.totalorder %s26, 1
      %p154 = scmp.ne.s32.totalorder %s149, %s151
      %p155 = scmp.eq.s32.totalorder %s26, 0
      %p156 = por %p154, %p155
      %p157 = scmp.ne.s32.totalorder %s149, %s151
      %p158 = scmp.eq.s32.totalorder %s31, 1
      %p159 = por %p157, %p158
      %p160 = scmp.ne.s32.totalorder %s151, %s152
      %p161 = scmp.eq.s32.totalorder %s31, 0
      %p162 = por %p160, %p161
      %p163 = scmp.ne.s32.totalorder %s151, %s152
      %p164 = scmp.eq.s32.totalorder %s32, 1
      %p165 = por %p163, %p164
      %p167 = scmp.ne.s32.totalorder %s152, %s166
      %p168 = scmp.eq.s32.totalorder %s32, 0
      %p169 = por %p167, %p168
      %s171 = sadd.s32 %s170, 1
      %p174 = scmp.eq.s32.totalorder %s26, 1
      %p175 = scmp.ne.s32.totalorder %s170, %s172
      %p176 = scmp.eq.s32.totalorder %s26, 0
      %p177 = por %p175, %p176
      %p178 = scmp.ne.s32.totalorder %s170, %s172
      %p179 = scmp.eq.s32.totalorder %s31, 1
      %p180 = por %p178, %p179
      %p181 = scmp.ne.s32.totalorder %s172, %s173
      %p182 = scmp.eq.s32.totalorder %s31, 0
      %p183 = por %p181, %p182
      %p184 = scmp.ne.s32.totalorder %s172, %s173
      %p185 = scmp.eq.s32.totalorder %s32, 1
      %p186 = por %p184, %p185
      %p188 = scmp.ne.s32.totalorder %s173, %s187
      %p189 = scmp.eq.s32.totalorder %s32, 0
      %p190 = por %p188, %p189
      %s192 = sadd.s32 %s191, 1
      %p195 = scmp.eq.s32.totalorder %s26, 1
      %p196 = scmp.ne.s32.totalorder %s191, %s193
      %p197 = scmp.eq.s32.totalorder %s26, 0
      %p198 = por %p196, %p197
      %p199 = scmp.ne.s32.totalorder %s191, %s193
      %p200 = scmp.eq.s32.totalorder %s31, 1
      %p201 = por %p199, %p200
      %p202 = scmp.ne.s32.totalorder %s193, %s194
      %p203 = scmp.eq.s32.totalorder %s31, 0
      %p204 = por %p202, %p203
      %p205 = scmp.ne.s32.totalorder %s193, %s194
      %p206 = scmp.eq.s32.totalorder %s32, 1
      %p207 = por %p205, %p206
      %p209 = scmp.ne.s32.totalorder %s194, %s208
      %p210 = scmp.eq.s32.totalorder %s32, 0
      %p211 = por %p209, %p210
      %s213 = sadd.s32 %s212, 1
      %p216 = scmp.eq.s32.totalorder %s26, 1
      %p217 = scmp.ne.s32.totalorder %s212, %s214
      %p218 = scmp.eq.s32.totalorder %s26, 0
      %p219 = por %p217, %p218
      %p220 = scmp.ne.s32.totalorder %s212, %s214
      %p221 = scmp.eq.s32.totalorder %s31, 1
      %p222 = por %p220, %p221
      %p223 = scmp.ne.s32.totalorder %s214, %s215
      %p224 = scmp.eq.s32.totalorder %s31, 0
      %p225 = por %p223, %p224
      %p226 = scmp.ne.s32.totalorder %s214, %s215
      %p227 = scmp.eq.s32.totalorder %s32, 1
      %p228 = por %p226, %p227
      %p230 = scmp.ne.s32.totalorder %s215, %s229
      %p231 = scmp.eq.s32.totalorder %s32, 0
      %p232 = por %p230, %p231
      %s234 = sadd.s32 %s233, 1
      %p237 = scmp.eq.s32.totalorder %s26, 1
      %p238 = scmp.ne.s32.totalorder %s233, %s235
      %p239 = scmp.eq.s32.totalorder %s26, 0
      %p240 = por %p238, %p239
      %p241 = scmp.ne.s32.totalorder %s233, %s235
      %p242 = scmp.eq.s32.totalorder %s31, 1
      %p243 = por %p241, %p242
      %p244 = scmp.ne.s32.totalorder %s235, %s236
      %p245 = scmp.eq.s32.totalorder %s31, 0
      %p246 = por %p244, %p245
      %p247 = scmp.ne.s32.totalorder %s235, %s236
      %p248 = scmp.eq.s32.totalorder %s32, 1
      %p249 = por %p247, %p248
      %p251 = scmp.ne.s32.totalorder %s236, %s250
      %p252 = scmp.eq.s32.totalorder %s32, 0
      %p253 = por %p251, %p252
      %s255 = sadd.s32 %s254, 1
      %p258 = scmp.eq.s32.totalorder %s26, 1
      %p259 = scmp.ne.s32.totalorder %s254, %s256
      %p260 = scmp.eq.s32.totalorder %s26, 0
      %p261 = por %p259, %p260
      %p262 = scmp.ne.s32.totalorder %s254, %s256
      %p263 = scmp.eq.s32.totalorder %s31, 1
      %p264 = por %p262, %p263
      %p265 = scmp.ne.s32.totalorder %s256, %s257
      %p266 = scmp.eq.s32.totalorder %s31, 0
      %p267 = por %p265, %p266
      %p268 = scmp.ne.s32.totalorder %s256, %s257
      %p269 = scmp.eq.s32.totalorder %s32, 1
      %p270 = por %p268, %p269
      %p272 = scmp.ne.s32.totalorder %s257, %s271
      %p273 = scmp.eq.s32.totalorder %s32, 0
      %p274 = por %p272, %p273
      %s276 = sadd.s32 %s275, 1
      %p279 = scmp.eq.s32.totalorder %s26, 1
      %p280 = scmp.ne.s32.totalorder %s275, %s277
      %p281 = scmp.eq.s32.totalorder %s26, 0
      %p282 = por %p280, %p281
      %p283 = scmp.ne.s32.totalorder %s275, %s277
      %p284 = scmp.eq.s32.totalorder %s31, 1
      %p285 = por %p283, %p284
      %p286 = scmp.ne.s32.totalorder %s277, %s278
      %p287 = scmp.eq.s32.totalorder %s31, 0
      %p288 = por %p286, %p287
      %p289 = scmp.ne.s32.totalorder %s277, %s278
      %p290 = scmp.eq.s32.totalorder %s32, 1
      %p291 = por %p289, %p290
      %p293 = scmp.ne.s32.totalorder %s278, %s292
      %p294 = scmp.eq.s32.totalorder %s32, 0
      %p295 = por %p293, %p294
      %s297 = sadd.s32 %s296, 1
      %p300 = scmp.eq.s32.totalorder %s26, 1
      %p301 = scmp.ne.s32.totalorder %s296, %s298
      %p302 = scmp.eq.s32.totalorder %s26, 0
      %p303 = por %p301, %p302
      %p304 = scmp.ne.s32.totalorder %s296, %s298
      %p305 = scmp.eq.s32.totalorder %s31, 1
      %p306 = por %p304, %p305
      %p307 = scmp.ne.s32.totalorder %s298, %s299
      %p308 = scmp.eq.s32.totalorder %s31, 0
      %p309 = por %p307, %p308
      %p310 = scmp.ne.s32.totalorder %s298, %s299
      %p311 = scmp.eq.s32.totalorder %s32, 1
      %p312 = por %p310, %p311
      %p314 = scmp.ne.s32.totalorder %s299, %s313
      %p315 = scmp.eq.s32.totalorder %s32, 0
      %p316 = por %p314, %p315
      %s318 = sadd.s32 %s317, 1
      %p321 = scmp.eq.s32.totalorder %s26, 1
      %p322 = scmp.ne.s32.totalorder %s317, %s319
      %p323 = scmp.eq.s32.totalorder %s26, 0
      %p324 = por %p322, %p323
      %p325 = scmp.ne.s32.totalorder %s317, %s319
      %p326 = scmp.eq.s32.totalorder %s31, 1
      %p327 = por %p325, %p326
      %p328 = scmp.ne.s32.totalorder %s319, %s320
      %p329 = scmp.eq.s32.totalorder %s31, 0
      %p330 = por %p328, %p329
      %p331 = scmp.ne.s32.totalorder %s319, %s320
      %p332 = scmp.eq.s32.totalorder %s32, 1
      %p333 = por %p331, %p332
      %p335 = scmp.ne.s32.totalorder %s320, %s334
      %p336 = scmp.eq.s32.totalorder %s32, 0
      %p337 = por %p335, %p336
      %s339 = sadd.s32 %s338, 1
      %p342 = scmp.eq.s32.totalorder %s26, 1
      %p343 = scmp.ne.s32.totalorder %s338, %s340
      %p344 = scmp.eq.s32.totalorder %s26, 0
      %p345 = por %p343, %p344
      %p346 = scmp.ne.s32.totalorder %s338, %s340
      %p347 = scmp.eq.s32.totalorder %s31, 1
      %p348 = por %p346, %p347
      %p349 = scmp.ne.s32.totalorder %s340, %s341
      %p350 = scmp.eq.s32.totalorder %s31, 0
      %p351 = por %p349, %p350
      %p352 = scmp.ne.s32.totalorder %s340, %s341
      %p353 = scmp.eq.s32.totalorder %s32, 1
      %p354 = por %p352, %p353
      %p356 = scmp.ne.s32.totalorder %s341, %s355
      %p357 = scmp.eq.s32.totalorder %s32, 0
      %p358 = por %p356, %p357
      %s360 = sadd.s32 %s359, 1
      %p363 = scmp.eq.s32.totalorder %s26, 1
      %p364 = scmp.ne.s32.totalorder %s359, %s361
      %p365 = scmp.eq.s32.totalorder %s26, 0
      %p366 = por %p364, %p365
      %p367 = scmp.ne.s32.totalorder %s359, %s361
      %p368 = scmp.eq.s32.totalorder %s31, 1
      %p369 = por %p367, %p368
      %p370 = scmp.ne.s32.totalorder %s361, %s362
      %p371 = scmp.eq.s32.totalorder %s31, 0
      %p372 = por %p370, %p371
      %p373 = scmp.ne.s32.totalorder %s361, %s362
      %p374 = scmp.eq.s32.totalorder %s32, 1
      %p375 = por %p373, %p374
      %p377 = scmp.ne.s32.totalorder %s362, %s376
      %p378 = scmp.eq.s32.totalorder %s32, 0
      %p379 = por %p377, %p378
      %s381 = sadd.s32 %s380, 1
      %p384 = scmp.eq.s32.totalorder %s26, 1
      %p385 = scmp.ne.s32.totalorder %s380, %s382
      %p386 = scmp.eq.s32.totalorder %s26, 0
      %p387 = por %p385, %p386
      %p388 = scmp.ne.s32.totalorder %s380, %s382
      %p389 = scmp.eq.s32.totalorder %s31, 1
      %p390 = por %p388, %p389
      %p391 = scmp.ne.s32.totalorder %s382, %s383
      %p392 = scmp.eq.s32.totalorder %s31, 0
      %p393 = por %p391, %p392
      %p394 = scmp.ne.s32.totalorder %s382, %s383
      %p395 = scmp.eq.s32.totalorder %s32, 1
      %p396 = por %p394, %p395
      %p398 = scmp.ne.s32.totalorder %s383, %s397
      %p399 = scmp.eq.s32.totalorder %s32, 0
      %p400 = por %p398, %p399
      %s402 = sadd.s32 %s401, 1
      %p405 = scmp.eq.s32.totalorder %s26, 1
      %p406 = scmp.ne.s32.totalorder %s401, %s403
      %p407 = scmp.eq.s32.totalorder %s26, 0
      %p408 = por %p406, %p407
      %p409 = scmp.ne.s32.totalorder %s401, %s403
      %p410 = scmp.eq.s32.totalorder %s31, 1
      %p411 = por %p409, %p410
      %p412 = scmp.ne.s32.totalorder %s403, %s404
      %p413 = scmp.eq.s32.totalorder %s31, 0
      %p414 = por %p412, %p413
      %p415 = scmp.ne.s32.totalorder %s403, %s404
      %p416 = scmp.eq.s32.totalorder %s32, 1
      %p417 = por %p415, %p416
      %p419 = scmp.ne.s32.totalorder %s404, %s418
      %p420 = scmp.eq.s32.totalorder %s32, 0
      %p421 = por %p419, %p420
      %s423 = sadd.s32 %s422, 1
      %p426 = scmp.eq.s32.totalorder %s26, 1
      %p427 = scmp.ne.s32.totalorder %s422, %s424
      %p428 = scmp.eq.s32.totalorder %s26, 0
      %p429 = por %p427, %p428
      %p430 = scmp.ne.s32.totalorder %s422, %s424
      %p431 = scmp.eq.s32.totalorder %s31, 1
      %p432 = por %p430, %p431
      %p433 = scmp.ne.s32.totalorder %s424, %s425
      %p434 = scmp.eq.s32.totalorder %s31, 0
      %p435 = por %p433, %p434
      %p436 = scmp.ne.s32.totalorder %s424, %s425
      %p437 = scmp.eq.s32.totalorder %s32, 1
      %p438 = por %p436, %p437
      %p440 = scmp.ne.s32.totalorder %s425, %s439
      %p441 = scmp.eq.s32.totalorder %s32, 0
      %p442 = por %p440, %p441
      %s444 = sadd.s32 %s443, 1
      %p447 = scmp.eq.s32.totalorder %s26, 1
      %p448 = scmp.ne.s32.totalorder %s443, %s445
      %p449 = scmp.eq.s32.totalorder %s26, 0
      %p450 = por %p448, %p449
      %p451 = scmp.ne.s32.totalorder %s443, %s445
      %p452 = scmp.eq.s32.totalorder %s31, 1
      %p453 = por %p451, %p452
      %p454 = scmp.ne.s32.totalorder %s445, %s446
      %p455 = scmp.eq.s32.totalorder %s31, 0
      %p456 = por %p454, %p455
      %p457 = scmp.ne.s32.totalorder %s445, %s446
      %p458 = scmp.eq.s32.totalorder %s32, 1
      %p459 = por %p457, %p458
      %p461 = scmp.ne.s32.totalorder %s446, %s460
      %p462 = scmp.eq.s32.totalorder %s32, 0
      %p463 = por %p461, %p462
      %p464 = scmp.le.s32.totalorder 1, %s26
      %p465 = scmp.lt.s32.totalorder %s26, 3
      %p466 = pnand %p464, %p465
      %p467 = pneg %p466
      // Predicated region
      $region9: #{ffn_forward.1} parent=5 // pred_check
        _
      $region10: #{ffn_forward.1} parent=5 // pred_check_branch
        %469 = sbr.rel (%p466) target = $region12
      $region11: #{ffn_forward.1} parent=5 // pred_region
        %s470 = ssub.s32 %s26, 1
        // Predicated region
        $region13: #{ffn_forward.1} parent=11 // pred_check
          %p471 = pneg %p47
        $region14: #{ffn_forward.1} parent=11 // pred_check_branch
          %473 = sbr.rel (%p471) target = $region16
        $region15: #{ffn_forward.1} parent=11 // pred_region
          _
        $region16: #{ffn_forward.1} parent=11 // pred_fallthru
          _
        // Predicated region
        $region17: #{ffn_forward.1} parent=11 // pred_check
          %p474 = pneg %p120
        $region18: #{ffn_forward.1} parent=11 // pred_check_branch
          %476 = sbr.rel (%p474) target = $region20
        $region19: #{ffn_forward.1} parent=11 // pred_region
          _
        $region20: #{ffn_forward.1} parent=11 // pred_fallthru
          _
        // Predicated region
        $region21: #{ffn_forward.1} parent=11 // pred_check
          %p477 = pneg %p141
        $region22: #{ffn_forward.1} parent=11 // pred_check_branch
          %479 = sbr.rel (%p477) target = $region24
        $region23: #{ffn_forward.1} parent=11 // pred_region
          _
        $region24: #{ffn_forward.1} parent=11 // pred_fallthru
          _
        // Predicated region
        $region25: #{ffn_forward.1} parent=11 // pred_check
          %p480 = pneg %p162
        $region26: #{ffn_forward.1} parent=11 // pred_check_branch
          %482 = sbr.rel (%p480) target = $region28
        $region27: #{ffn_forward.1} parent=11 // pred_region
          _
        $region28: #{ffn_forward.1} parent=11 // pred_fallthru
          _
        // Predicated region
        $region29: #{ffn_forward.1} parent=11 // pred_check
          %p483 = pneg %p183
        $region30: #{ffn_forward.1} parent=11 // pred_check_branch
          %485 = sbr.rel (%p483) target = $region32
        $region31: #{ffn_forward.1} parent=11 // pred_region
          _
        $region32: #{ffn_forward.1} parent=11 // pred_fallthru
          _
        // Predicated region
        $region33: #{ffn_forward.1} parent=11 // pred_check
          %p486 = pneg %p204
        $region34: #{ffn_forward.1} parent=11 // pred_check_branch
          %488 = sbr.rel (%p486) target = $region36
        $region35: #{ffn_forward.1} parent=11 // pred_region
          _
        $region36: #{ffn_forward.1} parent=11 // pred_fallthru
          _
        // Predicated region
        $region37: #{ffn_forward.1} parent=11 // pred_check
          %p489 = pneg %p225
        $region38: #{ffn_forward.1} parent=11 // pred_check_branch
          %491 = sbr.rel (%p489) target = $region40
        $region39: #{ffn_forward.1} parent=11 // pred_region
          _
        $region40: #{ffn_forward.1} parent=11 // pred_fallthru
          _
        // Predicated region
        $region41: #{ffn_forward.1} parent=11 // pred_check
          %p492 = pneg %p246
        $region42: #{ffn_forward.1} parent=11 // pred_check_branch
          %494 = sbr.rel (%p492) target = $region44
        $region43: #{ffn_forward.1} parent=11 // pred_region
          _
        $region44: #{ffn_forward.1} parent=11 // pred_fallthru
          _
        // Predicated region
        $region45: #{ffn_forward.1} parent=11 // pred_check
          %p495 = pneg %p267
        $region46: #{ffn_forward.1} parent=11 // pred_check_branch
          %497 = sbr.rel (%p495) target = $region48
        $region47: #{ffn_forward.1} parent=11 // pred_region
          _
        $region48: #{ffn_forward.1} parent=11 // pred_fallthru
          _
        // Predicated region
        $region49: #{ffn_forward.1} parent=11 // pred_check
          %p498 = pneg %p288
        $region50: #{ffn_forward.1} parent=11 // pred_check_branch
          %500 = sbr.rel (%p498) target = $region52
        $region51: #{ffn_forward.1} parent=11 // pred_region
          _
        $region52: #{ffn_forward.1} parent=11 // pred_fallthru
          _
        // Predicated region
        $region53: #{ffn_forward.1} parent=11 // pred_check
          %p501 = pneg %p309
        $region54: #{ffn_forward.1} parent=11 // pred_check_branch
          %503 = sbr.rel (%p501) target = $region56
        $region55: #{ffn_forward.1} parent=11 // pred_region
          _
        $region56: #{ffn_forward.1} parent=11 // pred_fallthru
          _
        // Predicated region
        $region57: #{ffn_forward.1} parent=11 // pred_check
          %p504 = pneg %p330
        $region58: #{ffn_forward.1} parent=11 // pred_check_branch
          %506 = sbr.rel (%p504) target = $region60
        $region59: #{ffn_forward.1} parent=11 // pred_region
          _
        $region60: #{ffn_forward.1} parent=11 // pred_fallthru
          _
        // Predicated region
        $region61: #{ffn_forward.1} parent=11 // pred_check
          %p507 = pneg %p351
        $region62: #{ffn_forward.1} parent=11 // pred_check_branch
          %509 = sbr.rel (%p507) target = $region64
        $region63: #{ffn_forward.1} parent=11 // pred_region
          _
        $region64: #{ffn_forward.1} parent=11 // pred_fallthru
          _
        // Predicated region
        $region65: #{ffn_forward.1} parent=11 // pred_check
          %p510 = pneg %p372
        $region66: #{ffn_forward.1} parent=11 // pred_check_branch
          %512 = sbr.rel (%p510) target = $region68
        $region67: #{ffn_forward.1} parent=11 // pred_region
          _
        $region68: #{ffn_forward.1} parent=11 // pred_fallthru
          _
        // Predicated region
        $region69: #{ffn_forward.1} parent=11 // pred_check
          %p513 = pneg %p393
        $region70: #{ffn_forward.1} parent=11 // pred_check_branch
          %515 = sbr.rel (%p513) target = $region72
        $region71: #{ffn_forward.1} parent=11 // pred_region
          _
        $region72: #{ffn_forward.1} parent=11 // pred_fallthru
          _
        // Predicated region
        $region73: #{ffn_forward.1} parent=11 // pred_check
          %p516 = pneg %p414
        $region74: #{ffn_forward.1} parent=11 // pred_check_branch
          %518 = sbr.rel (%p516) target = $region76
        $region75: #{ffn_forward.1} parent=11 // pred_region
          _
        $region76: #{ffn_forward.1} parent=11 // pred_fallthru
          _
        // Predicated region
        $region77: #{ffn_forward.1} parent=11 // pred_check
          %p519 = pneg %p435
        $region78: #{ffn_forward.1} parent=11 // pred_check_branch
          %521 = sbr.rel (%p519) target = $region80
        $region79: #{ffn_forward.1} parent=11 // pred_region
          _
        $region80: #{ffn_forward.1} parent=11 // pred_fallthru
          _
      $region12: #{ffn_forward.1} parent=5 // pred_fallthru
        _
      %p522 = scmp.lt.s32.totalorder %s26, 2
      // Predicated region
      $region81: #{ffn_forward.1} parent=5 // pred_check
        %p523 = pneg %p522
      $region82: #{ffn_forward.1} parent=5 // pred_check_branch
        %525 = sbr.rel (%p523) target = $region84
      $region83: #{ffn_forward.1} parent=5 // pred_region
        // Predicated region
        $region85: #{ffn_forward.1} parent=83 // pred_check
          %p526 = pneg %p67
        $region86: #{ffn_forward.1} parent=83 // pred_check_branch
          %528 = sbr.rel (%p526) target = $region88
        $region87: #{ffn_forward.1} parent=83 // pred_region
          %s529 = smul.u32 32, %s26
          %p530 = scmp.lt.s32.totalorder %s529, 63
          %s531 = scalar_select %p530, %s529, 63
          %s532 = smul.addr %s531, 8
          %s533 = scalar_lea.vmem %s1, %s532
          %s534 = smul.u32 32, %s26
        $region88: #{ffn_forward.1} parent=83 // pred_fallthru
          _
        // Predicated region
        $region89: #{ffn_forward.1} parent=83 // pred_check
          %p535 = pneg %p93
        $region90: #{ffn_forward.1} parent=83 // pred_check_branch
          %537 = sbr.rel (%p535) target = $region92
        $region91: #{ffn_forward.1} parent=83 // pred_region
          %s538 = smul.u32 32, %s26
          %p539 = scmp.lt.s32.totalorder %s538, 63
          %s540 = scalar_select %p539, %s538, 63
          %s541 = smul.addr %s540, 8
          %s542 = scalar_lea.vmem %s2, %s541
          %s543 = smul.u32 32, %s26
        $region92: #{ffn_forward.1} parent=83 // pred_fallthru
          _
      $region84: #{ffn_forward.1} parent=5 // pred_fallthru
        _
      %p544 = scmp.le.s32.totalorder 1, %s26
      %p545 = scmp.lt.s32.totalorder %s26, 3
      %p546 = pnand %p544, %p545
      %p547 = pneg %p546
      // Predicated region
      $region93: #{ffn_forward.1} parent=5 // pred_check
        _
      $region94: #{ffn_forward.1} parent=5 // pred_check_branch
        %549 = sbr.rel (%p546) target = $region96
      $region95: #{ffn_forward.1} parent=5 // pred_region
        %s550 = ssub.s32 %s26, 1
        %p551 = pneg %p47
        %p552 = pneg %p44
        %s553 = smul.u32 32, %s31
        %p554 = scmp.lt.s32.totalorder %s553, 63
        %s555 = scalar_select %p554, %s553, 63
        %s556 = smul.addr %s555, 8
        %s557 = scalar_lea.vmem %s1, %s556
        %p558 = pneg %p73
        %p559 = pneg %p70
        %s560 = smul.u32 32, %s31
        %p561 = scmp.lt.s32.totalorder %s560, 63
        %s562 = scalar_select %p561, %s560, 63
        %s563 = smul.addr %s562, 8
        %s564 = scalar_lea.vmem %s2, %s563
        %p565 = pneg %p99
        %p566 = pneg %p96
        %p567 = pneg %p120
        %p568 = pneg %p117
        %p569 = pneg %p141
        %p570 = pneg %p138
        %p571 = pneg %p162
        %p572 = pneg %p159
        %p573 = pneg %p183
        %p574 = pneg %p180
        %p575 = pneg %p204
        %p576 = pneg %p201
        %p577 = pneg %p225
        %p578 = pneg %p222
        %p579 = pneg %p246
        %p580 = pneg %p243
        %p581 = pneg %p267
        %p582 = pneg %p264
        %p583 = pneg %p288
        %p584 = pneg %p285
        %p585 = pneg %p309
        %p586 = pneg %p306
        %p587 = pneg %p330
        %p588 = pneg %p327
        %p589 = pneg %p351
        %p590 = pneg %p348
        %p591 = pneg %p372
        %p592 = pneg %p369
        %p593 = pneg %p393
        %p594 = pneg %p390
        %p595 = pneg %p414
        %p596 = pneg %p411
        %p597 = pneg %p435
        %p598 = pneg %p432
        %p599 = pneg %p456
        %p600 = pneg %p453
        %s601 = smul.u32 32, %s31
        %p602 = scmp.lt.s32.totalorder %s601, 63
        %s603 = scalar_select %p602, %s601, 63
        %s604 = smul.addr %s603, 8
        %s605 = scalar_lea.vmem %s1, %s604
        %s606 = smul.u32 32, %s31
        %s607 = smul.u32 32, %s31
        %p608 = scmp.lt.s32.totalorder %s607, 63
        %s609 = scalar_select %p608, %s607, 63
        %s610 = smul.addr %s609, 8
        %s611 = scalar_lea.vmem %s2, %s610
        %s612 = smul.u32 32, %s31
        %p614 = scmp.eq.s32.totalorder %s31, 0
        // Predicated region
        $region97: #{ffn_forward.1} parent=95 // pred_check
          %p615 = pneg %p614
        $region98: #{ffn_forward.1} parent=95 // pred_check_branch
          %617 = sbr.rel (%p615) target = $region100
        $region99: #{ffn_forward.1} parent=95 // pred_region
          %vm618 = vcmask 256000
          %619 = vst.msk [vmem:[#allocation2] sm:$0x7] %vm618, 0.0
        $region100: #{ffn_forward.1} parent=95 // pred_fallthru
          _
        %v620 = vld [vmem:[%s611] sm:$0xff]
        %v621 = vld [vmem:[%s611 + $0x8] sm:$0xff]
        %v622 = vld [vmem:[%s611 + $0x10] sm:$0xff]
        %v623 = vld [vmem:[%s611 + $0x18] sm:$0xff]
        %v624 = vld [vmem:[%s611 + $0x20] sm:$0xff]
        %v625 = vld [vmem:[%s611 + $0x28] sm:$0xff]
        %v626 = vld [vmem:[%s611 + $0x30] sm:$0xff]
        %v627 = vld [vmem:[%s611 + $0x38] sm:$0xff]
        %v628 = vld [vmem:[%s611 + $0x40] sm:$0xff]
        %v629 = vld [vmem:[%s611 + $0x48] sm:$0xff]
        %v630 = vld [vmem:[%s611 + $0x50] sm:$0xff]
        %v631 = vld [vmem:[%s611 + $0x58] sm:$0xff]
        %v632 = vld [vmem:[%s611 + $0x60] sm:$0xff]
        %v633 = vld [vmem:[%s611 + $0x68] sm:$0xff]
        %v634 = vld [vmem:[%s611 + $0x70] sm:$0xff]
        %v635 = vld [vmem:[%s611 + $0x78] sm:$0xff]
        %v636 = vld [vmem:[%s611 + $0x80] sm:$0xff]
        %v637 = vld [vmem:[%s611 + $0x88] sm:$0xff]
        %v638 = vld [vmem:[%s611 + $0x90] sm:$0xff]
        %v639 = vld [vmem:[%s611 + $0x98] sm:$0xff]
        %v640 = vld [vmem:[%s611 + $0xa0] sm:$0xff]
        %v641 = vld [vmem:[%s611 + $0xa8] sm:$0xff]
        %v642 = vld [vmem:[%s611 + $0xb0] sm:$0xff]
        %v643 = vld [vmem:[%s611 + $0xb8] sm:$0xff]
        %v644 = vld [vmem:[%s611 + $0xc0] sm:$0xff]
        %v645 = vld [vmem:[%s611 + $0xc8] sm:$0xff]
        %v646 = vld [vmem:[%s611 + $0xd0] sm:$0xff]
        %v647 = vld [vmem:[%s611 + $0xd8] sm:$0xff]
        %v648 = vld [vmem:[%s611 + $0xe0] sm:$0xff]
        %v649 = vld [vmem:[%s611 + $0xe8] sm:$0xff]
        %v650 = vld [vmem:[%s611 + $0xf0] sm:$0xff]
        %v651 = vld [vmem:[%s611 + $0xf8] sm:$0xff]
        %v652 = vlaneseq
        %v653 = vand.u32 %v652, 127
        %v654 = vadd.s32 %v653, 128
        %v655 = vadd.s32 %v653, 256
        %v656 = vadd.s32 %v653, 384
        %657 = vset.pattern.permute.xlu0 0
        %658 = vperm.xlu0 %657, %v620
        %v659 = vpop.permute.xlu0 %658
        %660 = vset.pattern.permute.xlu0 0
        %661 = vperm.xlu0 %660, %v621
        %v662 = vpop.permute.xlu0 %661
        %663 = vset.pattern.permute.xlu0 0
        %664 = vperm.xlu0 %663, %v622
        %v665 = vpop.permute.xlu0 %664
        %666 = vset.pattern.permute.xlu0 0
        %667 = vperm.xlu0 %666, %v623
        %v668 = vpop.permute.xlu0 %667
        %669 = vset.pattern.permute.xlu0 0
        %670 = vperm.xlu0 %669, %v624
        %v671 = vpop.permute.xlu0 %670
        %672 = vset.pattern.permute.xlu0 0
        %673 = vperm.xlu0 %672, %v625
        %v674 = vpop.permute.xlu0 %673
        %675 = vset.pattern.permute.xlu0 0
        %676 = vperm.xlu0 %675, %v626
        %v677 = vpop.permute.xlu0 %676
        %678 = vset.pattern.permute.xlu0 0
        %679 = vperm.xlu0 %678, %v627
        %v680 = vpop.permute.xlu0 %679
        %681 = vset.pattern.permute.xlu0 0
        %682 = vperm.xlu0 %681, %v628
        %v683 = vpop.permute.xlu0 %682
        %684 = vset.pattern.permute.xlu0 0
        %685 = vperm.xlu0 %684, %v629
        %v686 = vpop.permute.xlu0 %685
        %687 = vset.pattern.permute.xlu0 0
        %688 = vperm.xlu0 %687, %v630
        %v689 = vpop.permute.xlu0 %688
        %690 = vset.pattern.permute.xlu0 0
        %691 = vperm.xlu0 %690, %v631
        %v692 = vpop.permute.xlu0 %691
        %693 = vset.pattern.permute.xlu0 0
        %694 = vperm.xlu0 %693, %v632
        %v695 = vpop.permute.xlu0 %694
        %696 = vset.pattern.permute.xlu0 0
        %697 = vperm.xlu0 %696, %v633
        %v698 = vpop.permute.xlu0 %697
        %699 = vset.pattern.permute.xlu0 0
        %700 = vperm.xlu0 %699, %v634
        %v701 = vpop.permute.xlu0 %700
        %702 = vset.pattern.permute.xlu0 0
        %703 = vperm.xlu0 %702, %v635
        %v704 = vpop.permute.xlu0 %703
        %705 = vset.pattern.permute.xlu0 0
        %706 = vperm.xlu0 %705, %v636
        %v707 = vpop.permute.xlu0 %706
        %708 = vset.pattern.permute.xlu0 0
        %709 = vperm.xlu0 %708, %v637
        %v710 = vpop.permute.xlu0 %709
        %711 = vset.pattern.permute.xlu0 0
        %712 = vperm.xlu0 %711, %v638
        %v713 = vpop.permute.xlu0 %712
        %714 = vset.pattern.permute.xlu0 0
        %715 = vperm.xlu0 %714, %v639
        %v716 = vpop.permute.xlu0 %715
        %717 = vset.pattern.permute.xlu0 0
        %718 = vperm.xlu0 %717, %v640
        %v719 = vpop.permute.xlu0 %718
        %720 = vset.pattern.permute.xlu0 0
        %721 = vperm.xlu0 %720, %v641
        %v722 = vpop.permute.xlu0 %721
        %723 = vset.pattern.permute.xlu0 0
        %724 = vperm.xlu0 %723, %v642
        %v725 = vpop.permute.xlu0 %724
        %726 = vset.pattern.permute.xlu0 0
        %727 = vperm.xlu0 %726, %v643
        %v728 = vpop.permute.xlu0 %727
        %729 = vset.pattern.permute.xlu0 0
        %730 = vperm.xlu0 %729, %v644
        %v731 = vpop.permute.xlu0 %730
        %732 = vset.pattern.permute.xlu0 0
        %733 = vperm.xlu0 %732, %v645
        %v734 = vpop.permute.xlu0 %733
        %735 = vset.pattern.permute.xlu0 0
        %736 = vperm.xlu0 %735, %v646
        %v737 = vpop.permute.xlu0 %736
        %738 = vset.pattern.permute.xlu0 0
        %739 = vperm.xlu0 %738, %v647
        %v740 = vpop.permute.xlu0 %739
        %741 = vset.pattern.permute.xlu0 0
        %742 = vperm.xlu0 %741, %v648
        %v743 = vpop.permute.xlu0 %742
        %744 = vset.pattern.permute.xlu0 0
        %745 = vperm.xlu0 %744, %v649
        %v746 = vpop.permute.xlu0 %745
        %747 = vset.pattern.permute.xlu0 0
        %748 = vperm.xlu0 %747, %v650
        %v749 = vpop.permute.xlu0 %748
        %750 = vset.pattern.permute.xlu0 0
        %751 = vperm.xlu0 %750, %v651
        %v752 = vpop.permute.xlu0 %751
        %vm753 = vcmp.eq.s32.totalorder %v659, %v653
        %vm754 = vcmp.eq.s32.totalorder %v659, %v654
        %vm755 = vcmp.eq.s32.totalorder %v659, %v655
        %vm756 = vcmp.eq.s32.totalorder %v659, %v656
        %vm757 = vcmp.eq.s32.totalorder %v662, %v653
        %vm758 = vcmp.eq.s32.totalorder %v662, %v654
        %vm759 = vcmp.eq.s32.totalorder %v662, %v655
        %vm760 = vcmp.eq.s32.totalorder %v662, %v656
        %vm761 = vcmp.eq.s32.totalorder %v665, %v653
        %vm762 = vcmp.eq.s32.totalorder %v665, %v654
        %vm763 = vcmp.eq.s32.totalorder %v665, %v655
        %vm764 = vcmp.eq.s32.totalorder %v665, %v656
        %vm765 = vcmp.eq.s32.totalorder %v668, %v653
        %vm766 = vcmp.eq.s32.totalorder %v668, %v654
        %vm767 = vcmp.eq.s32.totalorder %v668, %v655
        %vm768 = vcmp.eq.s32.totalorder %v668, %v656
        %vm769 = vcmp.eq.s32.totalorder %v671, %v653
        %vm770 = vcmp.eq.s32.totalorder %v671, %v654
        %vm771 = vcmp.eq.s32.totalorder %v671, %v655
        %vm772 = vcmp.eq.s32.totalorder %v671, %v656
        %vm773 = vcmp.eq.s32.totalorder %v674, %v653
        %vm774 = vcmp.eq.s32.totalorder %v674, %v654
        %vm775 = vcmp.eq.s32.totalorder %v674, %v655
        %vm776 = vcmp.eq.s32.totalorder %v674, %v656
        %vm777 = vcmp.eq.s32.totalorder %v677, %v653
        %vm778 = vcmp.eq.s32.totalorder %v677, %v654
        %vm779 = vcmp.eq.s32.totalorder %v677, %v655
        %vm780 = vcmp.eq.s32.totalorder %v677, %v656
        %vm781 = vcmp.eq.s32.totalorder %v680, %v653
        %vm782 = vcmp.eq.s32.totalorder %v680, %v654
        %vm783 = vcmp.eq.s32.totalorder %v680, %v655
        %vm784 = vcmp.eq.s32.totalorder %v680, %v656
        %vm785 = vcmp.eq.s32.totalorder %v683, %v653
        %vm786 = vcmp.eq.s32.totalorder %v683, %v654
        %vm787 = vcmp.eq.s32.totalorder %v683, %v655
        %vm788 = vcmp.eq.s32.totalorder %v683, %v656
        %vm789 = vcmp.eq.s32.totalorder %v686, %v653
        %vm790 = vcmp.eq.s32.totalorder %v686, %v654
        %vm791 = vcmp.eq.s32.totalorder %v686, %v655
        %vm792 = vcmp.eq.s32.totalorder %v686, %v656
        %vm793 = vcmp.eq.s32.totalorder %v689, %v653
        %vm794 = vcmp.eq.s32.totalorder %v689, %v654
        %vm795 = vcmp.eq.s32.totalorder %v689, %v655
        %vm796 = vcmp.eq.s32.totalorder %v689, %v656
        %vm797 = vcmp.eq.s32.totalorder %v692, %v653
        %vm798 = vcmp.eq.s32.totalorder %v692, %v654
        %vm799 = vcmp.eq.s32.totalorder %v692, %v655
        %vm800 = vcmp.eq.s32.totalorder %v692, %v656
        %vm801 = vcmp.eq.s32.totalorder %v695, %v653
        %vm802 = vcmp.eq.s32.totalorder %v695, %v654
        %vm803 = vcmp.eq.s32.totalorder %v695, %v655
        %vm804 = vcmp.eq.s32.totalorder %v695, %v656
        %vm805 = vcmp.eq.s32.totalorder %v698, %v653
        %vm806 = vcmp.eq.s32.totalorder %v698, %v654
        %vm807 = vcmp.eq.s32.totalorder %v698, %v655
        %vm808 = vcmp.eq.s32.totalorder %v698, %v656
        %vm809 = vcmp.eq.s32.totalorder %v701, %v653
        %vm810 = vcmp.eq.s32.totalorder %v701, %v654
        %vm811 = vcmp.eq.s32.totalorder %v701, %v655
        %vm812 = vcmp.eq.s32.totalorder %v701, %v656
        %vm813 = vcmp.eq.s32.totalorder %v704, %v653
        %vm814 = vcmp.eq.s32.totalorder %v704, %v654
        %vm815 = vcmp.eq.s32.totalorder %v704, %v655
        %vm816 = vcmp.eq.s32.totalorder %v704, %v656
        %vm817 = vcmp.eq.s32.totalorder %v707, %v653
        %vm818 = vcmp.eq.s32.totalorder %v707, %v654
        %vm819 = vcmp.eq.s32.totalorder %v707, %v655
        %vm820 = vcmp.eq.s32.totalorder %v707, %v656
        %vm821 = vcmp.eq.s32.totalorder %v710, %v653
        %vm822 = vcmp.eq.s32.totalorder %v710, %v654
        %vm823 = vcmp.eq.s32.totalorder %v710, %v655
        %vm824 = vcmp.eq.s32.totalorder %v710, %v656
        %vm825 = vcmp.eq.s32.totalorder %v713, %v653
        %vm826 = vcmp.eq.s32.totalorder %v713, %v654
        %vm827 = vcmp.eq.s32.totalorder %v713, %v655
        %vm828 = vcmp.eq.s32.totalorder %v713, %v656
        %vm829 = vcmp.eq.s32.totalorder %v716, %v653
        %vm830 = vcmp.eq.s32.totalorder %v716, %v654
        %vm831 = vcmp.eq.s32.totalorder %v716, %v655
        %vm832 = vcmp.eq.s32.totalorder %v716, %v656
        %vm833 = vcmp.eq.s32.totalorder %v719, %v653
        %vm834 = vcmp.eq.s32.totalorder %v719, %v654
        %vm835 = vcmp.eq.s32.totalorder %v719, %v655
        %vm836 = vcmp.eq.s32.totalorder %v719, %v656
        %vm837 = vcmp.eq.s32.totalorder %v722, %v653
        %vm838 = vcmp.eq.s32.totalorder %v722, %v654
        %vm839 = vcmp.eq.s32.totalorder %v722, %v655
        %vm840 = vcmp.eq.s32.totalorder %v722, %v656
        %vm841 = vcmp.eq.s32.totalorder %v725, %v653
        %vm842 = vcmp.eq.s32.totalorder %v725, %v654
        %vm843 = vcmp.eq.s32.totalorder %v725, %v655
        %vm844 = vcmp.eq.s32.totalorder %v725, %v656
        %vm845 = vcmp.eq.s32.totalorder %v728, %v653
        %vm846 = vcmp.eq.s32.totalorder %v728, %v654
        %vm847 = vcmp.eq.s32.totalorder %v728, %v655
        %vm848 = vcmp.eq.s32.totalorder %v728, %v656
        %vm849 = vcmp.eq.s32.totalorder %v731, %v653
        %vm850 = vcmp.eq.s32.totalorder %v731, %v654
        %vm851 = vcmp.eq.s32.totalorder %v731, %v655
        %vm852 = vcmp.eq.s32.totalorder %v731, %v656
        %vm853 = vcmp.eq.s32.totalorder %v734, %v653
        %vm854 = vcmp.eq.s32.totalorder %v734, %v654
        %vm855 = vcmp.eq.s32.totalorder %v734, %v655
        %vm856 = vcmp.eq.s32.totalorder %v734, %v656
        %vm857 = vcmp.eq.s32.totalorder %v737, %v653
        %vm858 = vcmp.eq.s32.totalorder %v737, %v654
        %vm859 = vcmp.eq.s32.totalorder %v737, %v655
        %vm860 = vcmp.eq.s32.totalorder %v737, %v656
        %vm861 = vcmp.eq.s32.totalorder %v740, %v653
        %vm862 = vcmp.eq.s32.totalorder %v740, %v654
        %vm863 = vcmp.eq.s32.totalorder %v740, %v655
        %vm864 = vcmp.eq.s32.totalorder %v740, %v656
        %vm865 = vcmp.eq.s32.totalorder %v743, %v653
        %vm866 = vcmp.eq.s32.totalorder %v743, %v654
        %vm867 = vcmp.eq.s32.totalorder %v743, %v655
        %vm868 = vcmp.eq.s32.totalorder %v743, %v656
        %vm869 = vcmp.eq.s32.totalorder %v746, %v653
        %vm870 = vcmp.eq.s32.totalorder %v746, %v654
        %vm871 = vcmp.eq.s32.totalorder %v746, %v655
        %vm872 = vcmp.eq.s32.totalorder %v746, %v656
        %vm873 = vcmp.eq.s32.totalorder %v749, %v653
        %vm874 = vcmp.eq.s32.totalorder %v749, %v654
        %vm875 = vcmp.eq.s32.totalorder %v749, %v655
        %vm876 = vcmp.eq.s32.totalorder %v749, %v656
        %vm877 = vcmp.eq.s32.totalorder %v752, %v653
        %vm878 = vcmp.eq.s32.totalorder %v752, %v654
        %vm879 = vcmp.eq.s32.totalorder %v752, %v655
        %vm880 = vcmp.eq.s32.totalorder %v752, %v656
        %v881 = vsel %vm753, 1, 0
        %v882 = vsel %vm754, 1, 0
        %v883 = vsel %vm755, 1, 0
        %v884 = vsel %vm756, 1, 0
        %v885 = vsel %vm757, 1, 0
        %v886 = vsel %vm758, 1, 0
        %v887 = vsel %vm759, 1, 0
        %v888 = vsel %vm760, 1, 0
        %v889 = vsel %vm761, 1, 0
        %v890 = vsel %vm762, 1, 0
        %v891 = vsel %vm763, 1, 0
        %v892 = vsel %vm764, 1, 0
        %v893 = vsel %vm765, 1, 0
        %v894 = vsel %vm766, 1, 0
        %v895 = vsel %vm767, 1, 0
        %v896 = vsel %vm768, 1, 0
        %v897 = vsel %vm769, 1, 0
        %v898 = vsel %vm770, 1, 0
        %v899 = vsel %vm771, 1, 0
        %v900 = vsel %vm772, 1, 0
        %v901 = vsel %vm773, 1, 0
        %v902 = vsel %vm774, 1, 0
        %v903 = vsel %vm775, 1, 0
        %v904 = vsel %vm776, 1, 0
        %v905 = vsel %vm777, 1, 0
        %v906 = vsel %vm778, 1, 0
        %v907 = vsel %vm779, 1, 0
        %v908 = vsel %vm780, 1, 0
        %v909 = vsel %vm781, 1, 0
        %v910 = vsel %vm782, 1, 0
        %v911 = vsel %vm783, 1, 0
        %v912 = vsel %vm784, 1, 0
        %v913 = vsel %vm785, 1, 0
        %v914 = vsel %vm786, 1, 0
        %v915 = vsel %vm787, 1, 0
        %v916 = vsel %vm788, 1, 0
        %v917 = vsel %vm789, 1, 0
        %v918 = vsel %vm790, 1, 0
        %v919 = vsel %vm791, 1, 0
        %v920 = vsel %vm792, 1, 0
        %v921 = vsel %vm793, 1, 0
        %v922 = vsel %vm794, 1, 0
        %v923 = vsel %vm795, 1, 0
        %v924 = vsel %vm796, 1, 0
        %v925 = vsel %vm797, 1, 0
        %v926 = vsel %vm798, 1, 0
        %v927 = vsel %vm799, 1, 0
        %v928 = vsel %vm800, 1, 0
        %v929 = vsel %vm801, 1, 0
        %v930 = vsel %vm802, 1, 0
        %v931 = vsel %vm803, 1, 0
        %v932 = vsel %vm804, 1, 0
        %v933 = vsel %vm805, 1, 0
        %v934 = vsel %vm806, 1, 0
        %v935 = vsel %vm807, 1, 0
        %v936 = vsel %vm808, 1, 0
        %v937 = vsel %vm809, 1, 0
        %v938 = vsel %vm810, 1, 0
        %v939 = vsel %vm811, 1, 0
        %v940 = vsel %vm812, 1, 0
        %v941 = vsel %vm813, 1, 0
        %v942 = vsel %vm814, 1, 0
        %v943 = vsel %vm815, 1, 0
        %v944 = vsel %vm816, 1, 0
        %v945 = vsel %vm817, 1, 0
        %v946 = vsel %vm818, 1, 0
        %v947 = vsel %vm819, 1, 0
        %v948 = vsel %vm820, 1, 0
        %v949 = vsel %vm821, 1, 0
        %v950 = vsel %vm822, 1, 0
        %v951 = vsel %vm823, 1, 0
        %v952 = vsel %vm824, 1, 0
        %v953 = vsel %vm825, 1, 0
        %v954 = vsel %vm826, 1, 0
        %v955 = vsel %vm827, 1, 0
        %v956 = vsel %vm828, 1, 0
        %v957 = vsel %vm829, 1, 0
        %v958 = vsel %vm830, 1, 0
        %v959 = vsel %vm831, 1, 0
        %v960 = vsel %vm832, 1, 0
        %v961 = vsel %vm833, 1, 0
        %v962 = vsel %vm834, 1, 0
        %v963 = vsel %vm835, 1, 0
        %v964 = vsel %vm836, 1, 0
        %v965 = vsel %vm837, 1, 0
        %v966 = vsel %vm838, 1, 0
        %v967 = vsel %vm839, 1, 0
        %v968 = vsel %vm840, 1, 0
        %v969 = vsel %vm841, 1, 0
        %v970 = vsel %vm842, 1, 0
        %v971 = vsel %vm843, 1, 0
        %v972 = vsel %vm844, 1, 0
        %v973 = vsel %vm845, 1, 0
        %v974 = vsel %vm846, 1, 0
        %v975 = vsel %vm847, 1, 0
        %v976 = vsel %vm848, 1, 0
        %v977 = vsel %vm849, 1, 0
        %v978 = vsel %vm850, 1, 0
        %v979 = vsel %vm851, 1, 0
        %v980 = vsel %vm852, 1, 0
        %v981 = vsel %vm853, 1, 0
        %v982 = vsel %vm854, 1, 0
        %v983 = vsel %vm855, 1, 0
        %v984 = vsel %vm856, 1, 0
        %v985 = vsel %vm857, 1, 0
        %v986 = vsel %vm858, 1, 0
        %v987 = vsel %vm859, 1, 0
        %v988 = vsel %vm860, 1, 0
        %v989 = vsel %vm861, 1, 0
        %v990 = vsel %vm862, 1, 0
        %v991 = vsel %vm863, 1, 0
        %v992 = vsel %vm864, 1, 0
        %v993 = vsel %vm865, 1, 0
        %v994 = vsel %vm866, 1, 0
        %v995 = vsel %vm867, 1, 0
        %v996 = vsel %vm868, 1, 0
        %v997 = vsel %vm869, 1, 0
        %v998 = vsel %vm870, 1, 0
        %v999 = vsel %vm871, 1, 0
        %v1000 = vsel %vm872, 1, 0
        %v1001 = vsel %vm873, 1, 0
        %v1002 = vsel %vm874, 1, 0
        %v1003 = vsel %vm875, 1, 0
        %v1004 = vsel %vm876, 1, 0
        %v1005 = vsel %vm877, 1, 0
        %v1006 = vsel %vm878, 1, 0
        %v1007 = vsel %vm879, 1, 0
        %v1008 = vsel %vm880, 1, 0
        %v1009 = vcvt.s32.f32 %v881
        %v1010 = vcvt.s32.f32 %v882
        %v1011 = vcvt.s32.f32 %v883
        %v1012 = vcvt.s32.f32 %v884
        %v1013 = vcvt.s32.f32 %v885
        %v1014 = vcvt.s32.f32 %v886
        %v1015 = vcvt.s32.f32 %v887
        %v1016 = vcvt.s32.f32 %v888
        %v1017 = vcvt.s32.f32 %v889
        %v1018 = vcvt.s32.f32 %v890
        %v1019 = vcvt.s32.f32 %v891
        %v1020 = vcvt.s32.f32 %v892
        %v1021 = vcvt.s32.f32 %v893
        %v1022 = vcvt.s32.f32 %v894
        %v1023 = vcvt.s32.f32 %v895
        %v1024 = vcvt.s32.f32 %v896
        %v1025 = vcvt.s32.f32 %v897
        %v1026 = vcvt.s32.f32 %v898
        %v1027 = vcvt.s32.f32 %v899
        %v1028 = vcvt.s32.f32 %v900
        %v1029 = vcvt.s32.f32 %v901
        %v1030 = vcvt.s32.f32 %v902
        %v1031 = vcvt.s32.f32 %v903
        %v1032 = vcvt.s32.f32 %v904
        %v1033 = vcvt.s32.f32 %v905
        %v1034 = vcvt.s32.f32 %v906
        %v1035 = vcvt.s32.f32 %v907
        %v1036 = vcvt.s32.f32 %v908
        %v1037 = vcvt.s32.f32 %v909
        %v1038 = vcvt.s32.f32 %v910
        %v1039 = vcvt.s32.f32 %v911
        %v1040 = vcvt.s32.f32 %v912
        %v1041 = vcvt.s32.f32 %v913
        %v1042 = vcvt.s32.f32 %v914
        %v1043 = vcvt.s32.f32 %v915
        %v1044 = vcvt.s32.f32 %v916
        %v1045 = vcvt.s32.f32 %v917
        %v1046 = vcvt.s32.f32 %v918
        %v1047 = vcvt.s32.f32 %v919
        %v1048 = vcvt.s32.f32 %v920
        %v1049 = vcvt.s32.f32 %v921
        %v1050 = vcvt.s32.f32 %v922
        %v1051 = vcvt.s32.f32 %v923
        %v1052 = vcvt.s32.f32 %v924
        %v1053 = vcvt.s32.f32 %v925
        %v1054 = vcvt.s32.f32 %v926
        %v1055 = vcvt.s32.f32 %v927
        %v1056 = vcvt.s32.f32 %v928
        %v1057 = vcvt.s32.f32 %v929
        %v1058 = vcvt.s32.f32 %v930
        %v1059 = vcvt.s32.f32 %v931
        %v1060 = vcvt.s32.f32 %v932
        %v1061 = vcvt.s32.f32 %v933
        %v1062 = vcvt.s32.f32 %v934
        %v1063 = vcvt.s32.f32 %v935
        %v1064 = vcvt.s32.f32 %v936
        %v1065 = vcvt.s32.f32 %v937
        %v1066 = vcvt.s32.f32 %v938
        %v1067 = vcvt.s32.f32 %v939
        %v1068 = vcvt.s32.f32 %v940
        %v1069 = vcvt.s32.f32 %v941
        %v1070 = vcvt.s32.f32 %v942
        %v1071 = vcvt.s32.f32 %v943
        %v1072 = vcvt.s32.f32 %v944
        %v1073 = vcvt.s32.f32 %v945
        %v1074 = vcvt.s32.f32 %v946
        %v1075 = vcvt.s32.f32 %v947
        %v1076 = vcvt.s32.f32 %v948
        %v1077 = vcvt.s32.f32 %v949
        %v1078 = vcvt.s32.f32 %v950
        %v1079 = vcvt.s32.f32 %v951
        %v1080 = vcvt.s32.f32 %v952
        %v1081 = vcvt.s32.f32 %v953
        %v1082 = vcvt.s32.f32 %v954
        %v1083 = vcvt.s32.f32 %v955
        %v1084 = vcvt.s32.f32 %v956
        %v1085 = vcvt.s32.f32 %v957
        %v1086 = vcvt.s32.f32 %v958
        %v1087 = vcvt.s32.f32 %v959
        %v1088 = vcvt.s32.f32 %v960
        %v1089 = vcvt.s32.f32 %v961
        %v1090 = vcvt.s32.f32 %v962
        %v1091 = vcvt.s32.f32 %v963
        %v1092 = vcvt.s32.f32 %v964
        %v1093 = vcvt.s32.f32 %v965
        %v1094 = vcvt.s32.f32 %v966
        %v1095 = vcvt.s32.f32 %v967
        %v1096 = vcvt.s32.f32 %v968
        %v1097 = vcvt.s32.f32 %v969
        %v1098 = vcvt.s32.f32 %v970
        %v1099 = vcvt.s32.f32 %v971
        %v1100 = vcvt.s32.f32 %v972
        %v1101 = vcvt.s32.f32 %v973
        %v1102 = vcvt.s32.f32 %v974
        %v1103 = vcvt.s32.f32 %v975
        %v1104 = vcvt.s32.f32 %v976
        %v1105 = vcvt.s32.f32 %v977
        %v1106 = vcvt.s32.f32 %v978
        %v1107 = vcvt.s32.f32 %v979
        %v1108 = vcvt.s32.f32 %v980
        %v1109 = vcvt.s32.f32 %v981
        %v1110 = vcvt.s32.f32 %v982
        %v1111 = vcvt.s32.f32 %v983
        %v1112 = vcvt.s32.f32 %v984
        %v1113 = vcvt.s32.f32 %v985
        %v1114 = vcvt.s32.f32 %v986
        %v1115 = vcvt.s32.f32 %v987
        %v1116 = vcvt.s32.f32 %v988
        %v1117 = vcvt.s32.f32 %v989
        %v1118 = vcvt.s32.f32 %v990
        %v1119 = vcvt.s32.f32 %v991
        %v1120 = vcvt.s32.f32 %v992
        %v1121 = vcvt.s32.f32 %v993
        %v1122 = vcvt.s32.f32 %v994
        %v1123 = vcvt.s32.f32 %v995
        %v1124 = vcvt.s32.f32 %v996
        %v1125 = vcvt.s32.f32 %v997
        %v1126 = vcvt.s32.f32 %v998
        %v1127 = vcvt.s32.f32 %v999
        %v1128 = vcvt.s32.f32 %v1000
        %v1129 = vcvt.s32.f32 %v1001
        %v1130 = vcvt.s32.f32 %v1002
        %v1131 = vcvt.s32.f32 %v1003
        %v1132 = vcvt.s32.f32 %v1004
        %v1133 = vcvt.s32.f32 %v1005
        %v1134 = vcvt.s32.f32 %v1006
        %v1135 = vcvt.s32.f32 %v1007
        %v1136 = vcvt.s32.f32 %v1008
        %1137 = vset.pattern.permute.xlu0 1
        %1138 = vperm.xlu0 %1137, %v620
        %v1139 = vpop.permute.xlu0 %1138
        %1140 = vset.pattern.permute.xlu0 1
        %1141 = vperm.xlu0 %1140, %v621
        %v1142 = vpop.permute.xlu0 %1141
        %1143 = vset.pattern.permute.xlu0 1
        %1144 = vperm.xlu0 %1143, %v622
        %v1145 = vpop.permute.xlu0 %1144
        %1146 = vset.pattern.permute.xlu0 1
        %1147 = vperm.xlu0 %1146, %v623
        %v1148 = vpop.permute.xlu0 %1147
        %1149 = vset.pattern.permute.xlu0 1
        %1150 = vperm.xlu0 %1149, %v624
        %v1151 = vpop.permute.xlu0 %1150
        %1152 = vset.pattern.permute.xlu0 1
        %1153 = vperm.xlu0 %1152, %v625
        %v1154 = vpop.permute.xlu0 %1153
        %1155 = vset.pattern.permute.xlu0 1
        %1156 = vperm.xlu0 %1155, %v626
        %v1157 = vpop.permute.xlu0 %1156
        %1158 = vset.pattern.permute.xlu0 1
        %1159 = vperm.xlu0 %1158, %v627
        %v1160 = vpop.permute.xlu0 %1159
        %1161 = vset.pattern.permute.xlu0 1
        %1162 = vperm.xlu0 %1161, %v628
        %v1163 = vpop.permute.xlu0 %1162
        %1164 = vset.pattern.permute.xlu0 1
        %1165 = vperm.xlu0 %1164, %v629
        %v1166 = vpop.permute.xlu0 %1165
        %1167 = vset.pattern.permute.xlu0 1
        %1168 = vperm.xlu0 %1167, %v630
        %v1169 = vpop.permute.xlu0 %1168
        %1170 = vset.pattern.permute.xlu0 1
        %1171 = vperm.xlu0 %1170, %v631
        %v1172 = vpop.permute.xlu0 %1171
        %1173 = vset.pattern.permute.xlu0 1
        %1174 = vperm.xlu0 %1173, %v632
        %v1175 = vpop.permute.xlu0 %1174
        %1176 = vset.pattern.permute.xlu0 1
        %1177 = vperm.xlu0 %1176, %v633
        %v1178 = vpop.permute.xlu0 %1177
        %1179 = vset.pattern.permute.xlu0 1
        %1180 = vperm.xlu0 %1179, %v634
        %v1181 = vpop.permute.xlu0 %1180
        %1182 = vset.pattern.permute.xlu0 1
        %1183 = vperm.xlu0 %1182, %v635
        %v1184 = vpop.permute.xlu0 %1183
        %1185 = vset.pattern.permute.xlu0 1
        %1186 = vperm.xlu0 %1185, %v636
        %v1187 = vpop.permute.xlu0 %1186
        %1188 = vset.pattern.permute.xlu0 1
        %1189 = vperm.xlu0 %1188, %v637
        %v1190 = vpop.permute.xlu0 %1189
        %1191 = vset.pattern.permute.xlu0 1
        %1192 = vperm.xlu0 %1191, %v638
        %v1193 = vpop.permute.xlu0 %1192
        %1194 = vset.pattern.permute.xlu0 1
        %1195 = vperm.xlu0 %1194, %v639
        %v1196 = vpop.permute.xlu0 %1195
        %1197 = vset.pattern.permute.xlu0 1
        %1198 = vperm.xlu0 %1197, %v640
        %v1199 = vpop.permute.xlu0 %1198
        %1200 = vset.pattern.permute.xlu0 1
        %1201 = vperm.xlu0 %1200, %v641
        %v1202 = vpop.permute.xlu0 %1201
        %1203 = vset.pattern.permute.xlu0 1
        %1204 = vperm.xlu0 %1203, %v642
        %v1205 = vpop.permute.xlu0 %1204
        %1206 = vset.pattern.permute.xlu0 1
        %1207 = vperm.xlu0 %1206, %v643
        %v1208 = vpop.permute.xlu0 %1207
        %1209 = vset.pattern.permute.xlu0 1
        %1210 = vperm.xlu0 %1209, %v644
        %v1211 = vpop.permute.xlu0 %1210
        %1212 = vset.pattern.permute.xlu0 1
        %1213 = vperm.xlu0 %1212, %v645
        %v1214 = vpop.permute.xlu0 %1213
        %1215 = vset.pattern.permute.xlu0 1
        %1216 = vperm.xlu0 %1215, %v646
        %v1217 = vpop.permute.xlu0 %1216
        %1218 = vset.pattern.permute.xlu0 1
        %1219 = vperm.xlu0 %1218, %v647
        %v1220 = vpop.permute.xlu0 %1219
        %1221 = vset.pattern.permute.xlu0 1
        %1222 = vperm.xlu0 %1221, %v648
        %v1223 = vpop.permute.xlu0 %1222
        %1224 = vset.pattern.permute.xlu0 1
        %1225 = vperm.xlu0 %1224, %v649
        %v1226 = vpop.permute.xlu0 %1225
        %1227 = vset.pattern.permute.xlu0 1
        %1228 = vperm.xlu0 %1227, %v650
        %v1229 = vpop.permute.xlu0 %1228
        %1230 = vset.pattern.permute.xlu0 1
        %1231 = vperm.xlu0 %1230, %v651
        %v1232 = vpop.permute.xlu0 %1231
        %vm1233 = vcmp.eq.s32.totalorder %v1139, %v653
        %vm1234 = vcmp.eq.s32.totalorder %v1139, %v654
        %vm1235 = vcmp.eq.s32.totalorder %v1139, %v655
        %vm1236 = vcmp.eq.s32.totalorder %v1139, %v656
        %vm1237 = vcmp.eq.s32.totalorder %v1142, %v653
        %vm1238 = vcmp.eq.s32.totalorder %v1142, %v654
        %vm1239 = vcmp.eq.s32.totalorder %v1142, %v655
        %vm1240 = vcmp.eq.s32.totalorder %v1142, %v656
        %vm1241 = vcmp.eq.s32.totalorder %v1145, %v653
        %vm1242 = vcmp.eq.s32.totalorder %v1145, %v654
        %vm1243 = vcmp.eq.s32.totalorder %v1145, %v655
        %vm1244 = vcmp.eq.s32.totalorder %v1145, %v656
        %vm1245 = vcmp.eq.s32.totalorder %v1148, %v653
        %vm1246 = vcmp.eq.s32.totalorder %v1148, %v654
        %vm1247 = vcmp.eq.s32.totalorder %v1148, %v655
        %vm1248 = vcmp.eq.s32.totalorder %v1148, %v656
        %vm1249 = vcmp.eq.s32.totalorder %v1151, %v653
        %vm1250 = vcmp.eq.s32.totalorder %v1151, %v654
        %vm1251 = vcmp.eq.s32.totalorder %v1151, %v655
        %vm1252 = vcmp.eq.s32.totalorder %v1151, %v656
        %vm1253 = vcmp.eq.s32.totalorder %v1154, %v653
        %vm1254 = vcmp.eq.s32.totalorder %v1154, %v654
        %vm1255 = vcmp.eq.s32.totalorder %v1154, %v655
        %vm1256 = vcmp.eq.s32.totalorder %v1154, %v656
        %vm1257 = vcmp.eq.s32.totalorder %v1157, %v653
        %vm1258 = vcmp.eq.s32.totalorder %v1157, %v654
        %vm1259 = vcmp.eq.s32.totalorder %v1157, %v655
        %vm1260 = vcmp.eq.s32.totalorder %v1157, %v656
        %vm1261 = vcmp.eq.s32.totalorder %v1160, %v653
        %vm1262 = vcmp.eq.s32.totalorder %v1160, %v654
        %vm1263 = vcmp.eq.s32.totalorder %v1160, %v655
        %vm1264 = vcmp.eq.s32.totalorder %v1160, %v656
        %vm1265 = vcmp.eq.s32.totalorder %v1163, %v653
        %vm1266 = vcmp.eq.s32.totalorder %v1163, %v654
        %vm1267 = vcmp.eq.s32.totalorder %v1163, %v655
        %vm1268 = vcmp.eq.s32.totalorder %v1163, %v656
        %vm1269 = vcmp.eq.s32.totalorder %v1166, %v653
        %vm1270 = vcmp.eq.s32.totalorder %v1166, %v654
        %vm1271 = vcmp.eq.s32.totalorder %v1166, %v655
        %vm1272 = vcmp.eq.s32.totalorder %v1166, %v656
        %vm1273 = vcmp.eq.s32.totalorder %v1169, %v653
        %vm1274 = vcmp.eq.s32.totalorder %v1169, %v654
        %vm1275 = vcmp.eq.s32.totalorder %v1169, %v655
        %vm1276 = vcmp.eq.s32.totalorder %v1169, %v656
        %vm1277 = vcmp.eq.s32.totalorder %v1172, %v653
        %vm1278 = vcmp.eq.s32.totalorder %v1172, %v654
        %vm1279 = vcmp.eq.s32.totalorder %v1172, %v655
        %vm1280 = vcmp.eq.s32.totalorder %v1172, %v656
        %vm1281 = vcmp.eq.s32.totalorder %v1175, %v653
        %vm1282 = vcmp.eq.s32.totalorder %v1175, %v654
        %vm1283 = vcmp.eq.s32.totalorder %v1175, %v655
        %vm1284 = vcmp.eq.s32.totalorder %v1175, %v656
        %vm1285 = vcmp.eq.s32.totalorder %v1178, %v653
        %vm1286 = vcmp.eq.s32.totalorder %v1178, %v654
        %vm1287 = vcmp.eq.s32.totalorder %v1178, %v655
        %vm1288 = vcmp.eq.s32.totalorder %v1178, %v656
        %vm1289 = vcmp.eq.s32.totalorder %v1181, %v653
        %vm1290 = vcmp.eq.s32.totalorder %v1181, %v654
        %vm1291 = vcmp.eq.s32.totalorder %v1181, %v655
        %vm1292 = vcmp.eq.s32.totalorder %v1181, %v656
        %vm1293 = vcmp.eq.s32.totalorder %v1184, %v653
        %vm1294 = vcmp.eq.s32.totalorder %v1184, %v654
        %vm1295 = vcmp.eq.s32.totalorder %v1184, %v655
        %vm1296 = vcmp.eq.s32.totalorder %v1184, %v656
        %vm1297 = vcmp.eq.s32.totalorder %v1187, %v653
        %vm1298 = vcmp.eq.s32.totalorder %v1187, %v654
        %vm1299 = vcmp.eq.s32.totalorder %v1187, %v655
        %vm1300 = vcmp.eq.s32.totalorder %v1187, %v656
        %vm1301 = vcmp.eq.s32.totalorder %v1190, %v653
        %vm1302 = vcmp.eq.s32.totalorder %v1190, %v654
        %vm1303 = vcmp.eq.s32.totalorder %v1190, %v655
        %vm1304 = vcmp.eq.s32.totalorder %v1190, %v656
        %vm1305 = vcmp.eq.s32.totalorder %v1193, %v653
        %vm1306 = vcmp.eq.s32.totalorder %v1193, %v654
        %vm1307 = vcmp.eq.s32.totalorder %v1193, %v655
        %vm1308 = vcmp.eq.s32.totalorder %v1193, %v656
        %vm1309 = vcmp.eq.s32.totalorder %v1196, %v653
        %vm1310 = vcmp.eq.s32.totalorder %v1196, %v654
        %vm1311 = vcmp.eq.s32.totalorder %v1196, %v655
        %vm1312 = vcmp.eq.s32.totalorder %v1196, %v656
        %vm1313 = vcmp.eq.s32.totalorder %v1199, %v653
        %vm1314 = vcmp.eq.s32.totalorder %v1199, %v654
        %vm1315 = vcmp.eq.s32.totalorder %v1199, %v655
        %vm1316 = vcmp.eq.s32.totalorder %v1199, %v656
        %vm1317 = vcmp.eq.s32.totalorder %v1202, %v653
        %vm1318 = vcmp.eq.s32.totalorder %v1202, %v654
        %vm1319 = vcmp.eq.s32.totalorder %v1202, %v655
        %vm1320 = vcmp.eq.s32.totalorder %v1202, %v656
        %vm1321 = vcmp.eq.s32.totalorder %v1205, %v653
        %vm1322 = vcmp.eq.s32.totalorder %v1205, %v654
        %vm1323 = vcmp.eq.s32.totalorder %v1205, %v655
        %vm1324 = vcmp.eq.s32.totalorder %v1205, %v656
        %vm1325 = vcmp.eq.s32.totalorder %v1208, %v653
        %vm1326 = vcmp.eq.s32.totalorder %v1208, %v654
        %vm1327 = vcmp.eq.s32.totalorder %v1208, %v655
        %vm1328 = vcmp.eq.s32.totalorder %v1208, %v656
        %vm1329 = vcmp.eq.s32.totalorder %v1211, %v653
        %vm1330 = vcmp.eq.s32.totalorder %v1211, %v654
        %vm1331 = vcmp.eq.s32.totalorder %v1211, %v655
        %vm1332 = vcmp.eq.s32.totalorder %v1211, %v656
        %vm1333 = vcmp.eq.s32.totalorder %v1214, %v653
        %vm1334 = vcmp.eq.s32.totalorder %v1214, %v654
        %vm1335 = vcmp.eq.s32.totalorder %v1214, %v655
        %vm1336 = vcmp.eq.s32.totalorder %v1214, %v656
        %vm1337 = vcmp.eq.s32.totalorder %v1217, %v653
        %vm1338 = vcmp.eq.s32.totalorder %v1217, %v654
        %vm1339 = vcmp.eq.s32.totalorder %v1217, %v655
        %vm1340 = vcmp.eq.s32.totalorder %v1217, %v656
        %vm1341 = vcmp.eq.s32.totalorder %v1220, %v653
        %vm1342 = vcmp.eq.s32.totalorder %v1220, %v654
        %vm1343 = vcmp.eq.s32.totalorder %v1220, %v655
        %vm1344 = vcmp.eq.s32.totalorder %v1220, %v656
        %vm1345 = vcmp.eq.s32.totalorder %v1223, %v653
        %vm1346 = vcmp.eq.s32.totalorder %v1223, %v654
        %vm1347 = vcmp.eq.s32.totalorder %v1223, %v655
        %vm1348 = vcmp.eq.s32.totalorder %v1223, %v656
        %vm1349 = vcmp.eq.s32.totalorder %v1226, %v653
        %vm1350 = vcmp.eq.s32.totalorder %v1226, %v654
        %vm1351 = vcmp.eq.s32.totalorder %v1226, %v655
        %vm1352 = vcmp.eq.s32.totalorder %v1226, %v656
        %vm1353 = vcmp.eq.s32.totalorder %v1229, %v653
        %vm1354 = vcmp.eq.s32.totalorder %v1229, %v654
        %vm1355 = vcmp.eq.s32.totalorder %v1229, %v655
        %vm1356 = vcmp.eq.s32.totalorder %v1229, %v656
        %vm1357 = vcmp.eq.s32.totalorder %v1232, %v653
        %vm1358 = vcmp.eq.s32.totalorder %v1232, %v654
        %vm1359 = vcmp.eq.s32.totalorder %v1232, %v655
        %vm1360 = vcmp.eq.s32.totalorder %v1232, %v656
        %v1361 = vsel %vm1233, 1, 0
        %v1362 = vsel %vm1234, 1, 0
        %v1363 = vsel %vm1235, 1, 0
        %v1364 = vsel %vm1236, 1, 0
        %v1365 = vsel %vm1237, 1, 0
        %v1366 = vsel %vm1238, 1, 0
        %v1367 = vsel %vm1239, 1, 0
        %v1368 = vsel %vm1240, 1, 0
        %v1369 = vsel %vm1241, 1, 0
        %v1370 = vsel %vm1242, 1, 0
        %v1371 = vsel %vm1243, 1, 0
        %v1372 = vsel %vm1244, 1, 0
        %v1373 = vsel %vm1245, 1, 0
        %v1374 = vsel %vm1246, 1, 0
        %v1375 = vsel %vm1247, 1, 0
        %v1376 = vsel %vm1248, 1, 0
        %v1377 = vsel %vm1249, 1, 0
        %v1378 = vsel %vm1250, 1, 0
        %v1379 = vsel %vm1251, 1, 0
        %v1380 = vsel %vm1252, 1, 0
        %v1381 = vsel %vm1253, 1, 0
        %v1382 = vsel %vm1254, 1, 0
        %v1383 = vsel %vm1255, 1, 0
        %v1384 = vsel %vm1256, 1, 0
        %v1385 = vsel %vm1257, 1, 0
        %v1386 = vsel %vm1258, 1, 0
        %v1387 = vsel %vm1259, 1, 0
        %v1388 = vsel %vm1260, 1, 0
        %v1389 = vsel %vm1261, 1, 0
        %v1390 = vsel %vm1262, 1, 0
        %v1391 = vsel %vm1263, 1, 0
        %v1392 = vsel %vm1264, 1, 0
        %v1393 = vsel %vm1265, 1, 0
        %v1394 = vsel %vm1266, 1, 0
        %v1395 = vsel %vm1267, 1, 0
        %v1396 = vsel %vm1268, 1, 0
        %v1397 = vsel %vm1269, 1, 0
        %v1398 = vsel %vm1270, 1, 0
        %v1399 = vsel %vm1271, 1, 0
        %v1400 = vsel %vm1272, 1, 0
        %v1401 = vsel %vm1273, 1, 0
        %v1402 = vsel %vm1274, 1, 0
        %v1403 = vsel %vm1275, 1, 0
        %v1404 = vsel %vm1276, 1, 0
        %v1405 = vsel %vm1277, 1, 0
        %v1406 = vsel %vm1278, 1, 0
        %v1407 = vsel %vm1279, 1, 0
        %v1408 = vsel %vm1280, 1, 0
        %v1409 = vsel %vm1281, 1, 0
        %v1410 = vsel %vm1282, 1, 0
        %v1411 = vsel %vm1283, 1, 0
        %v1412 = vsel %vm1284, 1, 0
        %v1413 = vsel %vm1285, 1, 0
        %v1414 = vsel %vm1286, 1, 0
        %v1415 = vsel %vm1287, 1, 0
        %v1416 = vsel %vm1288, 1, 0
        %v1417 = vsel %vm1289, 1, 0
        %v1418 = vsel %vm1290, 1, 0
        %v1419 = vsel %vm1291, 1, 0
        %v1420 = vsel %vm1292, 1, 0
        %v1421 = vsel %vm1293, 1, 0
        %v1422 = vsel %vm1294, 1, 0
        %v1423 = vsel %vm1295, 1, 0
        %v1424 = vsel %vm1296, 1, 0
        %v1425 = vsel %vm1297, 1, 0
        %v1426 = vsel %vm1298, 1, 0
        %v1427 = vsel %vm1299, 1, 0
        %v1428 = vsel %vm1300, 1, 0
        %v1429 = vsel %vm1301, 1, 0
        %v1430 = vsel %vm1302, 1, 0
        %v1431 = vsel %vm1303, 1, 0
        %v1432 = vsel %vm1304, 1, 0
        %v1433 = vsel %vm1305, 1, 0
        %v1434 = vsel %vm1306, 1, 0
        %v1435 = vsel %vm1307, 1, 0
        %v1436 = vsel %vm1308, 1, 0
        %v1437 = vsel %vm1309, 1, 0
        %v1438 = vsel %vm1310, 1, 0
        %v1439 = vsel %vm1311, 1, 0
        %v1440 = vsel %vm1312, 1, 0
        %v1441 = vsel %vm1313, 1, 0
        %v1442 = vsel %vm1314, 1, 0
        %v1443 = vsel %vm1315, 1, 0
        %v1444 = vsel %vm1316, 1, 0
        %v1445 = vsel %vm1317, 1, 0
        %v1446 = vsel %vm1318, 1, 0
        %v1447 = vsel %vm1319, 1, 0
        %v1448 = vsel %vm1320, 1, 0
        %v1449 = vsel %vm1321, 1, 0
        %v1450 = vsel %vm1322, 1, 0
        %v1451 = vsel %vm1323, 1, 0
        %v1452 = vsel %vm1324, 1, 0
        %v1453 = vsel %vm1325, 1, 0
        %v1454 = vsel %vm1326, 1, 0
        %v1455 = vsel %vm1327, 1, 0
        %v1456 = vsel %vm1328, 1, 0
        %v1457 = vsel %vm1329, 1, 0
        %v1458 = vsel %vm1330, 1, 0
        %v1459 = vsel %vm1331, 1, 0
        %v1460 = vsel %vm1332, 1, 0
        %v1461 = vsel %vm1333, 1, 0
        %v1462 = vsel %vm1334, 1, 0
        %v1463 = vsel %vm1335, 1, 0
        %v1464 = vsel %vm1336, 1, 0
        %v1465 = vsel %vm1337, 1, 0
        %v1466 = vsel %vm1338, 1, 0
        %v1467 = vsel %vm1339, 1, 0
        %v1468 = vsel %vm1340, 1, 0
        %v1469 = vsel %vm1341, 1, 0
        %v1470 = vsel %vm1342, 1, 0
        %v1471 = vsel %vm1343, 1, 0
        %v1472 = vsel %vm1344, 1, 0
        %v1473 = vsel %vm1345, 1, 0
        %v1474 = vsel %vm1346, 1, 0
        %v1475 = vsel %vm1347, 1, 0
        %v1476 = vsel %vm1348, 1, 0
        %v1477 = vsel %vm1349, 1, 0
        %v1478 = vsel %vm1350, 1, 0
        %v1479 = vsel %vm1351, 1, 0
        %v1480 = vsel %vm1352, 1, 0
        %v1481 = vsel %vm1353, 1, 0
        %v1482 = vsel %vm1354, 1, 0
        %v1483 = vsel %vm1355, 1, 0
        %v1484 = vsel %vm1356, 1, 0
        %v1485 = vsel %vm1357, 1, 0
        %v1486 = vsel %vm1358, 1, 0
        %v1487 = vsel %vm1359, 1, 0
        %v1488 = vsel %vm1360, 1, 0
        %v1489 = vcvt.s32.f32 %v1361
        %v1490 = vcvt.s32.f32 %v1362
        %v1491 = vcvt.s32.f32 %v1363
        %v1492 = vcvt.s32.f32 %v1364
        %v1493 = vcvt.s32.f32 %v1365
        %v1494 = vcvt.s32.f32 %v1366
        %v1495 = vcvt.s32.f32 %v1367
        %v1496 = vcvt.s32.f32 %v1368
        %v1497 = vcvt.s32.f32 %v1369
        %v1498 = vcvt.s32.f32 %v1370
        %v1499 = vcvt.s32.f32 %v1371
        %v1500 = vcvt.s32.f32 %v1372
        %v1501 = vcvt.s32.f32 %v1373
        %v1502 = vcvt.s32.f32 %v1374
        %v1503 = vcvt.s32.f32 %v1375
        %v1504 = vcvt.s32.f32 %v1376
        %v1505 = vcvt.s32.f32 %v1377
        %v1506 = vcvt.s32.f32 %v1378
        %v1507 = vcvt.s32.f32 %v1379
        %v1508 = vcvt.s32.f32 %v1380
        %v1509 = vcvt.s32.f32 %v1381
        %v1510 = vcvt.s32.f32 %v1382
        %v1511 = vcvt.s32.f32 %v1383
        %v1512 = vcvt.s32.f32 %v1384
        %v1513 = vcvt.s32.f32 %v1385
        %v1514 = vcvt.s32.f32 %v1386
        %v1515 = vcvt.s32.f32 %v1387
        %v1516 = vcvt.s32.f32 %v1388
        %v1517 = vcvt.s32.f32 %v1389
        %v1518 = vcvt.s32.f32 %v1390
        %v1519 = vcvt.s32.f32 %v1391
        %v1520 = vcvt.s32.f32 %v1392
        %v1521 = vcvt.s32.f32 %v1393
        %v1522 = vcvt.s32.f32 %v1394
        %v1523 = vcvt.s32.f32 %v1395
        %v1524 = vcvt.s32.f32 %v1396
        %v1525 = vcvt.s32.f32 %v1397
        %v1526 = vcvt.s32.f32 %v1398
        %v1527 = vcvt.s32.f32 %v1399
        %v1528 = vcvt.s32.f32 %v1400
        %v1529 = vcvt.s32.f32 %v1401
        %v1530 = vcvt.s32.f32 %v1402
        %v1531 = vcvt.s32.f32 %v1403
        %v1532 = vcvt.s32.f32 %v1404
        %v1533 = vcvt.s32.f32 %v1405
        %v1534 = vcvt.s32.f32 %v1406
        %v1535 = vcvt.s32.f32 %v1407
        %v1536 = vcvt.s32.f32 %v1408
        %v1537 = vcvt.s32.f32 %v1409
        %v1538 = vcvt.s32.f32 %v1410
        %v1539 = vcvt.s32.f32 %v1411
        %v1540 = vcvt.s32.f32 %v1412
        %v1541 = vcvt.s32.f32 %v1413
        %v1542 = vcvt.s32.f32 %v1414
        %v1543 = vcvt.s32.f32 %v1415
        %v1544 = vcvt.s32.f32 %v1416
        %v1545 = vcvt.s32.f32 %v1417
        %v1546 = vcvt.s32.f32 %v1418
        %v1547 = vcvt.s32.f32 %v1419
        %v1548 = vcvt.s32.f32 %v1420
        %v1549 = vcvt.s32.f32 %v1421
        %v1550 = vcvt.s32.f32 %v1422
        %v1551 = vcvt.s32.f32 %v1423
        %v1552 = vcvt.s32.f32 %v1424
        %v1553 = vcvt.s32.f32 %v1425
        %v1554 = vcvt.s32.f32 %v1426
        %v1555 = vcvt.s32.f32 %v1427
        %v1556 = vcvt.s32.f32 %v1428
        %v1557 = vcvt.s32.f32 %v1429
        %v1558 = vcvt.s32.f32 %v1430
        %v1559 = vcvt.s32.f32 %v1431
        %v1560 = vcvt.s32.f32 %v1432
        %v1561 = vcvt.s32.f32 %v1433
        %v1562 = vcvt.s32.f32 %v1434
        %v1563 = vcvt.s32.f32 %v1435
        %v1564 = vcvt.s32.f32 %v1436
        %v1565 = vcvt.s32.f32 %v1437
        %v1566 = vcvt.s32.f32 %v1438
        %v1567 = vcvt.s32.f32 %v1439
        %v1568 = vcvt.s32.f32 %v1440
        %v1569 = vcvt.s32.f32 %v1441
        %v1570 = vcvt.s32.f32 %v1442
        %v1571 = vcvt.s32.f32 %v1443
        %v1572 = vcvt.s32.f32 %v1444
        %v1573 = vcvt.s32.f32 %v1445
        %v1574 = vcvt.s32.f32 %v1446
        %v1575 = vcvt.s32.f32 %v1447
        %v1576 = vcvt.s32.f32 %v1448
        %v1577 = vcvt.s32.f32 %v1449
        %v1578 = vcvt.s32.f32 %v1450
        %v1579 = vcvt.s32.f32 %v1451
        %v1580 = vcvt.s32.f32 %v1452
        %v1581 = vcvt.s32.f32 %v1453
        %v1582 = vcvt.s32.f32 %v1454
        %v1583 = vcvt.s32.f32 %v1455
        %v1584 = vcvt.s32.f32 %v1456
        %v1585 = vcvt.s32.f32 %v1457
        %v1586 = vcvt.s32.f32 %v1458
        %v1587 = vcvt.s32.f32 %v1459
        %v1588 = vcvt.s32.f32 %v1460
        %v1589 = vcvt.s32.f32 %v1461
        %v1590 = vcvt.s32.f32 %v1462
        %v1591 = vcvt.s32.f32 %v1463
        %v1592 = vcvt.s32.f32 %v1464
        %v1593 = vcvt.s32.f32 %v1465
        %v1594 = vcvt.s32.f32 %v1466
        %v1595 = vcvt.s32.f32 %v1467
        %v1596 = vcvt.s32.f32 %v1468
        %v1597 = vcvt.s32.f32 %v1469
        %v1598 = vcvt.s32.f32 %v1470
        %v1599 = vcvt.s32.f32 %v1471
        %v1600 = vcvt.s32.f32 %v1472
        %v1601 = vcvt.s32.f32 %v1473
        %v1602 = vcvt.s32.f32 %v1474
        %v1603 = vcvt.s32.f32 %v1475
        %v1604 = vcvt.s32.f32 %v1476
        %v1605 = vcvt.s32.f32 %v1477
        %v1606 = vcvt.s32.f32 %v1478
        %v1607 = vcvt.s32.f32 %v1479
        %v1608 = vcvt.s32.f32 %v1480
        %v1609 = vcvt.s32.f32 %v1481
        %v1610 = vcvt.s32.f32 %v1482
        %v1611 = vcvt.s32.f32 %v1483
        %v1612 = vcvt.s32.f32 %v1484
        %v1613 = vcvt.s32.f32 %v1485
        %v1614 = vcvt.s32.f32 %v1486
        %v1615 = vcvt.s32.f32 %v1487
        %v1616 = vcvt.s32.f32 %v1488
        %v1617 = vadd.f32 %v1009, %v1489
        %v1618 = vadd.f32 %v1010, %v1490
        %v1619 = vadd.f32 %v1011, %v1491
        %v1620 = vadd.f32 %v1012, %v1492
        %v1621 = vadd.f32 %v1013, %v1493
        %v1622 = vadd.f32 %v1014, %v1494
        %v1623 = vadd.f32 %v1015, %v1495
        %v1624 = vadd.f32 %v1016, %v1496
        %v1625 = vadd.f32 %v1017, %v1497
        %v1626 = vadd.f32 %v1018, %v1498
        %v1627 = vadd.f32 %v1019, %v1499
        %v1628 = vadd.f32 %v1020, %v1500
        %v1629 = vadd.f32 %v1021, %v1501
        %v1630 = vadd.f32 %v1022, %v1502
        %v1631 = vadd.f32 %v1023, %v1503
        %v1632 = vadd.f32 %v1024, %v1504
        %v1633 = vadd.f32 %v1025, %v1505
        %v1634 = vadd.f32 %v1026, %v1506
        %v1635 = vadd.f32 %v1027, %v1507
        %v1636 = vadd.f32 %v1028, %v1508
        %v1637 = vadd.f32 %v1029, %v1509
        %v1638 = vadd.f32 %v1030, %v1510
        %v1639 = vadd.f32 %v1031, %v1511
        %v1640 = vadd.f32 %v1032, %v1512
        %v1641 = vadd.f32 %v1033, %v1513
        %v1642 = vadd.f32 %v1034, %v1514
        %v1643 = vadd.f32 %v1035, %v1515
        %v1644 = vadd.f32 %v1036, %v1516
        %v1645 = vadd.f32 %v1037, %v1517
        %v1646 = vadd.f32 %v1038, %v1518
        %v1647 = vadd.f32 %v1039, %v1519
        %v1648 = vadd.f32 %v1040, %v1520
        %v1649 = vadd.f32 %v1041, %v1521
        %v1650 = vadd.f32 %v1042, %v1522
        %v1651 = vadd.f32 %v1043, %v1523
        %v1652 = vadd.f32 %v1044, %v1524
        %v1653 = vadd.f32 %v1045, %v1525
        %v1654 = vadd.f32 %v1046, %v1526
        %v1655 = vadd.f32 %v1047, %v1527
        %v1656 = vadd.f32 %v1048, %v1528
        %v1657 = vadd.f32 %v1049, %v1529
        %v1658 = vadd.f32 %v1050, %v1530
        %v1659 = vadd.f32 %v1051, %v1531
        %v1660 = vadd.f32 %v1052, %v1532
        %v1661 = vadd.f32 %v1053, %v1533
        %v1662 = vadd.f32 %v1054, %v1534
        %v1663 = vadd.f32 %v1055, %v1535
        %v1664 = vadd.f32 %v1056, %v1536
        %v1665 = vadd.f32 %v1057, %v1537
        %v1666 = vadd.f32 %v1058, %v1538
        %v1667 = vadd.f32 %v1059, %v1539
        %v1668 = vadd.f32 %v1060, %v1540
        %v1669 = vadd.f32 %v1061, %v1541
        %v1670 = vadd.f32 %v1062, %v1542
        %v1671 = vadd.f32 %v1063, %v1543
        %v1672 = vadd.f32 %v1064, %v1544
        %v1673 = vadd.f32 %v1065, %v1545
        %v1674 = vadd.f32 %v1066, %v1546
        %v1675 = vadd.f32 %v1067, %v1547
        %v1676 = vadd.f32 %v1068, %v1548
        %v1677 = vadd.f32 %v1069, %v1549
        %v1678 = vadd.f32 %v1070, %v1550
        %v1679 = vadd.f32 %v1071, %v1551
        %v1680 = vadd.f32 %v1072, %v1552
        %v1681 = vadd.f32 %v1073, %v1553
        %v1682 = vadd.f32 %v1074, %v1554
        %v1683 = vadd.f32 %v1075, %v1555
        %v1684 = vadd.f32 %v1076, %v1556
        %v1685 = vadd.f32 %v1077, %v1557
        %v1686 = vadd.f32 %v1078, %v1558
        %v1687 = vadd.f32 %v1079, %v1559
        %v1688 = vadd.f32 %v1080, %v1560
        %v1689 = vadd.f32 %v1081, %v1561
        %v1690 = vadd.f32 %v1082, %v1562
        %v1691 = vadd.f32 %v1083, %v1563
        %v1692 = vadd.f32 %v1084, %v1564
        %v1693 = vadd.f32 %v1085, %v1565
        %v1694 = vadd.f32 %v1086, %v1566
        %v1695 = vadd.f32 %v1087, %v1567
        %v1696 = vadd.f32 %v1088, %v1568
        %v1697 = vadd.f32 %v1089, %v1569
        %v1698 = vadd.f32 %v1090, %v1570
        %v1699 = vadd.f32 %v1091, %v1571
        %v1700 = vadd.f32 %v1092, %v1572
        %v1701 = vadd.f32 %v1093, %v1573
        %v1702 = vadd.f32 %v1094, %v1574
        %v1703 = vadd.f32 %v1095, %v1575
        %v1704 = vadd.f32 %v1096, %v1576
        %v1705 = vadd.f32 %v1097, %v1577
        %v1706 = vadd.f32 %v1098, %v1578
        %v1707 = vadd.f32 %v1099, %v1579
        %v1708 = vadd.f32 %v1100, %v1580
        %v1709 = vadd.f32 %v1101, %v1581
        %v1710 = vadd.f32 %v1102, %v1582
        %v1711 = vadd.f32 %v1103, %v1583
        %v1712 = vadd.f32 %v1104, %v1584
        %v1713 = vadd.f32 %v1105, %v1585
        %v1714 = vadd.f32 %v1106, %v1586
        %v1715 = vadd.f32 %v1107, %v1587
        %v1716 = vadd.f32 %v1108, %v1588
        %v1717 = vadd.f32 %v1109, %v1589
        %v1718 = vadd.f32 %v1110, %v1590
        %v1719 = vadd.f32 %v1111, %v1591
        %v1720 = vadd.f32 %v1112, %v1592
        %v1721 = vadd.f32 %v1113, %v1593
        %v1722 = vadd.f32 %v1114, %v1594
        %v1723 = vadd.f32 %v1115, %v1595
        %v1724 = vadd.f32 %v1116, %v1596
        %v1725 = vadd.f32 %v1117, %v1597
        %v1726 = vadd.f32 %v1118, %v1598
        %v1727 = vadd.f32 %v1119, %v1599
        %v1728 = vadd.f32 %v1120, %v1600
        %v1729 = vadd.f32 %v1121, %v1601
        %v1730 = vadd.f32 %v1122, %v1602
        %v1731 = vadd.f32 %v1123, %v1603
        %v1732 = vadd.f32 %v1124, %v1604
        %v1733 = vadd.f32 %v1125, %v1605
        %v1734 = vadd.f32 %v1126, %v1606
        %v1735 = vadd.f32 %v1127, %v1607
        %v1736 = vadd.f32 %v1128, %v1608
        %v1737 = vadd.f32 %v1129, %v1609
        %v1738 = vadd.f32 %v1130, %v1610
        %v1739 = vadd.f32 %v1131, %v1611
        %v1740 = vadd.f32 %v1132, %v1612
        %v1741 = vadd.f32 %v1133, %v1613
        %v1742 = vadd.f32 %v1134, %v1614
        %v1743 = vadd.f32 %v1135, %v1615
        %v1744 = vadd.f32 %v1136, %v1616
        %1745 = vset.pattern.permute.xlu0 2
        %1746 = vperm.xlu0 %1745, %v620
        %v1747 = vpop.permute.xlu0 %1746
        %1748 = vset.pattern.permute.xlu0 2
        %1749 = vperm.xlu0 %1748, %v621
        %v1750 = vpop.permute.xlu0 %1749
        %1751 = vset.pattern.permute.xlu0 2
        %1752 = vperm.xlu0 %1751, %v622
        %v1753 = vpop.permute.xlu0 %1752
        %1754 = vset.pattern.permute.xlu0 2
        %1755 = vperm.xlu0 %1754, %v623
        %v1756 = vpop.permute.xlu0 %1755
        %1757 = vset.pattern.permute.xlu0 2
        %1758 = vperm.xlu0 %1757, %v624
        %v1759 = vpop.permute.xlu0 %1758
        %1760 = vset.pattern.permute.xlu0 2
        %1761 = vperm.xlu0 %1760, %v625
        %v1762 = vpop.permute.xlu0 %1761
        %1763 = vset.pattern.permute.xlu0 2
        %1764 = vperm.xlu0 %1763, %v626
        %v1765 = vpop.permute.xlu0 %1764
        %1766 = vset.pattern.permute.xlu0 2
        %1767 = vperm.xlu0 %1766, %v627
        %v1768 = vpop.permute.xlu0 %1767
        %1769 = vset.pattern.permute.xlu0 2
        %1770 = vperm.xlu0 %1769, %v628
        %v1771 = vpop.permute.xlu0 %1770
        %1772 = vset.pattern.permute.xlu0 2
        %1773 = vperm.xlu0 %1772, %v629
        %v1774 = vpop.permute.xlu0 %1773
        %1775 = vset.pattern.permute.xlu0 2
        %1776 = vperm.xlu0 %1775, %v630
        %v1777 = vpop.permute.xlu0 %1776
        %1778 = vset.pattern.permute.xlu0 2
        %1779 = vperm.xlu0 %1778, %v631
        %v1780 = vpop.permute.xlu0 %1779
        %1781 = vset.pattern.permute.xlu0 2
        %1782 = vperm.xlu0 %1781, %v632
        %v1783 = vpop.permute.xlu0 %1782
        %1784 = vset.pattern.permute.xlu0 2
        %1785 = vperm.xlu0 %1784, %v633
        %v1786 = vpop.permute.xlu0 %1785
        %1787 = vset.pattern.permute.xlu0 2
        %1788 = vperm.xlu0 %1787, %v634
        %v1789 = vpop.permute.xlu0 %1788
        %1790 = vset.pattern.permute.xlu0 2
        %1791 = vperm.xlu0 %1790, %v635
        %v1792 = vpop.permute.xlu0 %1791
        %1793 = vset.pattern.permute.xlu0 2
        %1794 = vperm.xlu0 %1793, %v636
        %v1795 = vpop.permute.xlu0 %1794
        %1796 = vset.pattern.permute.xlu0 2
        %1797 = vperm.xlu0 %1796, %v637
        %v1798 = vpop.permute.xlu0 %1797
        %1799 = vset.pattern.permute.xlu0 2
        %1800 = vperm.xlu0 %1799, %v638
        %v1801 = vpop.permute.xlu0 %1800
        %1802 = vset.pattern.permute.xlu0 2
        %1803 = vperm.xlu0 %1802, %v639
        %v1804 = vpop.permute.xlu0 %1803
        %1805 = vset.pattern.permute.xlu0 2
        %1806 = vperm.xlu0 %1805, %v640
        %v1807 = vpop.permute.xlu0 %1806
        %1808 = vset.pattern.permute.xlu0 2
        %1809 = vperm.xlu0 %1808, %v641
        %v1810 = vpop.permute.xlu0 %1809
        %1811 = vset.pattern.permute.xlu0 2
        %1812 = vperm.xlu0 %1811, %v642
        %v1813 = vpop.permute.xlu0 %1812
        %1814 = vset.pattern.permute.xlu0 2
        %1815 = vperm.xlu0 %1814, %v643
        %v1816 = vpop.permute.xlu0 %1815
        %1817 = vset.pattern.permute.xlu0 2
        %1818 = vperm.xlu0 %1817, %v644
        %v1819 = vpop.permute.xlu0 %1818
        %1820 = vset.pattern.permute.xlu0 2
        %1821 = vperm.xlu0 %1820, %v645
        %v1822 = vpop.permute.xlu0 %1821
        %1823 = vset.pattern.permute.xlu0 2
        %1824 = vperm.xlu0 %1823, %v646
        %v1825 = vpop.permute.xlu0 %1824
        %1826 = vset.pattern.permute.xlu0 2
        %1827 = vperm.xlu0 %1826, %v647
        %v1828 = vpop.permute.xlu0 %1827
        %1829 = vset.pattern.permute.xlu0 2
        %1830 = vperm.xlu0 %1829, %v648
        %v1831 = vpop.permute.xlu0 %1830
        %1832 = vset.pattern.permute.xlu0 2
        %1833 = vperm.xlu0 %1832, %v649
        %v1834 = vpop.permute.xlu0 %1833
        %1835 = vset.pattern.permute.xlu0 2
        %1836 = vperm.xlu0 %1835, %v650
        %v1837 = vpop.permute.xlu0 %1836
        %1838 = vset.pattern.permute.xlu0 2
        %1839 = vperm.xlu0 %1838, %v651
        %v1840 = vpop.permute.xlu0 %1839
        %vm1841 = vcmp.eq.s32.totalorder %v1747, %v653
        %vm1842 = vcmp.eq.s32.totalorder %v1747, %v654
        %vm1843 = vcmp.eq.s32.totalorder %v1747, %v655
        %vm1844 = vcmp.eq.s32.totalorder %v1747, %v656
        %vm1845 = vcmp.eq.s32.totalorder %v1750, %v653
        %vm1846 = vcmp.eq.s32.totalorder %v1750, %v654
        %vm1847 = vcmp.eq.s32.totalorder %v1750, %v655
        %vm1848 = vcmp.eq.s32.totalorder %v1750, %v656
        %vm1849 = vcmp.eq.s32.totalorder %v1753, %v653
        %vm1850 = vcmp.eq.s32.totalorder %v1753, %v654
        %vm1851 = vcmp.eq.s32.totalorder %v1753, %v655
        %vm1852 = vcmp.eq.s32.totalorder %v1753, %v656
        %vm1853 = vcmp.eq.s32.totalorder %v1756, %v653
        %vm1854 = vcmp.eq.s32.totalorder %v1756, %v654
        %vm1855 = vcmp.eq.s32.totalorder %v1756, %v655
        %vm1856 = vcmp.eq.s32.totalorder %v1756, %v656
        %vm1857 = vcmp.eq.s32.totalorder %v1759, %v653
        %vm1858 = vcmp.eq.s32.totalorder %v1759, %v654
        %vm1859 = vcmp.eq.s32.totalorder %v1759, %v655
        %vm1860 = vcmp.eq.s32.totalorder %v1759, %v656
        %vm1861 = vcmp.eq.s32.totalorder %v1762, %v653
        %vm1862 = vcmp.eq.s32.totalorder %v1762, %v654
        %vm1863 = vcmp.eq.s32.totalorder %v1762, %v655
        %vm1864 = vcmp.eq.s32.totalorder %v1762, %v656
        %vm1865 = vcmp.eq.s32.totalorder %v1765, %v653
        %vm1866 = vcmp.eq.s32.totalorder %v1765, %v654
        %vm1867 = vcmp.eq.s32.totalorder %v1765, %v655
        %vm1868 = vcmp.eq.s32.totalorder %v1765, %v656
        %vm1869 = vcmp.eq.s32.totalorder %v1768, %v653
        %vm1870 = vcmp.eq.s32.totalorder %v1768, %v654
        %vm1871 = vcmp.eq.s32.totalorder %v1768, %v655
        %vm1872 = vcmp.eq.s32.totalorder %v1768, %v656
        %vm1873 = vcmp.eq.s32.totalorder %v1771, %v653
        %vm1874 = vcmp.eq.s32.totalorder %v1771, %v654
        %vm1875 = vcmp.eq.s32.totalorder %v1771, %v655
        %vm1876 = vcmp.eq.s32.totalorder %v1771, %v656
        %vm1877 = vcmp.eq.s32.totalorder %v1774, %v653
        %vm1878 = vcmp.eq.s32.totalorder %v1774, %v654
        %vm1879 = vcmp.eq.s32.totalorder %v1774, %v655
        %vm1880 = vcmp.eq.s32.totalorder %v1774, %v656
        %vm1881 = vcmp.eq.s32.totalorder %v1777, %v653
        %vm1882 = vcmp.eq.s32.totalorder %v1777, %v654
        %vm1883 = vcmp.eq.s32.totalorder %v1777, %v655
        %vm1884 = vcmp.eq.s32.totalorder %v1777, %v656
        %vm1885 = vcmp.eq.s32.totalorder %v1780, %v653
        %vm1886 = vcmp.eq.s32.totalorder %v1780, %v654
        %vm1887 = vcmp.eq.s32.totalorder %v1780, %v655
        %vm1888 = vcmp.eq.s32.totalorder %v1780, %v656
        %vm1889 = vcmp.eq.s32.totalorder %v1783, %v653
        %vm1890 = vcmp.eq.s32.totalorder %v1783, %v654
        %vm1891 = vcmp.eq.s32.totalorder %v1783, %v655
        %vm1892 = vcmp.eq.s32.totalorder %v1783, %v656
        %vm1893 = vcmp.eq.s32.totalorder %v1786, %v653
        %vm1894 = vcmp.eq.s32.totalorder %v1786, %v654
        %vm1895 = vcmp.eq.s32.totalorder %v1786, %v655
        %vm1896 = vcmp.eq.s32.totalorder %v1786, %v656
        %vm1897 = vcmp.eq.s32.totalorder %v1789, %v653
        %vm1898 = vcmp.eq.s32.totalorder %v1789, %v654
        %vm1899 = vcmp.eq.s32.totalorder %v1789, %v655
        %vm1900 = vcmp.eq.s32.totalorder %v1789, %v656
        %vm1901 = vcmp.eq.s32.totalorder %v1792, %v653
        %vm1902 = vcmp.eq.s32.totalorder %v1792, %v654
        %vm1903 = vcmp.eq.s32.totalorder %v1792, %v655
        %vm1904 = vcmp.eq.s32.totalorder %v1792, %v656
        %vm1905 = vcmp.eq.s32.totalorder %v1795, %v653
        %vm1906 = vcmp.eq.s32.totalorder %v1795, %v654
        %vm1907 = vcmp.eq.s32.totalorder %v1795, %v655
        %vm1908 = vcmp.eq.s32.totalorder %v1795, %v656
        %vm1909 = vcmp.eq.s32.totalorder %v1798, %v653
        %vm1910 = vcmp.eq.s32.totalorder %v1798, %v654
        %vm1911 = vcmp.eq.s32.totalorder %v1798, %v655
        %vm1912 = vcmp.eq.s32.totalorder %v1798, %v656
        %vm1913 = vcmp.eq.s32.totalorder %v1801, %v653
        %vm1914 = vcmp.eq.s32.totalorder %v1801, %v654
        %vm1915 = vcmp.eq.s32.totalorder %v1801, %v655
        %vm1916 = vcmp.eq.s32.totalorder %v1801, %v656
        %vm1917 = vcmp.eq.s32.totalorder %v1804, %v653
        %vm1918 = vcmp.eq.s32.totalorder %v1804, %v654
        %vm1919 = vcmp.eq.s32.totalorder %v1804, %v655
        %vm1920 = vcmp.eq.s32.totalorder %v1804, %v656
        %vm1921 = vcmp.eq.s32.totalorder %v1807, %v653
        %vm1922 = vcmp.eq.s32.totalorder %v1807, %v654
        %vm1923 = vcmp.eq.s32.totalorder %v1807, %v655
        %vm1924 = vcmp.eq.s32.totalorder %v1807, %v656
        %vm1925 = vcmp.eq.s32.totalorder %v1810, %v653
        %vm1926 = vcmp.eq.s32.totalorder %v1810, %v654
        %vm1927 = vcmp.eq.s32.totalorder %v1810, %v655
        %vm1928 = vcmp.eq.s32.totalorder %v1810, %v656
        %vm1929 = vcmp.eq.s32.totalorder %v1813, %v653
        %vm1930 = vcmp.eq.s32.totalorder %v1813, %v654
        %vm1931 = vcmp.eq.s32.totalorder %v1813, %v655
        %vm1932 = vcmp.eq.s32.totalorder %v1813, %v656
        %vm1933 = vcmp.eq.s32.totalorder %v1816, %v653
        %vm1934 = vcmp.eq.s32.totalorder %v1816, %v654
        %vm1935 = vcmp.eq.s32.totalorder %v1816, %v655
        %vm1936 = vcmp.eq.s32.totalorder %v1816, %v656
        %vm1937 = vcmp.eq.s32.totalorder %v1819, %v653
        %vm1938 = vcmp.eq.s32.totalorder %v1819, %v654
        %vm1939 = vcmp.eq.s32.totalorder %v1819, %v655
        %vm1940 = vcmp.eq.s32.totalorder %v1819, %v656
        %vm1941 = vcmp.eq.s32.totalorder %v1822, %v653
        %vm1942 = vcmp.eq.s32.totalorder %v1822, %v654
        %vm1943 = vcmp.eq.s32.totalorder %v1822, %v655
        %vm1944 = vcmp.eq.s32.totalorder %v1822, %v656
        %vm1945 = vcmp.eq.s32.totalorder %v1825, %v653
        %vm1946 = vcmp.eq.s32.totalorder %v1825, %v654
        %vm1947 = vcmp.eq.s32.totalorder %v1825, %v655
        %vm1948 = vcmp.eq.s32.totalorder %v1825, %v656
        %vm1949 = vcmp.eq.s32.totalorder %v1828, %v653
        %vm1950 = vcmp.eq.s32.totalorder %v1828, %v654
        %vm1951 = vcmp.eq.s32.totalorder %v1828, %v655
        %vm1952 = vcmp.eq.s32.totalorder %v1828, %v656
        %vm1953 = vcmp.eq.s32.totalorder %v1831, %v653
        %vm1954 = vcmp.eq.s32.totalorder %v1831, %v654
        %vm1955 = vcmp.eq.s32.totalorder %v1831, %v655
        %vm1956 = vcmp.eq.s32.totalorder %v1831, %v656
        %vm1957 = vcmp.eq.s32.totalorder %v1834, %v653
        %vm1958 = vcmp.eq.s32.totalorder %v1834, %v654
        %vm1959 = vcmp.eq.s32.totalorder %v1834, %v655
        %vm1960 = vcmp.eq.s32.totalorder %v1834, %v656
        %vm1961 = vcmp.eq.s32.totalorder %v1837, %v653
        %vm1962 = vcmp.eq.s32.totalorder %v1837, %v654
        %vm1963 = vcmp.eq.s32.totalorder %v1837, %v655
        %vm1964 = vcmp.eq.s32.totalorder %v1837, %v656
        %vm1965 = vcmp.eq.s32.totalorder %v1840, %v653
        %vm1966 = vcmp.eq.s32.totalorder %v1840, %v654
        %vm1967 = vcmp.eq.s32.totalorder %v1840, %v655
        %vm1968 = vcmp.eq.s32.totalorder %v1840, %v656
        %v1969 = vsel %vm1841, 1, 0
        %v1970 = vsel %vm1842, 1, 0
        %v1971 = vsel %vm1843, 1, 0
        %v1972 = vsel %vm1844, 1, 0
        %v1973 = vsel %vm1845, 1, 0
        %v1974 = vsel %vm1846, 1, 0
        %v1975 = vsel %vm1847, 1, 0
        %v1976 = vsel %vm1848, 1, 0
        %v1977 = vsel %vm1849, 1, 0
        %v1978 = vsel %vm1850, 1, 0
        %v1979 = vsel %vm1851, 1, 0
        %v1980 = vsel %vm1852, 1, 0
        %v1981 = vsel %vm1853, 1, 0
        %v1982 = vsel %vm1854, 1, 0
        %v1983 = vsel %vm1855, 1, 0
        %v1984 = vsel %vm1856, 1, 0
        %v1985 = vsel %vm1857, 1, 0
        %v1986 = vsel %vm1858, 1, 0
        %v1987 = vsel %vm1859, 1, 0
        %v1988 = vsel %vm1860, 1, 0
        %v1989 = vsel %vm1861, 1, 0
        %v1990 = vsel %vm1862, 1, 0
        %v1991 = vsel %vm1863, 1, 0
        %v1992 = vsel %vm1864, 1, 0
        %v1993 = vsel %vm1865, 1, 0
        %v1994 = vsel %vm1866, 1, 0
        %v1995 = vsel %vm1867, 1, 0
        %v1996 = vsel %vm1868, 1, 0
        %v1997 = vsel %vm1869, 1, 0
        %v1998 = vsel %vm1870, 1, 0
        %v1999 = vsel %vm1871, 1, 0
        %v2000 = vsel %vm1872, 1, 0
        %v2001 = vsel %vm1873, 1, 0
        %v2002 = vsel %vm1874, 1, 0
        %v2003 = vsel %vm1875, 1, 0
        %v2004 = vsel %vm1876, 1, 0
        %v2005 = vsel %vm1877, 1, 0
        %v2006 = vsel %vm1878, 1, 0
        %v2007 = vsel %vm1879, 1, 0
        %v2008 = vsel %vm1880, 1, 0
        %v2009 = vsel %vm1881, 1, 0
        %v2010 = vsel %vm1882, 1, 0
        %v2011 = vsel %vm1883, 1, 0
        %v2012 = vsel %vm1884, 1, 0
        %v2013 = vsel %vm1885, 1, 0
        %v2014 = vsel %vm1886, 1, 0
        %v2015 = vsel %vm1887, 1, 0
        %v2016 = vsel %vm1888, 1, 0
        %v2017 = vsel %vm1889, 1, 0
        %v2018 = vsel %vm1890, 1, 0
        %v2019 = vsel %vm1891, 1, 0
        %v2020 = vsel %vm1892, 1, 0
        %v2021 = vsel %vm1893, 1, 0
        %v2022 = vsel %vm1894, 1, 0
        %v2023 = vsel %vm1895, 1, 0
        %v2024 = vsel %vm1896, 1, 0
        %v2025 = vsel %vm1897, 1, 0
        %v2026 = vsel %vm1898, 1, 0
        %v2027 = vsel %vm1899, 1, 0
        %v2028 = vsel %vm1900, 1, 0
        %v2029 = vsel %vm1901, 1, 0
        %v2030 = vsel %vm1902, 1, 0
        %v2031 = vsel %vm1903, 1, 0
        %v2032 = vsel %vm1904, 1, 0
        %v2033 = vsel %vm1905, 1, 0
        %v2034 = vsel %vm1906, 1, 0
        %v2035 = vsel %vm1907, 1, 0
        %v2036 = vsel %vm1908, 1, 0
        %v2037 = vsel %vm1909, 1, 0
        %v2038 = vsel %vm1910, 1, 0
        %v2039 = vsel %vm1911, 1, 0
        %v2040 = vsel %vm1912, 1, 0
        %v2041 = vsel %vm1913, 1, 0
        %v2042 = vsel %vm1914, 1, 0
        %v2043 = vsel %vm1915, 1, 0
        %v2044 = vsel %vm1916, 1, 0
        %v2045 = vsel %vm1917, 1, 0
        %v2046 = vsel %vm1918, 1, 0
        %v2047 = vsel %vm1919, 1, 0
        %v2048 = vsel %vm1920, 1, 0
        %v2049 = vsel %vm1921, 1, 0
        %v2050 = vsel %vm1922, 1, 0
        %v2051 = vsel %vm1923, 1, 0
        %v2052 = vsel %vm1924, 1, 0
        %v2053 = vsel %vm1925, 1, 0
        %v2054 = vsel %vm1926, 1, 0
        %v2055 = vsel %vm1927, 1, 0
        %v2056 = vsel %vm1928, 1, 0
        %v2057 = vsel %vm1929, 1, 0
        %v2058 = vsel %vm1930, 1, 0
        %v2059 = vsel %vm1931, 1, 0
        %v2060 = vsel %vm1932, 1, 0
        %v2061 = vsel %vm1933, 1, 0
        %v2062 = vsel %vm1934, 1, 0
        %v2063 = vsel %vm1935, 1, 0
        %v2064 = vsel %vm1936, 1, 0
        %v2065 = vsel %vm1937, 1, 0
        %v2066 = vsel %vm1938, 1, 0
        %v2067 = vsel %vm1939, 1, 0
        %v2068 = vsel %vm1940, 1, 0
        %v2069 = vsel %vm1941, 1, 0
        %v2070 = vsel %vm1942, 1, 0
        %v2071 = vsel %vm1943, 1, 0
        %v2072 = vsel %vm1944, 1, 0
        %v2073 = vsel %vm1945, 1, 0
        %v2074 = vsel %vm1946, 1, 0
        %v2075 = vsel %vm1947, 1, 0
        %v2076 = vsel %vm1948, 1, 0
        %v2077 = vsel %vm1949, 1, 0
        %v2078 = vsel %vm1950, 1, 0
        %v2079 = vsel %vm1951, 1, 0
        %v2080 = vsel %vm1952, 1, 0
        %v2081 = vsel %vm1953, 1, 0
        %v2082 = vsel %vm1954, 1, 0
        %v2083 = vsel %vm1955, 1, 0
        %v2084 = vsel %vm1956, 1, 0
        %v2085 = vsel %vm1957, 1, 0
        %v2086 = vsel %vm1958, 1, 0
        %v2087 = vsel %vm1959, 1, 0
        %v2088 = vsel %vm1960, 1, 0
        %v2089 = vsel %vm1961, 1, 0
        %v2090 = vsel %vm1962, 1, 0
        %v2091 = vsel %vm1963, 1, 0
        %v2092 = vsel %vm1964, 1, 0
        %v2093 = vsel %vm1965, 1, 0
        %v2094 = vsel %vm1966, 1, 0
        %v2095 = vsel %vm1967, 1, 0
        %v2096 = vsel %vm1968, 1, 0
        %v2097 = vcvt.s32.f32 %v1969
        %v2098 = vcvt.s32.f32 %v1970
        %v2099 = vcvt.s32.f32 %v1971
        %v2100 = vcvt.s32.f32 %v1972
        %v2101 = vcvt.s32.f32 %v1973
        %v2102 = vcvt.s32.f32 %v1974
        %v2103 = vcvt.s32.f32 %v1975
        %v2104 = vcvt.s32.f32 %v1976
        %v2105 = vcvt.s32.f32 %v1977
        %v2106 = vcvt.s32.f32 %v1978
        %v2107 = vcvt.s32.f32 %v1979
        %v2108 = vcvt.s32.f32 %v1980
        %v2109 = vcvt.s32.f32 %v1981
        %v2110 = vcvt.s32.f32 %v1982
        %v2111 = vcvt.s32.f32 %v1983
        %v2112 = vcvt.s32.f32 %v1984
        %v2113 = vcvt.s32.f32 %v1985
        %v2114 = vcvt.s32.f32 %v1986
        %v2115 = vcvt.s32.f32 %v1987
        %v2116 = vcvt.s32.f32 %v1988
        %v2117 = vcvt.s32.f32 %v1989
        %v2118 = vcvt.s32.f32 %v1990
        %v2119 = vcvt.s32.f32 %v1991
        %v2120 = vcvt.s32.f32 %v1992
        %v2121 = vcvt.s32.f32 %v1993
        %v2122 = vcvt.s32.f32 %v1994
        %v2123 = vcvt.s32.f32 %v1995
        %v2124 = vcvt.s32.f32 %v1996
        %v2125 = vcvt.s32.f32 %v1997
        %v2126 = vcvt.s32.f32 %v1998
        %v2127 = vcvt.s32.f32 %v1999
        %v2128 = vcvt.s32.f32 %v2000
        %v2129 = vcvt.s32.f32 %v2001
        %v2130 = vcvt.s32.f32 %v2002
        %v2131 = vcvt.s32.f32 %v2003
        %v2132 = vcvt.s32.f32 %v2004
        %v2133 = vcvt.s32.f32 %v2005
        %v2134 = vcvt.s32.f32 %v2006
        %v2135 = vcvt.s32.f32 %v2007
        %v2136 = vcvt.s32.f32 %v2008
        %v2137 = vcvt.s32.f32 %v2009
        %v2138 = vcvt.s32.f32 %v2010
        %v2139 = vcvt.s32.f32 %v2011
        %v2140 = vcvt.s32.f32 %v2012
        %v2141 = vcvt.s32.f32 %v2013
        %v2142 = vcvt.s32.f32 %v2014
        %v2143 = vcvt.s32.f32 %v2015
        %v2144 = vcvt.s32.f32 %v2016
        %v2145 = vcvt.s32.f32 %v2017
        %v2146 = vcvt.s32.f32 %v2018
        %v2147 = vcvt.s32.f32 %v2019
        %v2148 = vcvt.s32.f32 %v2020
        %v2149 = vcvt.s32.f32 %v2021
        %v2150 = vcvt.s32.f32 %v2022
        %v2151 = vcvt.s32.f32 %v2023
        %v2152 = vcvt.s32.f32 %v2024
        %v2153 = vcvt.s32.f32 %v2025
        %v2154 = vcvt.s32.f32 %v2026
        %v2155 = vcvt.s32.f32 %v2027
        %v2156 = vcvt.s32.f32 %v2028
        %v2157 = vcvt.s32.f32 %v2029
        %v2158 = vcvt.s32.f32 %v2030
        %v2159 = vcvt.s32.f32 %v2031
        %v2160 = vcvt.s32.f32 %v2032
        %v2161 = vcvt.s32.f32 %v2033
        %v2162 = vcvt.s32.f32 %v2034
        %v2163 = vcvt.s32.f32 %v2035
        %v2164 = vcvt.s32.f32 %v2036
        %v2165 = vcvt.s32.f32 %v2037
        %v2166 = vcvt.s32.f32 %v2038
        %v2167 = vcvt.s32.f32 %v2039
        %v2168 = vcvt.s32.f32 %v2040
        %v2169 = vcvt.s32.f32 %v2041
        %v2170 = vcvt.s32.f32 %v2042
        %v2171 = vcvt.s32.f32 %v2043
        %v2172 = vcvt.s32.f32 %v2044
        %v2173 = vcvt.s32.f32 %v2045
        %v2174 = vcvt.s32.f32 %v2046
        %v2175 = vcvt.s32.f32 %v2047
        %v2176 = vcvt.s32.f32 %v2048
        %v2177 = vcvt.s32.f32 %v2049
        %v2178 = vcvt.s32.f32 %v2050
        %v2179 = vcvt.s32.f32 %v2051
        %v2180 = vcvt.s32.f32 %v2052
        %v2181 = vcvt.s32.f32 %v2053
        %v2182 = vcvt.s32.f32 %v2054
        %v2183 = vcvt.s32.f32 %v2055
        %v2184 = vcvt.s32.f32 %v2056
        %v2185 = vcvt.s32.f32 %v2057
        %v2186 = vcvt.s32.f32 %v2058
        %v2187 = vcvt.s32.f32 %v2059
        %v2188 = vcvt.s32.f32 %v2060
        %v2189 = vcvt.s32.f32 %v2061
        %v2190 = vcvt.s32.f32 %v2062
        %v2191 = vcvt.s32.f32 %v2063
        %v2192 = vcvt.s32.f32 %v2064
        %v2193 = vcvt.s32.f32 %v2065
        %v2194 = vcvt.s32.f32 %v2066
        %v2195 = vcvt.s32.f32 %v2067
        %v2196 = vcvt.s32.f32 %v2068
        %v2197 = vcvt.s32.f32 %v2069
        %v2198 = vcvt.s32.f32 %v2070
        %v2199 = vcvt.s32.f32 %v2071
        %v2200 = vcvt.s32.f32 %v2072
        %v2201 = vcvt.s32.f32 %v2073
        %v2202 = vcvt.s32.f32 %v2074
        %v2203 = vcvt.s32.f32 %v2075
        %v2204 = vcvt.s32.f32 %v2076
        %v2205 = vcvt.s32.f32 %v2077
        %v2206 = vcvt.s32.f32 %v2078
        %v2207 = vcvt.s32.f32 %v2079
        %v2208 = vcvt.s32.f32 %v2080
        %v2209 = vcvt.s32.f32 %v2081
        %v2210 = vcvt.s32.f32 %v2082
        %v2211 = vcvt.s32.f32 %v2083
        %v2212 = vcvt.s32.f32 %v2084
        %v2213 = vcvt.s32.f32 %v2085
        %v2214 = vcvt.s32.f32 %v2086
        %v2215 = vcvt.s32.f32 %v2087
        %v2216 = vcvt.s32.f32 %v2088
        %v2217 = vcvt.s32.f32 %v2089
        %v2218 = vcvt.s32.f32 %v2090
        %v2219 = vcvt.s32.f32 %v2091
        %v2220 = vcvt.s32.f32 %v2092
        %v2221 = vcvt.s32.f32 %v2093
        %v2222 = vcvt.s32.f32 %v2094
        %v2223 = vcvt.s32.f32 %v2095
        %v2224 = vcvt.s32.f32 %v2096
        %v2225 = vadd.f32 %v1617, %v2097
        %v2226 = vadd.f32 %v1618, %v2098
        %v2227 = vadd.f32 %v1619, %v2099
        %v2228 = vadd.f32 %v1620, %v2100
        %v2229 = vadd.f32 %v1621, %v2101
        %v2230 = vadd.f32 %v1622, %v2102
        %v2231 = vadd.f32 %v1623, %v2103
        %v2232 = vadd.f32 %v1624, %v2104
        %v2233 = vadd.f32 %v1625, %v2105
        %v2234 = vadd.f32 %v1626, %v2106
        %v2235 = vadd.f32 %v1627, %v2107
        %v2236 = vadd.f32 %v1628, %v2108
        %v2237 = vadd.f32 %v1629, %v2109
        %v2238 = vadd.f32 %v1630, %v2110
        %v2239 = vadd.f32 %v1631, %v2111
        %v2240 = vadd.f32 %v1632, %v2112
        %v2241 = vadd.f32 %v1633, %v2113
        %v2242 = vadd.f32 %v1634, %v2114
        %v2243 = vadd.f32 %v1635, %v2115
        %v2244 = vadd.f32 %v1636, %v2116
        %v2245 = vadd.f32 %v1637, %v2117
        %v2246 = vadd.f32 %v1638, %v2118
        %v2247 = vadd.f32 %v1639, %v2119
        %v2248 = vadd.f32 %v1640, %v2120
        %v2249 = vadd.f32 %v1641, %v2121
        %v2250 = vadd.f32 %v1642, %v2122
        %v2251 = vadd.f32 %v1643, %v2123
        %v2252 = vadd.f32 %v1644, %v2124
        %v2253 = vadd.f32 %v1645, %v2125
        %v2254 = vadd.f32 %v1646, %v2126
        %v2255 = vadd.f32 %v1647, %v2127
        %v2256 = vadd.f32 %v1648, %v2128
        %v2257 = vadd.f32 %v1649, %v2129
        %v2258 = vadd.f32 %v1650, %v2130
        %v2259 = vadd.f32 %v1651, %v2131
        %v2260 = vadd.f32 %v1652, %v2132
        %v2261 = vadd.f32 %v1653, %v2133
        %v2262 = vadd.f32 %v1654, %v2134
        %v2263 = vadd.f32 %v1655, %v2135
        %v2264 = vadd.f32 %v1656, %v2136
        %v2265 = vadd.f32 %v1657, %v2137
        %v2266 = vadd.f32 %v1658, %v2138
        %v2267 = vadd.f32 %v1659, %v2139
        %v2268 = vadd.f32 %v1660, %v2140
        %v2269 = vadd.f32 %v1661, %v2141
        %v2270 = vadd.f32 %v1662, %v2142
        %v2271 = vadd.f32 %v1663, %v2143
        %v2272 = vadd.f32 %v1664, %v2144
        %v2273 = vadd.f32 %v1665, %v2145
        %v2274 = vadd.f32 %v1666, %v2146
        %v2275 = vadd.f32 %v1667, %v2147
        %v2276 = vadd.f32 %v1668, %v2148
        %v2277 = vadd.f32 %v1669, %v2149
        %v2278 = vadd.f32 %v1670, %v2150
        %v2279 = vadd.f32 %v1671, %v2151
        %v2280 = vadd.f32 %v1672, %v2152
        %v2281 = vadd.f32 %v1673, %v2153
        %v2282 = vadd.f32 %v1674, %v2154
        %v2283 = vadd.f32 %v1675, %v2155
        %v2284 = vadd.f32 %v1676, %v2156
        %v2285 = vadd.f32 %v1677, %v2157
        %v2286 = vadd.f32 %v1678, %v2158
        %v2287 = vadd.f32 %v1679, %v2159
        %v2288 = vadd.f32 %v1680, %v2160
        %v2289 = vadd.f32 %v1681, %v2161
        %v2290 = vadd.f32 %v1682, %v2162
        %v2291 = vadd.f32 %v1683, %v2163
        %v2292 = vadd.f32 %v1684, %v2164
        %v2293 = vadd.f32 %v1685, %v2165
        %v2294 = vadd.f32 %v1686, %v2166
        %v2295 = vadd.f32 %v1687, %v2167
        %v2296 = vadd.f32 %v1688, %v2168
        %v2297 = vadd.f32 %v1689, %v2169
        %v2298 = vadd.f32 %v1690, %v2170
        %v2299 = vadd.f32 %v1691, %v2171
        %v2300 = vadd.f32 %v1692, %v2172
        %v2301 = vadd.f32 %v1693, %v2173
        %v2302 = vadd.f32 %v1694, %v2174
        %v2303 = vadd.f32 %v1695, %v2175
        %v2304 = vadd.f32 %v1696, %v2176
        %v2305 = vadd.f32 %v1697, %v2177
        %v2306 = vadd.f32 %v1698, %v2178
        %v2307 = vadd.f32 %v1699, %v2179
        %v2308 = vadd.f32 %v1700, %v2180
        %v2309 = vadd.f32 %v1701, %v2181
        %v2310 = vadd.f32 %v1702, %v2182
        %v2311 = vadd.f32 %v1703, %v2183
        %v2312 = vadd.f32 %v1704, %v2184
        %v2313 = vadd.f32 %v1705, %v2185
        %v2314 = vadd.f32 %v1706, %v2186
        %v2315 = vadd.f32 %v1707, %v2187
        %v2316 = vadd.f32 %v1708, %v2188
        %v2317 = vadd.f32 %v1709, %v2189
        %v2318 = vadd.f32 %v1710, %v2190
        %v2319 = vadd.f32 %v1711, %v2191
        %v2320 = vadd.f32 %v1712, %v2192
        %v2321 = vadd.f32 %v1713, %v2193
        %v2322 = vadd.f32 %v1714, %v2194
        %v2323 = vadd.f32 %v1715, %v2195
        %v2324 = vadd.f32 %v1716, %v2196
        %v2325 = vadd.f32 %v1717, %v2197
        %v2326 = vadd.f32 %v1718, %v2198
        %v2327 = vadd.f32 %v1719, %v2199
        %v2328 = vadd.f32 %v1720, %v2200
        %v2329 = vadd.f32 %v1721, %v2201
        %v2330 = vadd.f32 %v1722, %v2202
        %v2331 = vadd.f32 %v1723, %v2203
        %v2332 = vadd.f32 %v1724, %v2204
        %v2333 = vadd.f32 %v1725, %v2205
        %v2334 = vadd.f32 %v1726, %v2206
        %v2335 = vadd.f32 %v1727, %v2207
        %v2336 = vadd.f32 %v1728, %v2208
        %v2337 = vadd.f32 %v1729, %v2209
        %v2338 = vadd.f32 %v1730, %v2210
        %v2339 = vadd.f32 %v1731, %v2211
        %v2340 = vadd.f32 %v1732, %v2212
        %v2341 = vadd.f32 %v1733, %v2213
        %v2342 = vadd.f32 %v1734, %v2214
        %v2343 = vadd.f32 %v1735, %v2215
        %v2344 = vadd.f32 %v1736, %v2216
        %v2345 = vadd.f32 %v1737, %v2217
        %v2346 = vadd.f32 %v1738, %v2218
        %v2347 = vadd.f32 %v1739, %v2219
        %v2348 = vadd.f32 %v1740, %v2220
        %v2349 = vadd.f32 %v1741, %v2221
        %v2350 = vadd.f32 %v1742, %v2222
        %v2351 = vadd.f32 %v1743, %v2223
        %v2352 = vadd.f32 %v1744, %v2224
        %2353 = vset.pattern.permute.xlu0 3
        %2354 = vperm.xlu0 %2353, %v620
        %v2355 = vpop.permute.xlu0 %2354
        %2356 = vset.pattern.permute.xlu0 3
        %2357 = vperm.xlu0 %2356, %v621
        %v2358 = vpop.permute.xlu0 %2357
        %2359 = vset.pattern.permute.xlu0 3
        %2360 = vperm.xlu0 %2359, %v622
        %v2361 = vpop.permute.xlu0 %2360
        %2362 = vset.pattern.permute.xlu0 3
        %2363 = vperm.xlu0 %2362, %v623
        %v2364 = vpop.permute.xlu0 %2363
        %2365 = vset.pattern.permute.xlu0 3
        %2366 = vperm.xlu0 %2365, %v624
        %v2367 = vpop.permute.xlu0 %2366
        %2368 = vset.pattern.permute.xlu0 3
        %2369 = vperm.xlu0 %2368, %v625
        %v2370 = vpop.permute.xlu0 %2369
        %2371 = vset.pattern.permute.xlu0 3
        %2372 = vperm.xlu0 %2371, %v626
        %v2373 = vpop.permute.xlu0 %2372
        %2374 = vset.pattern.permute.xlu0 3
        %2375 = vperm.xlu0 %2374, %v627
        %v2376 = vpop.permute.xlu0 %2375
        %2377 = vset.pattern.permute.xlu0 3
        %2378 = vperm.xlu0 %2377, %v628
        %v2379 = vpop.permute.xlu0 %2378
        %2380 = vset.pattern.permute.xlu0 3
        %2381 = vperm.xlu0 %2380, %v629
        %v2382 = vpop.permute.xlu0 %2381
        %2383 = vset.pattern.permute.xlu0 3
        %2384 = vperm.xlu0 %2383, %v630
        %v2385 = vpop.permute.xlu0 %2384
        %2386 = vset.pattern.permute.xlu0 3
        %2387 = vperm.xlu0 %2386, %v631
        %v2388 = vpop.permute.xlu0 %2387
        %2389 = vset.pattern.permute.xlu0 3
        %2390 = vperm.xlu0 %2389, %v632
        %v2391 = vpop.permute.xlu0 %2390
        %2392 = vset.pattern.permute.xlu0 3
        %2393 = vperm.xlu0 %2392, %v633
        %v2394 = vpop.permute.xlu0 %2393
        %2395 = vset.pattern.permute.xlu0 3
        %2396 = vperm.xlu0 %2395, %v634
        %v2397 = vpop.permute.xlu0 %2396
        %2398 = vset.pattern.permute.xlu0 3
        %2399 = vperm.xlu0 %2398, %v635
        %v2400 = vpop.permute.xlu0 %2399
        %2401 = vset.pattern.permute.xlu0 3
        %2402 = vperm.xlu0 %2401, %v636
        %v2403 = vpop.permute.xlu0 %2402
        %2404 = vset.pattern.permute.xlu0 3
        %2405 = vperm.xlu0 %2404, %v637
        %v2406 = vpop.permute.xlu0 %2405
        %2407 = vset.pattern.permute.xlu0 3
        %2408 = vperm.xlu0 %2407, %v638
        %v2409 = vpop.permute.xlu0 %2408
        %2410 = vset.pattern.permute.xlu0 3
        %2411 = vperm.xlu0 %2410, %v639
        %v2412 = vpop.permute.xlu0 %2411
        %2413 = vset.pattern.permute.xlu0 3
        %2414 = vperm.xlu0 %2413, %v640
        %v2415 = vpop.permute.xlu0 %2414
        %2416 = vset.pattern.permute.xlu0 3
        %2417 = vperm.xlu0 %2416, %v641
        %v2418 = vpop.permute.xlu0 %2417
        %2419 = vset.pattern.permute.xlu0 3
        %2420 = vperm.xlu0 %2419, %v642
        %v2421 = vpop.permute.xlu0 %2420
        %2422 = vset.pattern.permute.xlu0 3
        %2423 = vperm.xlu0 %2422, %v643
        %v2424 = vpop.permute.xlu0 %2423
        %2425 = vset.pattern.permute.xlu0 3
        %2426 = vperm.xlu0 %2425, %v644
        %v2427 = vpop.permute.xlu0 %2426
        %2428 = vset.pattern.permute.xlu0 3
        %2429 = vperm.xlu0 %2428, %v645
        %v2430 = vpop.permute.xlu0 %2429
        %2431 = vset.pattern.permute.xlu0 3
        %2432 = vperm.xlu0 %2431, %v646
        %v2433 = vpop.permute.xlu0 %2432
        %2434 = vset.pattern.permute.xlu0 3
        %2435 = vperm.xlu0 %2434, %v647
        %v2436 = vpop.permute.xlu0 %2435
        %2437 = vset.pattern.permute.xlu0 3
        %2438 = vperm.xlu0 %2437, %v648
        %v2439 = vpop.permute.xlu0 %2438
        %2440 = vset.pattern.permute.xlu0 3
        %2441 = vperm.xlu0 %2440, %v649
        %v2442 = vpop.permute.xlu0 %2441
        %2443 = vset.pattern.permute.xlu0 3
        %2444 = vperm.xlu0 %2443, %v650
        %v2445 = vpop.permute.xlu0 %2444
        %2446 = vset.pattern.permute.xlu0 3
        %2447 = vperm.xlu0 %2446, %v651
        %v2448 = vpop.permute.xlu0 %2447
        %vm2449 = vcmp.eq.s32.totalorder %v2355, %v653
        %vm2450 = vcmp.eq.s32.totalorder %v2355, %v654
        %vm2451 = vcmp.eq.s32.totalorder %v2355, %v655
        %vm2452 = vcmp.eq.s32.totalorder %v2355, %v656
        %vm2453 = vcmp.eq.s32.totalorder %v2358, %v653
        %vm2454 = vcmp.eq.s32.totalorder %v2358, %v654
        %vm2455 = vcmp.eq.s32.totalorder %v2358, %v655
        %vm2456 = vcmp.eq.s32.totalorder %v2358, %v656
        %vm2457 = vcmp.eq.s32.totalorder %v2361, %v653
        %vm2458 = vcmp.eq.s32.totalorder %v2361, %v654
        %vm2459 = vcmp.eq.s32.totalorder %v2361, %v655
        %vm2460 = vcmp.eq.s32.totalorder %v2361, %v656
        %vm2461 = vcmp.eq.s32.totalorder %v2364, %v653
        %vm2462 = vcmp.eq.s32.totalorder %v2364, %v654
        %vm2463 = vcmp.eq.s32.totalorder %v2364, %v655
        %vm2464 = vcmp.eq.s32.totalorder %v2364, %v656
        %vm2465 = vcmp.eq.s32.totalorder %v2367, %v653
        %vm2466 = vcmp.eq.s32.totalorder %v2367, %v654
        %vm2467 = vcmp.eq.s32.totalorder %v2367, %v655
        %vm2468 = vcmp.eq.s32.totalorder %v2367, %v656
        %vm2469 = vcmp.eq.s32.totalorder %v2370, %v653
        %vm2470 = vcmp.eq.s32.totalorder %v2370, %v654
        %vm2471 = vcmp.eq.s32.totalorder %v2370, %v655
        %vm2472 = vcmp.eq.s32.totalorder %v2370, %v656
        %vm2473 = vcmp.eq.s32.totalorder %v2373, %v653
        %vm2474 = vcmp.eq.s32.totalorder %v2373, %v654
        %vm2475 = vcmp.eq.s32.totalorder %v2373, %v655
        %vm2476 = vcmp.eq.s32.totalorder %v2373, %v656
        %vm2477 = vcmp.eq.s32.totalorder %v2376, %v653
        %vm2478 = vcmp.eq.s32.totalorder %v2376, %v654
        %vm2479 = vcmp.eq.s32.totalorder %v2376, %v655
        %vm2480 = vcmp.eq.s32.totalorder %v2376, %v656
        %vm2481 = vcmp.eq.s32.totalorder %v2379, %v653
        %vm2482 = vcmp.eq.s32.totalorder %v2379, %v654
        %vm2483 = vcmp.eq.s32.totalorder %v2379, %v655
        %vm2484 = vcmp.eq.s32.totalorder %v2379, %v656
        %vm2485 = vcmp.eq.s32.totalorder %v2382, %v653
        %vm2486 = vcmp.eq.s32.totalorder %v2382, %v654
        %vm2487 = vcmp.eq.s32.totalorder %v2382, %v655
        %vm2488 = vcmp.eq.s32.totalorder %v2382, %v656
        %vm2489 = vcmp.eq.s32.totalorder %v2385, %v653
        %vm2490 = vcmp.eq.s32.totalorder %v2385, %v654
        %vm2491 = vcmp.eq.s32.totalorder %v2385, %v655
        %vm2492 = vcmp.eq.s32.totalorder %v2385, %v656
        %vm2493 = vcmp.eq.s32.totalorder %v2388, %v653
        %vm2494 = vcmp.eq.s32.totalorder %v2388, %v654
        %vm2495 = vcmp.eq.s32.totalorder %v2388, %v655
        %vm2496 = vcmp.eq.s32.totalorder %v2388, %v656
        %vm2497 = vcmp.eq.s32.totalorder %v2391, %v653
        %vm2498 = vcmp.eq.s32.totalorder %v2391, %v654
        %vm2499 = vcmp.eq.s32.totalorder %v2391, %v655
        %vm2500 = vcmp.eq.s32.totalorder %v2391, %v656
        %vm2501 = vcmp.eq.s32.totalorder %v2394, %v653
        %vm2502 = vcmp.eq.s32.totalorder %v2394, %v654
        %vm2503 = vcmp.eq.s32.totalorder %v2394, %v655
        %vm2504 = vcmp.eq.s32.totalorder %v2394, %v656
        %vm2505 = vcmp.eq.s32.totalorder %v2397, %v653
        %vm2506 = vcmp.eq.s32.totalorder %v2397, %v654
        %vm2507 = vcmp.eq.s32.totalorder %v2397, %v655
        %vm2508 = vcmp.eq.s32.totalorder %v2397, %v656
        %vm2509 = vcmp.eq.s32.totalorder %v2400, %v653
        %vm2510 = vcmp.eq.s32.totalorder %v2400, %v654
        %vm2511 = vcmp.eq.s32.totalorder %v2400, %v655
        %vm2512 = vcmp.eq.s32.totalorder %v2400, %v656
        %vm2513 = vcmp.eq.s32.totalorder %v2403, %v653
        %vm2514 = vcmp.eq.s32.totalorder %v2403, %v654
        %vm2515 = vcmp.eq.s32.totalorder %v2403, %v655
        %vm2516 = vcmp.eq.s32.totalorder %v2403, %v656
        %vm2517 = vcmp.eq.s32.totalorder %v2406, %v653
        %vm2518 = vcmp.eq.s32.totalorder %v2406, %v654
        %vm2519 = vcmp.eq.s32.totalorder %v2406, %v655
        %vm2520 = vcmp.eq.s32.totalorder %v2406, %v656
        %vm2521 = vcmp.eq.s32.totalorder %v2409, %v653
        %vm2522 = vcmp.eq.s32.totalorder %v2409, %v654
        %vm2523 = vcmp.eq.s32.totalorder %v2409, %v655
        %vm2524 = vcmp.eq.s32.totalorder %v2409, %v656
        %vm2525 = vcmp.eq.s32.totalorder %v2412, %v653
        %vm2526 = vcmp.eq.s32.totalorder %v2412, %v654
        %vm2527 = vcmp.eq.s32.totalorder %v2412, %v655
        %vm2528 = vcmp.eq.s32.totalorder %v2412, %v656
        %vm2529 = vcmp.eq.s32.totalorder %v2415, %v653
        %vm2530 = vcmp.eq.s32.totalorder %v2415, %v654
        %vm2531 = vcmp.eq.s32.totalorder %v2415, %v655
        %vm2532 = vcmp.eq.s32.totalorder %v2415, %v656
        %vm2533 = vcmp.eq.s32.totalorder %v2418, %v653
        %vm2534 = vcmp.eq.s32.totalorder %v2418, %v654
        %vm2535 = vcmp.eq.s32.totalorder %v2418, %v655
        %vm2536 = vcmp.eq.s32.totalorder %v2418, %v656
        %vm2537 = vcmp.eq.s32.totalorder %v2421, %v653
        %vm2538 = vcmp.eq.s32.totalorder %v2421, %v654
        %vm2539 = vcmp.eq.s32.totalorder %v2421, %v655
        %vm2540 = vcmp.eq.s32.totalorder %v2421, %v656
        %vm2541 = vcmp.eq.s32.totalorder %v2424, %v653
        %vm2542 = vcmp.eq.s32.totalorder %v2424, %v654
        %vm2543 = vcmp.eq.s32.totalorder %v2424, %v655
        %vm2544 = vcmp.eq.s32.totalorder %v2424, %v656
        %vm2545 = vcmp.eq.s32.totalorder %v2427, %v653
        %vm2546 = vcmp.eq.s32.totalorder %v2427, %v654
        %vm2547 = vcmp.eq.s32.totalorder %v2427, %v655
        %vm2548 = vcmp.eq.s32.totalorder %v2427, %v656
        %vm2549 = vcmp.eq.s32.totalorder %v2430, %v653
        %vm2550 = vcmp.eq.s32.totalorder %v2430, %v654
        %vm2551 = vcmp.eq.s32.totalorder %v2430, %v655
        %vm2552 = vcmp.eq.s32.totalorder %v2430, %v656
        %vm2553 = vcmp.eq.s32.totalorder %v2433, %v653
        %vm2554 = vcmp.eq.s32.totalorder %v2433, %v654
        %vm2555 = vcmp.eq.s32.totalorder %v2433, %v655
        %vm2556 = vcmp.eq.s32.totalorder %v2433, %v656
        %vm2557 = vcmp.eq.s32.totalorder %v2436, %v653
        %vm2558 = vcmp.eq.s32.totalorder %v2436, %v654
        %vm2559 = vcmp.eq.s32.totalorder %v2436, %v655
        %vm2560 = vcmp.eq.s32.totalorder %v2436, %v656
        %vm2561 = vcmp.eq.s32.totalorder %v2439, %v653
        %vm2562 = vcmp.eq.s32.totalorder %v2439, %v654
        %vm2563 = vcmp.eq.s32.totalorder %v2439, %v655
        %vm2564 = vcmp.eq.s32.totalorder %v2439, %v656
        %vm2565 = vcmp.eq.s32.totalorder %v2442, %v653
        %vm2566 = vcmp.eq.s32.totalorder %v2442, %v654
        %vm2567 = vcmp.eq.s32.totalorder %v2442, %v655
        %vm2568 = vcmp.eq.s32.totalorder %v2442, %v656
        %vm2569 = vcmp.eq.s32.totalorder %v2445, %v653
        %vm2570 = vcmp.eq.s32.totalorder %v2445, %v654
        %vm2571 = vcmp.eq.s32.totalorder %v2445, %v655
        %vm2572 = vcmp.eq.s32.totalorder %v2445, %v656
        %vm2573 = vcmp.eq.s32.totalorder %v2448, %v653
        %vm2574 = vcmp.eq.s32.totalorder %v2448, %v654
        %vm2575 = vcmp.eq.s32.totalorder %v2448, %v655
        %vm2576 = vcmp.eq.s32.totalorder %v2448, %v656
        %v2577 = vsel %vm2449, 1, 0
        %v2578 = vsel %vm2450, 1, 0
        %v2579 = vsel %vm2451, 1, 0
        %v2580 = vsel %vm2452, 1, 0
        %v2581 = vsel %vm2453, 1, 0
        %v2582 = vsel %vm2454, 1, 0
        %v2583 = vsel %vm2455, 1, 0
        %v2584 = vsel %vm2456, 1, 0
        %v2585 = vsel %vm2457, 1, 0
        %v2586 = vsel %vm2458, 1, 0
        %v2587 = vsel %vm2459, 1, 0
        %v2588 = vsel %vm2460, 1, 0
        %v2589 = vsel %vm2461, 1, 0
        %v2590 = vsel %vm2462, 1, 0
        %v2591 = vsel %vm2463, 1, 0
        %v2592 = vsel %vm2464, 1, 0
        %v2593 = vsel %vm2465, 1, 0
        %v2594 = vsel %vm2466, 1, 0
        %v2595 = vsel %vm2467, 1, 0
        %v2596 = vsel %vm2468, 1, 0
        %v2597 = vsel %vm2469, 1, 0
        %v2598 = vsel %vm2470, 1, 0
        %v2599 = vsel %vm2471, 1, 0
        %v2600 = vsel %vm2472, 1, 0
        %v2601 = vsel %vm2473, 1, 0
        %v2602 = vsel %vm2474, 1, 0
        %v2603 = vsel %vm2475, 1, 0
        %v2604 = vsel %vm2476, 1, 0
        %v2605 = vsel %vm2477, 1, 0
        %v2606 = vsel %vm2478, 1, 0
        %v2607 = vsel %vm2479, 1, 0
        %v2608 = vsel %vm2480, 1, 0
        %v2609 = vsel %vm2481, 1, 0
        %v2610 = vsel %vm2482, 1, 0
        %v2611 = vsel %vm2483, 1, 0
        %v2612 = vsel %vm2484, 1, 0
        %v2613 = vsel %vm2485, 1, 0
        %v2614 = vsel %vm2486, 1, 0
        %v2615 = vsel %vm2487, 1, 0
        %v2616 = vsel %vm2488, 1, 0
        %v2617 = vsel %vm2489, 1, 0
        %v2618 = vsel %vm2490, 1, 0
        %v2619 = vsel %vm2491, 1, 0
        %v2620 = vsel %vm2492, 1, 0
        %v2621 = vsel %vm2493, 1, 0
        %v2622 = vsel %vm2494, 1, 0
        %v2623 = vsel %vm2495, 1, 0
        %v2624 = vsel %vm2496, 1, 0
        %v2625 = vsel %vm2497, 1, 0
        %v2626 = vsel %vm2498, 1, 0
        %v2627 = vsel %vm2499, 1, 0
        %v2628 = vsel %vm2500, 1, 0
        %v2629 = vsel %vm2501, 1, 0
        %v2630 = vsel %vm2502, 1, 0
        %v2631 = vsel %vm2503, 1, 0
        %v2632 = vsel %vm2504, 1, 0
        %v2633 = vsel %vm2505, 1, 0
        %v2634 = vsel %vm2506, 1, 0
        %v2635 = vsel %vm2507, 1, 0
        %v2636 = vsel %vm2508, 1, 0
        %v2637 = vsel %vm2509, 1, 0
        %v2638 = vsel %vm2510, 1, 0
        %v2639 = vsel %vm2511, 1, 0
        %v2640 = vsel %vm2512, 1, 0
        %v2641 = vsel %vm2513, 1, 0
        %v2642 = vsel %vm2514, 1, 0
        %v2643 = vsel %vm2515, 1, 0
        %v2644 = vsel %vm2516, 1, 0
        %v2645 = vsel %vm2517, 1, 0
        %v2646 = vsel %vm2518, 1, 0
        %v2647 = vsel %vm2519, 1, 0
        %v2648 = vsel %vm2520, 1, 0
        %v2649 = vsel %vm2521, 1, 0
        %v2650 = vsel %vm2522, 1, 0
        %v2651 = vsel %vm2523, 1, 0
        %v2652 = vsel %vm2524, 1, 0
        %v2653 = vsel %vm2525, 1, 0
        %v2654 = vsel %vm2526, 1, 0
        %v2655 = vsel %vm2527, 1, 0
        %v2656 = vsel %vm2528, 1, 0
        %v2657 = vsel %vm2529, 1, 0
        %v2658 = vsel %vm2530, 1, 0
        %v2659 = vsel %vm2531, 1, 0
        %v2660 = vsel %vm2532, 1, 0
        %v2661 = vsel %vm2533, 1, 0
        %v2662 = vsel %vm2534, 1, 0
        %v2663 = vsel %vm2535, 1, 0
        %v2664 = vsel %vm2536, 1, 0
        %v2665 = vsel %vm2537, 1, 0
        %v2666 = vsel %vm2538, 1, 0
        %v2667 = vsel %vm2539, 1, 0
        %v2668 = vsel %vm2540, 1, 0
        %v2669 = vsel %vm2541, 1, 0
        %v2670 = vsel %vm2542, 1, 0
        %v2671 = vsel %vm2543, 1, 0
        %v2672 = vsel %vm2544, 1, 0
        %v2673 = vsel %vm2545, 1, 0
        %v2674 = vsel %vm2546, 1, 0
        %v2675 = vsel %vm2547, 1, 0
        %v2676 = vsel %vm2548, 1, 0
        %v2677 = vsel %vm2549, 1, 0
        %v2678 = vsel %vm2550, 1, 0
        %v2679 = vsel %vm2551, 1, 0
        %v2680 = vsel %vm2552, 1, 0
        %v2681 = vsel %vm2553, 1, 0
        %v2682 = vsel %vm2554, 1, 0
        %v2683 = vsel %vm2555, 1, 0
        %v2684 = vsel %vm2556, 1, 0
        %v2685 = vsel %vm2557, 1, 0
        %v2686 = vsel %vm2558, 1, 0
        %v2687 = vsel %vm2559, 1, 0
        %v2688 = vsel %vm2560, 1, 0
        %v2689 = vsel %vm2561, 1, 0
        %v2690 = vsel %vm2562, 1, 0
        %v2691 = vsel %vm2563, 1, 0
        %v2692 = vsel %vm2564, 1, 0
        %v2693 = vsel %vm2565, 1, 0
        %v2694 = vsel %vm2566, 1, 0
        %v2695 = vsel %vm2567, 1, 0
        %v2696 = vsel %vm2568, 1, 0
        %v2697 = vsel %vm2569, 1, 0
        %v2698 = vsel %vm2570, 1, 0
        %v2699 = vsel %vm2571, 1, 0
        %v2700 = vsel %vm2572, 1, 0
        %v2701 = vsel %vm2573, 1, 0
        %v2702 = vsel %vm2574, 1, 0
        %v2703 = vsel %vm2575, 1, 0
        %v2704 = vsel %vm2576, 1, 0
        %v2705 = vcvt.s32.f32 %v2577
        %v2706 = vcvt.s32.f32 %v2578
        %v2707 = vcvt.s32.f32 %v2579
        %v2708 = vcvt.s32.f32 %v2580
        %v2709 = vcvt.s32.f32 %v2581
        %v2710 = vcvt.s32.f32 %v2582
        %v2711 = vcvt.s32.f32 %v2583
        %v2712 = vcvt.s32.f32 %v2584
        %v2713 = vcvt.s32.f32 %v2585
        %v2714 = vcvt.s32.f32 %v2586
        %v2715 = vcvt.s32.f32 %v2587
        %v2716 = vcvt.s32.f32 %v2588
        %v2717 = vcvt.s32.f32 %v2589
        %v2718 = vcvt.s32.f32 %v2590
        %v2719 = vcvt.s32.f32 %v2591
        %v2720 = vcvt.s32.f32 %v2592
        %v2721 = vcvt.s32.f32 %v2593
        %v2722 = vcvt.s32.f32 %v2594
        %v2723 = vcvt.s32.f32 %v2595
        %v2724 = vcvt.s32.f32 %v2596
        %v2725 = vcvt.s32.f32 %v2597
        %v2726 = vcvt.s32.f32 %v2598
        %v2727 = vcvt.s32.f32 %v2599
        %v2728 = vcvt.s32.f32 %v2600
        %v2729 = vcvt.s32.f32 %v2601
        %v2730 = vcvt.s32.f32 %v2602
        %v2731 = vcvt.s32.f32 %v2603
        %v2732 = vcvt.s32.f32 %v2604
        %v2733 = vcvt.s32.f32 %v2605
        %v2734 = vcvt.s32.f32 %v2606
        %v2735 = vcvt.s32.f32 %v2607
        %v2736 = vcvt.s32.f32 %v2608
        %v2737 = vcvt.s32.f32 %v2609
        %v2738 = vcvt.s32.f32 %v2610
        %v2739 = vcvt.s32.f32 %v2611
        %v2740 = vcvt.s32.f32 %v2612
        %v2741 = vcvt.s32.f32 %v2613
        %v2742 = vcvt.s32.f32 %v2614
        %v2743 = vcvt.s32.f32 %v2615
        %v2744 = vcvt.s32.f32 %v2616
        %v2745 = vcvt.s32.f32 %v2617
        %v2746 = vcvt.s32.f32 %v2618
        %v2747 = vcvt.s32.f32 %v2619
        %v2748 = vcvt.s32.f32 %v2620
        %v2749 = vcvt.s32.f32 %v2621
        %v2750 = vcvt.s32.f32 %v2622
        %v2751 = vcvt.s32.f32 %v2623
        %v2752 = vcvt.s32.f32 %v2624
        %v2753 = vcvt.s32.f32 %v2625
        %v2754 = vcvt.s32.f32 %v2626
        %v2755 = vcvt.s32.f32 %v2627
        %v2756 = vcvt.s32.f32 %v2628
        %v2757 = vcvt.s32.f32 %v2629
        %v2758 = vcvt.s32.f32 %v2630
        %v2759 = vcvt.s32.f32 %v2631
        %v2760 = vcvt.s32.f32 %v2632
        %v2761 = vcvt.s32.f32 %v2633
        %v2762 = vcvt.s32.f32 %v2634
        %v2763 = vcvt.s32.f32 %v2635
        %v2764 = vcvt.s32.f32 %v2636
        %v2765 = vcvt.s32.f32 %v2637
        %v2766 = vcvt.s32.f32 %v2638
        %v2767 = vcvt.s32.f32 %v2639
        %v2768 = vcvt.s32.f32 %v2640
        %v2769 = vcvt.s32.f32 %v2641
        %v2770 = vcvt.s32.f32 %v2642
        %v2771 = vcvt.s32.f32 %v2643
        %v2772 = vcvt.s32.f32 %v2644
        %v2773 = vcvt.s32.f32 %v2645
        %v2774 = vcvt.s32.f32 %v2646
        %v2775 = vcvt.s32.f32 %v2647
        %v2776 = vcvt.s32.f32 %v2648
        %v2777 = vcvt.s32.f32 %v2649
        %v2778 = vcvt.s32.f32 %v2650
        %v2779 = vcvt.s32.f32 %v2651
        %v2780 = vcvt.s32.f32 %v2652
        %v2781 = vcvt.s32.f32 %v2653
        %v2782 = vcvt.s32.f32 %v2654
        %v2783 = vcvt.s32.f32 %v2655
        %v2784 = vcvt.s32.f32 %v2656
        %v2785 = vcvt.s32.f32 %v2657
        %v2786 = vcvt.s32.f32 %v2658
        %v2787 = vcvt.s32.f32 %v2659
        %v2788 = vcvt.s32.f32 %v2660
        %v2789 = vcvt.s32.f32 %v2661
        %v2790 = vcvt.s32.f32 %v2662
        %v2791 = vcvt.s32.f32 %v2663
        %v2792 = vcvt.s32.f32 %v2664
        %v2793 = vcvt.s32.f32 %v2665
        %v2794 = vcvt.s32.f32 %v2666
        %v2795 = vcvt.s32.f32 %v2667
        %v2796 = vcvt.s32.f32 %v2668
        %v2797 = vcvt.s32.f32 %v2669
        %v2798 = vcvt.s32.f32 %v2670
        %v2799 = vcvt.s32.f32 %v2671
        %v2800 = vcvt.s32.f32 %v2672
        %v2801 = vcvt.s32.f32 %v2673
        %v2802 = vcvt.s32.f32 %v2674
        %v2803 = vcvt.s32.f32 %v2675
        %v2804 = vcvt.s32.f32 %v2676
        %v2805 = vcvt.s32.f32 %v2677
        %v2806 = vcvt.s32.f32 %v2678
        %v2807 = vcvt.s32.f32 %v2679
        %v2808 = vcvt.s32.f32 %v2680
        %v2809 = vcvt.s32.f32 %v2681
        %v2810 = vcvt.s32.f32 %v2682
        %v2811 = vcvt.s32.f32 %v2683
        %v2812 = vcvt.s32.f32 %v2684
        %v2813 = vcvt.s32.f32 %v2685
        %v2814 = vcvt.s32.f32 %v2686
        %v2815 = vcvt.s32.f32 %v2687
        %v2816 = vcvt.s32.f32 %v2688
        %v2817 = vcvt.s32.f32 %v2689
        %v2818 = vcvt.s32.f32 %v2690
        %v2819 = vcvt.s32.f32 %v2691
        %v2820 = vcvt.s32.f32 %v2692
        %v2821 = vcvt.s32.f32 %v2693
        %v2822 = vcvt.s32.f32 %v2694
        %v2823 = vcvt.s32.f32 %v2695
        %v2824 = vcvt.s32.f32 %v2696
        %v2825 = vcvt.s32.f32 %v2697
        %v2826 = vcvt.s32.f32 %v2698
        %v2827 = vcvt.s32.f32 %v2699
        %v2828 = vcvt.s32.f32 %v2700
        %v2829 = vcvt.s32.f32 %v2701
        %v2830 = vcvt.s32.f32 %v2702
        %v2831 = vcvt.s32.f32 %v2703
        %v2832 = vcvt.s32.f32 %v2704
        %v2833 = vadd.f32 %v2225, %v2705
        %v2834 = vadd.f32 %v2226, %v2706
        %v2835 = vadd.f32 %v2227, %v2707
        %v2836 = vadd.f32 %v2228, %v2708
        %v2837 = vadd.f32 %v2229, %v2709
        %v2838 = vadd.f32 %v2230, %v2710
        %v2839 = vadd.f32 %v2231, %v2711
        %v2840 = vadd.f32 %v2232, %v2712
        %v2841 = vadd.f32 %v2233, %v2713
        %v2842 = vadd.f32 %v2234, %v2714
        %v2843 = vadd.f32 %v2235, %v2715
        %v2844 = vadd.f32 %v2236, %v2716
        %v2845 = vadd.f32 %v2237, %v2717
        %v2846 = vadd.f32 %v2238, %v2718
        %v2847 = vadd.f32 %v2239, %v2719
        %v2848 = vadd.f32 %v2240, %v2720
        %v2849 = vadd.f32 %v2241, %v2721
        %v2850 = vadd.f32 %v2242, %v2722
        %v2851 = vadd.f32 %v2243, %v2723
        %v2852 = vadd.f32 %v2244, %v2724
        %v2853 = vadd.f32 %v2245, %v2725
        %v2854 = vadd.f32 %v2246, %v2726
        %v2855 = vadd.f32 %v2247, %v2727
        %v2856 = vadd.f32 %v2248, %v2728
        %v2857 = vadd.f32 %v2249, %v2729
        %v2858 = vadd.f32 %v2250, %v2730
        %v2859 = vadd.f32 %v2251, %v2731
        %v2860 = vadd.f32 %v2252, %v2732
        %v2861 = vadd.f32 %v2253, %v2733
        %v2862 = vadd.f32 %v2254, %v2734
        %v2863 = vadd.f32 %v2255, %v2735
        %v2864 = vadd.f32 %v2256, %v2736
        %v2865 = vadd.f32 %v2257, %v2737
        %v2866 = vadd.f32 %v2258, %v2738
        %v2867 = vadd.f32 %v2259, %v2739
        %v2868 = vadd.f32 %v2260, %v2740
        %v2869 = vadd.f32 %v2261, %v2741
        %v2870 = vadd.f32 %v2262, %v2742
        %v2871 = vadd.f32 %v2263, %v2743
        %v2872 = vadd.f32 %v2264, %v2744
        %v2873 = vadd.f32 %v2265, %v2745
        %v2874 = vadd.f32 %v2266, %v2746
        %v2875 = vadd.f32 %v2267, %v2747
        %v2876 = vadd.f32 %v2268, %v2748
        %v2877 = vadd.f32 %v2269, %v2749
        %v2878 = vadd.f32 %v2270, %v2750
        %v2879 = vadd.f32 %v2271, %v2751
        %v2880 = vadd.f32 %v2272, %v2752
        %v2881 = vadd.f32 %v2273, %v2753
        %v2882 = vadd.f32 %v2274, %v2754
        %v2883 = vadd.f32 %v2275, %v2755
        %v2884 = vadd.f32 %v2276, %v2756
        %v2885 = vadd.f32 %v2277, %v2757
        %v2886 = vadd.f32 %v2278, %v2758
        %v2887 = vadd.f32 %v2279, %v2759
        %v2888 = vadd.f32 %v2280, %v2760
        %v2889 = vadd.f32 %v2281, %v2761
        %v2890 = vadd.f32 %v2282, %v2762
        %v2891 = vadd.f32 %v2283, %v2763
        %v2892 = vadd.f32 %v2284, %v2764
        %v2893 = vadd.f32 %v2285, %v2765
        %v2894 = vadd.f32 %v2286, %v2766
        %v2895 = vadd.f32 %v2287, %v2767
        %v2896 = vadd.f32 %v2288, %v2768
        %v2897 = vadd.f32 %v2289, %v2769
        %v2898 = vadd.f32 %v2290, %v2770
        %v2899 = vadd.f32 %v2291, %v2771
        %v2900 = vadd.f32 %v2292, %v2772
        %v2901 = vadd.f32 %v2293, %v2773
        %v2902 = vadd.f32 %v2294, %v2774
        %v2903 = vadd.f32 %v2295, %v2775
        %v2904 = vadd.f32 %v2296, %v2776
        %v2905 = vadd.f32 %v2297, %v2777
        %v2906 = vadd.f32 %v2298, %v2778
        %v2907 = vadd.f32 %v2299, %v2779
        %v2908 = vadd.f32 %v2300, %v2780
        %v2909 = vadd.f32 %v2301, %v2781
        %v2910 = vadd.f32 %v2302, %v2782
        %v2911 = vadd.f32 %v2303, %v2783
        %v2912 = vadd.f32 %v2304, %v2784
        %v2913 = vadd.f32 %v2305, %v2785
        %v2914 = vadd.f32 %v2306, %v2786
        %v2915 = vadd.f32 %v2307, %v2787
        %v2916 = vadd.f32 %v2308, %v2788
        %v2917 = vadd.f32 %v2309, %v2789
        %v2918 = vadd.f32 %v2310, %v2790
        %v2919 = vadd.f32 %v2311, %v2791
        %v2920 = vadd.f32 %v2312, %v2792
        %v2921 = vadd.f32 %v2313, %v2793
        %v2922 = vadd.f32 %v2314, %v2794
        %v2923 = vadd.f32 %v2315, %v2795
        %v2924 = vadd.f32 %v2316, %v2796
        %v2925 = vadd.f32 %v2317, %v2797
        %v2926 = vadd.f32 %v2318, %v2798
        %v2927 = vadd.f32 %v2319, %v2799
        %v2928 = vadd.f32 %v2320, %v2800
        %v2929 = vadd.f32 %v2321, %v2801
        %v2930 = vadd.f32 %v2322, %v2802
        %v2931 = vadd.f32 %v2323, %v2803
        %v2932 = vadd.f32 %v2324, %v2804
        %v2933 = vadd.f32 %v2325, %v2805
        %v2934 = vadd.f32 %v2326, %v2806
        %v2935 = vadd.f32 %v2327, %v2807
        %v2936 = vadd.f32 %v2328, %v2808
        %v2937 = vadd.f32 %v2329, %v2809
        %v2938 = vadd.f32 %v2330, %v2810
        %v2939 = vadd.f32 %v2331, %v2811
        %v2940 = vadd.f32 %v2332, %v2812
        %v2941 = vadd.f32 %v2333, %v2813
        %v2942 = vadd.f32 %v2334, %v2814
        %v2943 = vadd.f32 %v2335, %v2815
        %v2944 = vadd.f32 %v2336, %v2816
        %v2945 = vadd.f32 %v2337, %v2817
        %v2946 = vadd.f32 %v2338, %v2818
        %v2947 = vadd.f32 %v2339, %v2819
        %v2948 = vadd.f32 %v2340, %v2820
        %v2949 = vadd.f32 %v2341, %v2821
        %v2950 = vadd.f32 %v2342, %v2822
        %v2951 = vadd.f32 %v2343, %v2823
        %v2952 = vadd.f32 %v2344, %v2824
        %v2953 = vadd.f32 %v2345, %v2825
        %v2954 = vadd.f32 %v2346, %v2826
        %v2955 = vadd.f32 %v2347, %v2827
        %v2956 = vadd.f32 %v2348, %v2828
        %v2957 = vadd.f32 %v2349, %v2829
        %v2958 = vadd.f32 %v2350, %v2830
        %v2959 = vadd.f32 %v2351, %v2831
        %v2960 = vadd.f32 %v2352, %v2832
        %v2961 = vld [vmem:[%s0] sm:$0xff]
        %v2962 = vld [vmem:[%s0 + $0x8] sm:$0xff]
        %v2963 = vld [vmem:[%s0 + $0x10] sm:$0xff]
        %v2964 = vld [vmem:[%s0 + $0x18] sm:$0xff]
        %v2965 = vld [vmem:[%s0 + $0x20] sm:$0xff]
        %v2966 = vld [vmem:[%s0 + $0x28] sm:$0xff]
        %v2967 = vld [vmem:[%s0 + $0x30] sm:$0xff]
        %v2968 = vld [vmem:[%s0 + $0x38] sm:$0xff]
        %v2969 = vld [vmem:[%s0 + $0x40] sm:$0xff]
        %v2970 = vld [vmem:[%s0 + $0x48] sm:$0xff]
        %v2971 = vld [vmem:[%s0 + $0x50] sm:$0xff]
        %v2972 = vld [vmem:[%s0 + $0x58] sm:$0xff]
        %v2973 = vld [vmem:[%s0 + $0x60] sm:$0xff]
        %v2974 = vld [vmem:[%s0 + $0x68] sm:$0xff]
        %v2975 = vld [vmem:[%s0 + $0x70] sm:$0xff]
        %v2976 = vld [vmem:[%s0 + $0x78] sm:$0xff]
        %v2977 = vld [vmem:[%s0 + $0x80] sm:$0xff]
        %v2978 = vld [vmem:[%s0 + $0x88] sm:$0xff]
        %v2979 = vld [vmem:[%s0 + $0x90] sm:$0xff]
        %v2980 = vld [vmem:[%s0 + $0x98] sm:$0xff]
        %v2981 = vld [vmem:[%s0 + $0xa0] sm:$0xff]
        %v2982 = vld [vmem:[%s0 + $0xa8] sm:$0xff]
        %v2983 = vld [vmem:[%s0 + $0xb0] sm:$0xff]
        %v2984 = vld [vmem:[%s0 + $0xb8] sm:$0xff]
        %v2985 = vld [vmem:[%s0 + $0xc0] sm:$0xff]
        %v2986 = vld [vmem:[%s0 + $0xc8] sm:$0xff]
        %v2987 = vld [vmem:[%s0 + $0xd0] sm:$0xff]
        %v2988 = vld [vmem:[%s0 + $0xd8] sm:$0xff]
        %v2989 = vld [vmem:[%s0 + $0xe0] sm:$0xff]
        %v2990 = vld [vmem:[%s0 + $0xe8] sm:$0xff]
        %v2991 = vld [vmem:[%s0 + $0xf0] sm:$0xff]
        %v2992 = vld [vmem:[%s0 + $0xf8] sm:$0xff]
        %v2993 = vld [vmem:[%s0 + $0x100] sm:$0xff]
        %v2994 = vld [vmem:[%s0 + $0x108] sm:$0xff]
        %v2995 = vld [vmem:[%s0 + $0x110] sm:$0xff]
        %v2996 = vld [vmem:[%s0 + $0x118] sm:$0xff]
        %v2997 = vld [vmem:[%s0 + $0x120] sm:$0xff]
        %v2998 = vld [vmem:[%s0 + $0x128] sm:$0xff]
        %v2999 = vld [vmem:[%s0 + $0x130] sm:$0xff]
        %v3000 = vld [vmem:[%s0 + $0x138] sm:$0xff]
        %v3001 = vld [vmem:[%s0 + $0x140] sm:$0xff]
        %v3002 = vld [vmem:[%s0 + $0x148] sm:$0xff]
        %v3003 = vld [vmem:[%s0 + $0x150] sm:$0xff]
        %v3004 = vld [vmem:[%s0 + $0x158] sm:$0xff]
        %v3005 = vld [vmem:[%s0 + $0x160] sm:$0xff]
        %v3006 = vld [vmem:[%s0 + $0x168] sm:$0xff]
        %v3007 = vld [vmem:[%s0 + $0x170] sm:$0xff]
        %v3008 = vld [vmem:[%s0 + $0x178] sm:$0xff]
        %v3009 = vld [vmem:[%s0 + $0x180] sm:$0xff]
        %v3010 = vld [vmem:[%s0 + $0x188] sm:$0xff]
        %v3011 = vld [vmem:[%s0 + $0x190] sm:$0xff]
        %v3012 = vld [vmem:[%s0 + $0x198] sm:$0xff]
        %v3013 = vld [vmem:[%s0 + $0x1a0] sm:$0xff]
        %v3014 = vld [vmem:[%s0 + $0x1a8] sm:$0xff]
        %v3015 = vld [vmem:[%s0 + $0x1b0] sm:$0xff]
        %v3016 = vld [vmem:[%s0 + $0x1b8] sm:$0xff]
        %v3017 = vld [vmem:[%s0 + $0x1c0] sm:$0xff]
        %v3018 = vld [vmem:[%s0 + $0x1c8] sm:$0xff]
        %v3019 = vld [vmem:[%s0 + $0x1d0] sm:$0xff]
        %v3020 = vld [vmem:[%s0 + $0x1d8] sm:$0xff]
        %v3021 = vld [vmem:[%s0 + $0x1e0] sm:$0xff]
        %v3022 = vld [vmem:[%s0 + $0x1e8] sm:$0xff]
        %v3023 = vld [vmem:[%s0 + $0x1f0] sm:$0xff]
        %v3024 = vld [vmem:[%s0 + $0x1f8] sm:$0xff]
        %3025 = vmatprep.subr.mxu0 0.0
        %3026 = vmatpush1.msra.mxu0 %v2961
        %3027 = vmatprep.subr.mxu0 0.0
        %3028 = vmatpush1.msra.mxu0 %v2962
        %3029 = vmatprep.subr.mxu0 0.0
        %3030 = vmatpush1.msra.mxu0 %v2963
        %3031 = vmatprep.subr.mxu0 0.0
        %3032 = vmatpush1.msra.mxu0 %v2964
        %3033 = vmatprep.subr.mxu0 0.0
        %3034 = vmatpush1.msra.mxu0 %v2965
        %3035 = vmatprep.subr.mxu0 0.0
        %3036 = vmatpush1.msra.mxu0 %v2966
        %3037 = vmatprep.subr.mxu0 0.0
        %3038 = vmatpush1.msra.mxu0 %v2967
        %3039 = vmatprep.subr.mxu0 0.0
        %3040 = vmatpush1.msra.mxu0 %v2968
        %3041 = vmatprep.subr.mxu0 0.0
        %3042 = vmatpush1.msra.mxu0 %v2969
        %3043 = vmatprep.subr.mxu0 0.0
        %3044 = vmatpush1.msra.mxu0 %v2970
        %3045 = vmatprep.subr.mxu0 0.0
        %3046 = vmatpush1.msra.mxu0 %v2971
        %3047 = vmatprep.subr.mxu0 0.0
        %3048 = vmatpush1.msra.mxu0 %v2972
        %3049 = vmatprep.subr.mxu0 0.0
        %3050 = vmatpush1.msra.mxu0 %v2973
        %3051 = vmatprep.subr.mxu0 0.0
        %3052 = vmatpush1.msra.mxu0 %v2974
        %3053 = vmatprep.subr.mxu0 0.0
        %3054 = vmatpush1.msra.mxu0 %v2975
        %3055 = vmatprep.subr.mxu0 0.0
        %3056 = vmatpush1.msra.mxu0 %v2976
        %3057 = vmatprep.subr.mxu0 0.0
        %3058 = vmatpush1.msra.mxu0 %v2977
        %3059 = vmatprep.subr.mxu0 0.0
        %3060 = vmatpush1.msra.mxu0 %v2978
        %3061 = vmatprep.subr.mxu0 0.0
        %3062 = vmatpush1.msra.mxu0 %v2979
        %3063 = vmatprep.subr.mxu0 0.0
        %3064 = vmatpush1.msra.mxu0 %v2980
        %3065 = vmatprep.subr.mxu0 0.0
        %3066 = vmatpush1.msra.mxu0 %v2981
        %3067 = vmatprep.subr.mxu0 0.0
        %3068 = vmatpush1.msra.mxu0 %v2982
        %3069 = vmatprep.subr.mxu0 0.0
        %3070 = vmatpush1.msra.mxu0 %v2983
        %3071 = vmatprep.subr.mxu0 0.0
        %3072 = vmatpush1.msra.mxu0 %v2984
        %3073 = vmatprep.subr.mxu0 0.0
        %3074 = vmatpush1.msra.mxu0 %v2985
        %3075 = vmatprep.subr.mxu0 0.0
        %3076 = vmatpush1.msra.mxu0 %v2986
        %3077 = vmatprep.subr.mxu0 0.0
        %3078 = vmatpush1.msra.mxu0 %v2987
        %3079 = vmatprep.subr.mxu0 0.0
        %3080 = vmatpush1.msra.mxu0 %v2988
        %3081 = vmatprep.subr.mxu0 0.0
        %3082 = vmatpush1.msra.mxu0 %v2989
        %3083 = vmatprep.subr.mxu0 0.0
        %3084 = vmatpush1.msra.mxu0 %v2990
        %3085 = vmatprep.subr.mxu0 0.0
        %3086 = vmatpush1.msra.mxu0 %v2991
        %3087 = vmatprep.subr.mxu0 0.0
        %3088 = vmatpush1.msra.mxu0 %v2992
        %3089 = vmatprep.mubr.f32.mxu0 %v2834
        %3090 = vmatmul.mubr.f32.gmra.mrb[0].mxu0 %v2833
        %v3091 = vpop.f32.mrb[0].mxu0
        %v3092 = vadd.f32 0.0, %v3091
        %v3093 = vpop.f32.mrb[0].mxu0
        %3094 = vmatprep.mubr.f32.mxu0 %v2838
        %3095 = vmatmul.mubr.f32.gmra.mrb[0].mxu0 %v2837
        %v3096 = vpop.f32.mrb[0].mxu0
        %v3097 = vadd.f32 0.0, %v3096
        %v3098 = vpop.f32.mrb[0].mxu0
        %3099 = vmatprep.mubr.f32.mxu0 %v2842
        %3100 = vmatmul.mubr.f32.gmra.mrb[0].mxu0 %v2841
        %v3101 = vpop.f32.mrb[0].mxu0
        %v3102 = vadd.f32 0.0, %v3101
        %v3103 = vpop.f32.mrb[0].mxu0
        %3104 = vmatprep.mubr.f32.mxu0 %v2846
        %3105 = vmatmul.mubr.f32.gmra.mrb[0].mxu0 %v2845
        %v3106 = vpop.f32.mrb[0].mxu0
        %v3107 = vadd.f32 0.0, %v3106
        %v3108 = vpop.f32.mrb[0].mxu0
        %3109 = vmatprep.mubr.f32.mxu0 %v2850
        %3110 = vmatmul.mubr.f32.gmra.mrb[0].mxu0 %v2849
        %v3111 = vpop.f32.mrb[0].mxu0
        %v3112 = vadd.f32 0.0, %v3111
        %v3113 = vpop.f32.mrb[0].mxu0
        %3114 = vmatprep.mubr.f32.mxu0 %v2854
        %3115 = vmatmul.mubr.f32.gmra.mrb[0].mxu0 %v2853
        %v3116 = vpop.f32.mrb[0].mxu0
        %v3117 = vadd.f32 0.0, %v3116
        %v3118 = vpop.f32.mrb[0].mxu0
        %3119 = vmatprep.mubr.f32.mxu0 %v2858
        %3120 = vmatmul.mubr.f32.gmra.mrb[0].mxu0 %v2857
        %v3121 = vpop.f32.mrb[0].mxu0
        %v3122 = vadd.f32 0.0, %v3121
        %v3123 = vpop.f32.mrb[0].mxu0
        %3124 = vmatprep.mubr.f32.mxu0 %v2862
        %3125 = vmatmul.mubr.f32.gmra.mrb[0].mxu0 %v2861
        %v3126 = vpop.f32.mrb[0].mxu0
        %v3127 = vadd.f32 0.0, %v3126
        %v3128 = vpop.f32.mrb[0].mxu0
        %3129 = vmatprep.mubr.f32.mxu0 %v2866
        %3130 = vmatmul.mubr.f32.gmra.mrb[0].mxu0 %v2865
        %v3131 = vpop.f32.mrb[0].mxu0
        %v3132 = vadd.f32 0.0, %v3131
        %v3133 = vpop.f32.mrb[0].mxu0
        %3134 = vmatprep.mubr.f32.mxu0 %v2870
        %3135 = vmatmul.mubr.f32.gmra.mrb[0].mxu0 %v2869
        %v3136 = vpop.f32.mrb[0].mxu0
        %v3137 = vadd.f32 0.0, %v3136
        %v3138 = vpop.f32.mrb[0].mxu0
        %3139 = vmatprep.mubr.f32.mxu0 %v2874
        %3140 = vmatmul.mubr.f32.gmra.mrb[0].mxu0 %v2873
        %v3141 = vpop.f32.mrb[0].mxu0
        %v3142 = vadd.f32 0.0, %v3141
        %v3143 = vpop.f32.mrb[0].mxu0
        %3144 = vmatprep.mubr.f32.mxu0 %v2878
        %3145 = vmatmul.mubr.f32.gmra.mrb[0].mxu0 %v2877
        %v3146 = vpop.f32.mrb[0].mxu0
        %v3147 = vadd.f32 0.0, %v3146
        %v3148 = vpop.f32.mrb[0].mxu0
        %3149 = vmatprep.mubr.f32.mxu0 %v2882
        %3150 = vmatmul.mubr.f32.gmra.mrb[0].mxu0 %v2881
        %v3151 = vpop.f32.mrb[0].mxu0
        %v3152 = vadd.f32 0.0, %v3151
        %v3153 = vpop.f32.mrb[0].mxu0
        %3154 = vmatprep.mubr.f32.mxu0 %v2886
        %3155 = vmatmul.mubr.f32.gmra.mrb[0].mxu0 %v2885
        %v3156 = vpop.f32.mrb[0].mxu0
        %v3157 = vadd.f32 0.0, %v3156
        %v3158 = vpop.f32.mrb[0].mxu0
        %3159 = vmatprep.mubr.f32.mxu0 %v2890
        %3160 = vmatmul.mubr.f32.gmra.mrb[0].mxu0 %v2889
        %v3161 = vpop.f32.mrb[0].mxu0
        %v3162 = vadd.f32 0.0, %v3161
        %v3163 = vpop.f32.mrb[0].mxu0
        %3164 = vmatprep.mubr.f32.mxu0 %v2894
        %3165 = vmatmul.mubr.f32.gmra.mrb[0].mxu0 %v2893
        %v3166 = vpop.f32.mrb[0].mxu0
        %v3167 = vadd.f32 0.0, %v3166
        %v3168 = vpop.f32.mrb[0].mxu0
        %3169 = vmatprep.mubr.f32.mxu0 %v2898
        %3170 = vmatmul.mubr.f32.gmra.mrb[0].mxu0 %v2897
        %v3171 = vpop.f32.mrb[0].mxu0
        %v3172 = vadd.f32 0.0, %v3171
        %v3173 = vpop.f32.mrb[0].mxu0
        %3174 = vmatprep.mubr.f32.mxu0 %v2902
        %3175 = vmatmul.mubr.f32.gmra.mrb[0].mxu0 %v2901
        %v3176 = vpop.f32.mrb[0].mxu0
        %v3177 = vadd.f32 0.0, %v3176
        %v3178 = vpop.f32.mrb[0].mxu0
        %3179 = vmatprep.mubr.f32.mxu0 %v2906
        %3180 = vmatmul.mubr.f32.gmra.mrb[0].mxu0 %v2905
        %v3181 = vpop.f32.mrb[0].mxu0
        %v3182 = vadd.f32 0.0, %v3181
        %v3183 = vpop.f32.mrb[0].mxu0
        %3184 = vmatprep.mubr.f32.mxu0 %v2910
        %3185 = vmatmul.mubr.f32.gmra.mrb[0].mxu0 %v2909
        %v3186 = vpop.f32.mrb[0].mxu0
        %v3187 = vadd.f32 0.0, %v3186
        %v3188 = vpop.f32.mrb[0].mxu0
        %3189 = vmatprep.mubr.f32.mxu0 %v2914
        %3190 = vmatmul.mubr.f32.gmra.mrb[0].mxu0 %v2913
        %v3191 = vpop.f32.mrb[0].mxu0
        %v3192 = vadd.f32 0.0, %v3191
        %v3193 = vpop.f32.mrb[0].mxu0
        %3194 = vmatprep.mubr.f32.mxu0 %v2918
        %3195 = vmatmul.mubr.f32.gmra.mrb[0].mxu0 %v2917
        %v3196 = vpop.f32.mrb[0].mxu0
        %v3197 = vadd.f32 0.0, %v3196
        %v3198 = vpop.f32.mrb[0].mxu0
        %3199 = vmatprep.mubr.f32.mxu0 %v2922
        %3200 = vmatmul.mubr.f32.gmra.mrb[0].mxu0 %v2921
        %v3201 = vpop.f32.mrb[0].mxu0
        %v3202 = vadd.f32 0.0, %v3201
        %v3203 = vpop.f32.mrb[0].mxu0
        %3204 = vmatprep.mubr.f32.mxu0 %v2926
        %3205 = vmatmul.mubr.f32.gmra.mrb[0].mxu0 %v2925
        %v3206 = vpop.f32.mrb[0].mxu0
        %v3207 = vadd.f32 0.0, %v3206
        %v3208 = vpop.f32.mrb[0].mxu0
        %3209 = vmatprep.mubr.f32.mxu0 %v2930
        %3210 = vmatmul.mubr.f32.gmra.mrb[0].mxu0 %v2929
        %v3211 = vpop.f32.mrb[0].mxu0
        %v3212 = vadd.f32 0.0, %v3211
        %v3213 = vpop.f32.mrb[0].mxu0
        %3214 = vmatprep.mubr.f32.mxu0 %v2934
        %3215 = vmatmul.mubr.f32.gmra.mrb[0].mxu0 %v2933
        %v3216 = vpop.f32.mrb[0].mxu0
        %v3217 = vadd.f32 0.0, %v3216
        %v3218 = vpop.f32.mrb[0].mxu0
        %3219 = vmatprep.mubr.f32.mxu0 %v2938
        %3220 = vmatmul.mubr.f32.gmra.mrb[0].mxu0 %v2937
        %v3221 = vpop.f32.mrb[0].mxu0
        %v3222 = vadd.f32 0.0, %v3221
        %v3223 = vpop.f32.mrb[0].mxu0
        %3224 = vmatprep.mubr.f32.mxu0 %v2942
        %3225 = vmatmul.mubr.f32.gmra.mrb[0].mxu0 %v2941
        %v3226 = vpop.f32.mrb[0].mxu0
        %v3227 = vadd.f32 0.0, %v3226
        %v3228 = vpop.f32.mrb[0].mxu0
        %3229 = vmatprep.mubr.f32.mxu0 %v2946
        %3230 = vmatmul.mubr.f32.gmra.mrb[0].mxu0 %v2945
        %v3231 = vpop.f32.mrb[0].mxu0
        %v3232 = vadd.f32 0.0, %v3231
        %v3233 = vpop.f32.mrb[0].mxu0
        %3234 = vmatprep.mubr.f32.mxu0 %v2950
        %3235 = vmatmul.mubr.f32.gmra.mrb[0].mxu0 %v2949
        %v3236 = vpop.f32.mrb[0].mxu0
        %v3237 = vadd.f32 0.0, %v3236
        %v3238 = vpop.f32.mrb[0].mxu0
        %3239 = vmatprep.mubr.f32.mxu0 %v2954
        %3240 = vmatmul.mubr.f32.gmra.mrb[0].mxu0 %v2953
        %v3241 = vpop.f32.mrb[0].mxu0
        %v3242 = vadd.f32 0.0, %v3241
        %v3243 = vpop.f32.mrb[0].mxu0
        %3244 = vmatprep.mubr.f32.mxu0 %v2958
        %3245 = vmatmul.mubr.f32.gmra.mrb[0].mxu0 %v2957
        %v3246 = vpop.f32.mrb[0].mxu0
        %v3247 = vadd.f32 0.0, %v3246
        %v3248 = vpop.f32.mrb[0].mxu0
        %3249 = vdwg.mxu0
        %3250 = vmatprep.subr.mxu0 0.0
        %3251 = vmatpush1.msra.mxu0 %v2993
        %3252 = vmatprep.subr.mxu0 0.0
        %3253 = vmatpush1.msra.mxu0 %v2994
        %3254 = vmatprep.subr.mxu0 0.0
        %3255 = vmatpush1.msra.mxu0 %v2995
        %3256 = vmatprep.subr.mxu0 0.0
        %3257 = vmatpush1.msra.mxu0 %v2996
        %3258 = vmatprep.subr.mxu0 0.0
        %3259 = vmatpush1.msra.mxu0 %v2997
        %3260 = vmatprep.subr.mxu0 0.0
        %3261 = vmatpush1.msra.mxu0 %v2998
        %3262 = vmatprep.subr.mxu0 0.0
        %3263 = vmatpush1.msra.mxu0 %v2999
        %3264 = vmatprep.subr.mxu0 0.0
        %3265 = vmatpush1.msra.mxu0 %v3000
        %3266 = vmatprep.subr.mxu0 0.0
        %3267 = vmatpush1.msra.mxu0 %v3001
        %3268 = vmatprep.subr.mxu0 0.0
        %3269 = vmatpush1.msra.mxu0 %v3002
        %3270 = vmatprep.subr.mxu0 0.0
        %3271 = vmatpush1.msra.mxu0 %v3003
        %3272 = vmatprep.subr.mxu0 0.0
        %3273 = vmatpush1.msra.mxu0 %v3004
        %3274 = vmatprep.subr.mxu0 0.0
        %3275 = vmatpush1.msra.mxu0 %v3005
        %3276 = vmatprep.subr.mxu0 0.0
        %3277 = vmatpush1.msra.mxu0 %v3006
        %3278 = vmatprep.subr.mxu0 0.0
        %3279 = vmatpush1.msra.mxu0 %v3007
        %3280 = vmatprep.subr.mxu0 0.0
        %3281 = vmatpush1.msra.mxu0 %v3008
        %3282 = vmatprep.subr.mxu0 0.0
        %3283 = vmatpush1.msra.mxu0 %v3009
        %3284 = vmatprep.subr.mxu0 0.0
        %3285 = vmatpush1.msra.mxu0 %v3010
        %3286 = vmatprep.subr.mxu0 0.0
        %3287 = vmatpush1.msra.mxu0 %v3011
        %3288 = vmatprep.subr.mxu0 0.0
        %3289 = vmatpush1.msra.mxu0 %v3012
        %3290 = vmatprep.subr.mxu0 0.0
        %3291 = vmatpush1.msra.mxu0 %v3013
        %3292 = vmatprep.subr.mxu0 0.0
        %3293 = vmatpush1.msra.mxu0 %v3014
        %3294 = vmatprep.subr.mxu0 0.0
        %3295 = vmatpush1.msra.mxu0 %v3015
        %3296 = vmatprep.subr.mxu0 0.0
        %3297 = vmatpush1.msra.mxu0 %v3016
        %3298 = vmatprep.subr.mxu0 0.0
        %3299 = vmatpush1.msra.mxu0 %v3017
        %3300 = vmatprep.subr.mxu0 0.0
        %3301 = vmatpush1.msra.mxu0 %v3018
        %3302 = vmatprep.subr.mxu0 0.0
        %3303 = vmatpush1.msra.mxu0 %v3019
        %3304 = vmatprep.subr.mxu0 0.0
        %3305 = vmatpush1.msra.mxu0 %v3020
        %3306 = vmatprep.subr.mxu0 0.0
        %3307 = vmatpush1.msra.mxu0 %v3021
        %3308 = vmatprep.subr.mxu0 0.0
        %3309 = vmatpush1.msra.mxu0 %v3022
        %3310 = vmatprep.subr.mxu0 0.0
        %3311 = vmatpush1.msra.mxu0 %v3023
        %3312 = vmatprep.subr.mxu0 0.0
        %3313 = vmatpush1.msra.mxu0 %v3024
        %3314 = vmatprep.mubr.f32.mxu0 %v2836
        %3315 = vmatmul.mubr.f32.gmra.mrb[0].mxu0 %v2835
        %v3316 = vpop.f32.mrb[0].mxu0
        %v3317 = vadd.f32 %v3092, %v3316
        %v3318 = vpop.f32.mrb[0].mxu0
        %3319 = vmatprep.mubr.f32.mxu0 %v2840
        %3320 = vmatmul.mubr.f32.gmra.mrb[0].mxu0 %v2839
        %v3321 = vpop.f32.mrb[0].mxu0
        %v3322 = vadd.f32 %v3097, %v3321
        %v3323 = vpop.f32.mrb[0].mxu0
        %3324 = vmatprep.mubr.f32.mxu0 %v2844
        %3325 = vmatmul.mubr.f32.gmra.mrb[0].mxu0 %v2843
        %v3326 = vpop.f32.mrb[0].mxu0
        %v3327 = vadd.f32 %v3102, %v3326
        %v3328 = vpop.f32.mrb[0].mxu0
        %3329 = vmatprep.mubr.f32.mxu0 %v2848
        %3330 = vmatmul.mubr.f32.gmra.mrb[0].mxu0 %v2847
        %v3331 = vpop.f32.mrb[0].mxu0
        %v3332 = vadd.f32 %v3107, %v3331
        %v3333 = vpop.f32.mrb[0].mxu0
        %3334 = vmatprep.mubr.f32.mxu0 %v2852
        %3335 = vmatmul.mubr.f32.gmra.mrb[0].mxu0 %v2851
        %v3336 = vpop.f32.mrb[0].mxu0
        %v3337 = vadd.f32 %v3112, %v3336
        %v3338 = vpop.f32.mrb[0].mxu0
        %3339 = vmatprep.mubr.f32.mxu0 %v2856
        %3340 = vmatmul.mubr.f32.gmra.mrb[0].mxu0 %v2855
        %v3341 = vpop.f32.mrb[0].mxu0
        %v3342 = vadd.f32 %v3117, %v3341
        %v3343 = vpop.f32.mrb[0].mxu0
        %3344 = vmatprep.mubr.f32.mxu0 %v2860
        %3345 = vmatmul.mubr.f32.gmra.mrb[0].mxu0 %v2859
        %v3346 = vpop.f32.mrb[0].mxu0
        %v3347 = vadd.f32 %v3122, %v3346
        %v3348 = vpop.f32.mrb[0].mxu0
        %3349 = vmatprep.mubr.f32.mxu0 %v2864
        %3350 = vmatmul.mubr.f32.gmra.mrb[0].mxu0 %v2863
        %v3351 = vpop.f32.mrb[0].mxu0
        %v3352 = vadd.f32 %v3127, %v3351
        %v3353 = vpop.f32.mrb[0].mxu0
        %3354 = vmatprep.mubr.f32.mxu0 %v2868
        %3355 = vmatmul.mubr.f32.gmra.mrb[0].mxu0 %v2867
        %v3356 = vpop.f32.mrb[0].mxu0
        %v3357 = vadd.f32 %v3132, %v3356
        %v3358 = vpop.f32.mrb[0].mxu0
        %3359 = vmatprep.mubr.f32.mxu0 %v2872
        %3360 = vmatmul.mubr.f32.gmra.mrb[0].mxu0 %v2871
        %v3361 = vpop.f32.mrb[0].mxu0
        %v3362 = vadd.f32 %v3137, %v3361
        %v3363 = vpop.f32.mrb[0].mxu0
        %3364 = vmatprep.mubr.f32.mxu0 %v2876
        %3365 = vmatmul.mubr.f32.gmra.mrb[0].mxu0 %v2875
        %v3366 = vpop.f32.mrb[0].mxu0
        %v3367 = vadd.f32 %v3142, %v3366
        %v3368 = vpop.f32.mrb[0].mxu0
        %3369 = vmatprep.mubr.f32.mxu0 %v2880
        %3370 = vmatmul.mubr.f32.gmra.mrb[0].mxu0 %v2879
        %v3371 = vpop.f32.mrb[0].mxu0
        %v3372 = vadd.f32 %v3147, %v3371
        %v3373 = vpop.f32.mrb[0].mxu0
        %3374 = vmatprep.mubr.f32.mxu0 %v2884
        %3375 = vmatmul.mubr.f32.gmra.mrb[0].mxu0 %v2883
        %v3376 = vpop.f32.mrb[0].mxu0
        %v3377 = vadd.f32 %v3152, %v3376
        %v3378 = vpop.f32.mrb[0].mxu0
        %3379 = vmatprep.mubr.f32.mxu0 %v2888
        %3380 = vmatmul.mubr.f32.gmra.mrb[0].mxu0 %v2887
        %v3381 = vpop.f32.mrb[0].mxu0
        %v3382 = vadd.f32 %v3157, %v3381
        %v3383 = vpop.f32.mrb[0].mxu0
        %3384 = vmatprep.mubr.f32.mxu0 %v2892
        %3385 = vmatmul.mubr.f32.gmra.mrb[0].mxu0 %v2891
        %v3386 = vpop.f32.mrb[0].mxu0
        %v3387 = vadd.f32 %v3162, %v3386
        %v3388 = vpop.f32.mrb[0].mxu0
        %3389 = vmatprep.mubr.f32.mxu0 %v2896
        %3390 = vmatmul.mubr.f32.gmra.mrb[0].mxu0 %v2895
        %v3391 = vpop.f32.mrb[0].mxu0
        %v3392 = vadd.f32 %v3167, %v3391
        %v3393 = vpop.f32.mrb[0].mxu0
        %3394 = vmatprep.mubr.f32.mxu0 %v2900
        %3395 = vmatmul.mubr.f32.gmra.mrb[0].mxu0 %v2899
        %v3396 = vpop.f32.mrb[0].mxu0
        %v3397 = vadd.f32 %v3172, %v3396
        %v3398 = vpop.f32.mrb[0].mxu0
        %3399 = vmatprep.mubr.f32.mxu0 %v2904
        %3400 = vmatmul.mubr.f32.gmra.mrb[0].mxu0 %v2903
        %v3401 = vpop.f32.mrb[0].mxu0
        %v3402 = vadd.f32 %v3177, %v3401
        %v3403 = vpop.f32.mrb[0].mxu0
        %3404 = vmatprep.mubr.f32.mxu0 %v2908
        %3405 = vmatmul.mubr.f32.gmra.mrb[0].mxu0 %v2907
        %v3406 = vpop.f32.mrb[0].mxu0
        %v3407 = vadd.f32 %v3182, %v3406
        %v3408 = vpop.f32.mrb[0].mxu0
        %3409 = vmatprep.mubr.f32.mxu0 %v2912
        %3410 = vmatmul.mubr.f32.gmra.mrb[0].mxu0 %v2911
        %v3411 = vpop.f32.mrb[0].mxu0
        %v3412 = vadd.f32 %v3187, %v3411
        %v3413 = vpop.f32.mrb[0].mxu0
        %3414 = vmatprep.mubr.f32.mxu0 %v2916
        %3415 = vmatmul.mubr.f32.gmra.mrb[0].mxu0 %v2915
        %v3416 = vpop.f32.mrb[0].mxu0
        %v3417 = vadd.f32 %v3192, %v3416
        %v3418 = vpop.f32.mrb[0].mxu0
        %3419 = vmatprep.mubr.f32.mxu0 %v2920
        %3420 = vmatmul.mubr.f32.gmra.mrb[0].mxu0 %v2919
        %v3421 = vpop.f32.mrb[0].mxu0
        %v3422 = vadd.f32 %v3197, %v3421
        %v3423 = vpop.f32.mrb[0].mxu0
        %3424 = vmatprep.mubr.f32.mxu0 %v2924
        %3425 = vmatmul.mubr.f32.gmra.mrb[0].mxu0 %v2923
        %v3426 = vpop.f32.mrb[0].mxu0
        %v3427 = vadd.f32 %v3202, %v3426
        %v3428 = vpop.f32.mrb[0].mxu0
        %3429 = vmatprep.mubr.f32.mxu0 %v2928
        %3430 = vmatmul.mubr.f32.gmra.mrb[0].mxu0 %v2927
        %v3431 = vpop.f32.mrb[0].mxu0
        %v3432 = vadd.f32 %v3207, %v3431
        %v3433 = vpop.f32.mrb[0].mxu0
        %3434 = vmatprep.mubr.f32.mxu0 %v2932
        %3435 = vmatmul.mubr.f32.gmra.mrb[0].mxu0 %v2931
        %v3436 = vpop.f32.mrb[0].mxu0
        %v3437 = vadd.f32 %v3212, %v3436
        %v3438 = vpop.f32.mrb[0].mxu0
        %3439 = vmatprep.mubr.f32.mxu0 %v2936
        %3440 = vmatmul.mubr.f32.gmra.mrb[0].mxu0 %v2935
        %v3441 = vpop.f32.mrb[0].mxu0
        %v3442 = vadd.f32 %v3217, %v3441
        %v3443 = vpop.f32.mrb[0].mxu0
        %3444 = vmatprep.mubr.f32.mxu0 %v2940
        %3445 = vmatmul.mubr.f32.gmra.mrb[0].mxu0 %v2939
        %v3446 = vpop.f32.mrb[0].mxu0
        %v3447 = vadd.f32 %v3222, %v3446
        %v3448 = vpop.f32.mrb[0].mxu0
        %3449 = vmatprep.mubr.f32.mxu0 %v2944
        %3450 = vmatmul.mubr.f32.gmra.mrb[0].mxu0 %v2943
        %v3451 = vpop.f32.mrb[0].mxu0
        %v3452 = vadd.f32 %v3227, %v3451
        %v3453 = vpop.f32.mrb[0].mxu0
        %3454 = vmatprep.mubr.f32.mxu0 %v2948
        %3455 = vmatmul.mubr.f32.gmra.mrb[0].mxu0 %v2947
        %v3456 = vpop.f32.mrb[0].mxu0
        %v3457 = vadd.f32 %v3232, %v3456
        %v3458 = vpop.f32.mrb[0].mxu0
        %3459 = vmatprep.mubr.f32.mxu0 %v2952
        %3460 = vmatmul.mubr.f32.gmra.mrb[0].mxu0 %v2951
        %v3461 = vpop.f32.mrb[0].mxu0
        %v3462 = vadd.f32 %v3237, %v3461
        %v3463 = vpop.f32.mrb[0].mxu0
        %3464 = vmatprep.mubr.f32.mxu0 %v2956
        %3465 = vmatmul.mubr.f32.gmra.mrb[0].mxu0 %v2955
        %v3466 = vpop.f32.mrb[0].mxu0
        %v3467 = vadd.f32 %v3242, %v3466
        %v3468 = vpop.f32.mrb[0].mxu0
        %3469 = vmatprep.mubr.f32.mxu0 %v2960
        %3470 = vmatmul.mubr.f32.gmra.mrb[0].mxu0 %v2959
        %v3471 = vpop.f32.mrb[0].mxu0
        %v3472 = vadd.f32 %v3247, %v3471
        %v3473 = vpop.f32.mrb[0].mxu0
        %3474 = vdwg.mxu0
        %v3475 = vld [vmem:[%s605] sm:$0xff]
        %v3476 = vld [vmem:[%s605 + $0x8] sm:$0xff]
        %v3477 = vld [vmem:[%s605 + $0x10] sm:$0xff]
        %v3478 = vld [vmem:[%s605 + $0x18] sm:$0xff]
        %v3479 = vld [vmem:[%s605 + $0x20] sm:$0xff]
        %v3480 = vld [vmem:[%s605 + $0x28] sm:$0xff]
        %v3481 = vld [vmem:[%s605 + $0x30] sm:$0xff]
        %v3482 = vld [vmem:[%s605 + $0x38] sm:$0xff]
        %v3483 = vld [vmem:[%s605 + $0x40] sm:$0xff]
        %v3484 = vld [vmem:[%s605 + $0x48] sm:$0xff]
        %v3485 = vld [vmem:[%s605 + $0x50] sm:$0xff]
        %v3486 = vld [vmem:[%s605 + $0x58] sm:$0xff]
        %v3487 = vld [vmem:[%s605 + $0x60] sm:$0xff]
        %v3488 = vld [vmem:[%s605 + $0x68] sm:$0xff]
        %v3489 = vld [vmem:[%s605 + $0x70] sm:$0xff]
        %v3490 = vld [vmem:[%s605 + $0x78] sm:$0xff]
        %v3491 = vld [vmem:[%s605 + $0x80] sm:$0xff]
        %v3492 = vld [vmem:[%s605 + $0x88] sm:$0xff]
        %v3493 = vld [vmem:[%s605 + $0x90] sm:$0xff]
        %v3494 = vld [vmem:[%s605 + $0x98] sm:$0xff]
        %v3495 = vld [vmem:[%s605 + $0xa0] sm:$0xff]
        %v3496 = vld [vmem:[%s605 + $0xa8] sm:$0xff]
        %v3497 = vld [vmem:[%s605 + $0xb0] sm:$0xff]
        %v3498 = vld [vmem:[%s605 + $0xb8] sm:$0xff]
        %v3499 = vld [vmem:[%s605 + $0xc0] sm:$0xff]
        %v3500 = vld [vmem:[%s605 + $0xc8] sm:$0xff]
        %v3501 = vld [vmem:[%s605 + $0xd0] sm:$0xff]
        %v3502 = vld [vmem:[%s605 + $0xd8] sm:$0xff]
        %v3503 = vld [vmem:[%s605 + $0xe0] sm:$0xff]
        %v3504 = vld [vmem:[%s605 + $0xe8] sm:$0xff]
        %v3505 = vld [vmem:[%s605 + $0xf0] sm:$0xff]
        %v3506 = vld [vmem:[%s605 + $0xf8] sm:$0xff]
        %v3507 = vpack.c.bf16 %v3476, %v3475
        %v3508 = vpack.c.bf16 %v3478, %v3477
        %v3509 = vpack.c.bf16 %v3480, %v3479
        %v3510 = vpack.c.bf16 %v3482, %v3481
        %v3511 = vpack.c.bf16 %v3484, %v3483
        %v3512 = vpack.c.bf16 %v3486, %v3485
        %v3513 = vpack.c.bf16 %v3488, %v3487
        %v3514 = vpack.c.bf16 %v3490, %v3489
        %v3515 = vpack.c.bf16 %v3492, %v3491
        %v3516 = vpack.c.bf16 %v3494, %v3493
        %v3517 = vpack.c.bf16 %v3496, %v3495
        %v3518 = vpack.c.bf16 %v3498, %v3497
        %v3519 = vpack.c.bf16 %v3500, %v3499
        %v3520 = vpack.c.bf16 %v3502, %v3501
        %v3521 = vpack.c.bf16 %v3504, %v3503
        %v3522 = vpack.c.bf16 %v3506, %v3505
        %v3523 = vld [vmem:[%s6] sm:$0xf]
        %v3524 = vld [vmem:[%s6 + $0x4] sm:$0xf]
        %v3525 = vpack.c.bf16 %v3322, %v3317
        %v3526 = vpack.c.bf16 %v3332, %v3327
        %v3527 = vpack.c.bf16 %v3342, %v3337
        %v3528 = vpack.c.bf16 %v3352, %v3347
        %v3529 = vpack.c.bf16 %v3362, %v3357
        %v3530 = vpack.c.bf16 %v3372, %v3367
        %v3531 = vpack.c.bf16 %v3382, %v3377
        %v3532 = vpack.c.bf16 %v3392, %v3387
        %v3533 = vpack.c.bf16 %v3402, %v3397
        %v3534 = vpack.c.bf16 %v3412, %v3407
        %v3535 = vpack.c.bf16 %v3422, %v3417
        %v3536 = vpack.c.bf16 %v3432, %v3427
        %v3537 = vpack.c.bf16 %v3442, %v3437
        %v3538 = vpack.c.bf16 %v3452, %v3447
        %v3539 = vpack.c.bf16 %v3462, %v3457
        %v3540 = vpack.c.bf16 %v3472, %v3467
        %v3541 = vld [vmem:[%s7] sm:$0xf]
        %v3542 = vld [vmem:[%s7 + $0x4] sm:$0xf]
        %v3543 = vld [vmem:[%s7 + $0x8] sm:$0xf]
        %v3544 = vld [vmem:[%s7 + $0xc] sm:$0xf]
        %v3549 = vunpack.c.l.b16 %v3541
        %v3550 = vunpack.c.l.b16 %v3542
        %v3551 = vunpack.c.l.b16 %v3543
        %v3552 = vunpack.c.l.b16 %v3544
        %v3553 = vpack.c.b16 %v3550, %v3549
        %v3554 = vpack.c.b16 %v3552, %v3551
        %vm3557 = vcmask 261120
        %v3559 = vsel %vm3557, %v3525, 0
        %v3562 = vsel %vm3557, %v3526, 0
        %v3565 = vsel %vm3557, %v3527, 0
        %v3568 = vsel %vm3557, %v3528, 0
        %v3571 = vsel %vm3557, %v3529, 0
        %v3574 = vsel %vm3557, %v3530, 0
        %v3577 = vsel %vm3557, %v3531, 0
        %v3580 = vsel %vm3557, %v3532, 0
        %v3583 = vsel %vm3557, %v3533, 0
        %v3586 = vsel %vm3557, %v3534, 0
        %v3589 = vsel %vm3557, %v3535, 0
        %v3592 = vsel %vm3557, %v3536, 0
        %v3595 = vsel %vm3557, %v3537, 0
        %v3598 = vsel %vm3557, %v3538, 0
        %v3601 = vsel %vm3557, %v3539, 0
        %v3604 = vsel %vm3557, %v3540, 0
        %3606 = vmatprep.subr.bf16.mxu0 0
        %3607 = vmatpush1.bf16.msra.mxu0 %v3553
        %3608 = vmatprep.subr.bf16.mxu0 0
        %3609 = vmatpush1.bf16.msra.mxu0 %v3554
        %3610 = vmatprep.subr.bf16.mxu0 0
        %3611 = vmatpush1.bf16.msra.mxu0 0
        %3612 = vmatprep.subr.bf16.mxu0 0
        %3613 = vmatpush1.bf16.msra.mxu0 0
        %3614 = vmatprep.subr.bf16.mxu0 0
        %3615 = vmatpush1.bf16.msra.mxu0 0
        %3616 = vmatprep.subr.bf16.mxu0 0
        %3617 = vmatpush1.bf16.msra.mxu0 0
        %3618 = vmatprep.subr.bf16.mxu0 0
        %3619 = vmatpush1.bf16.msra.mxu0 0
        %3620 = vmatprep.subr.bf16.mxu0 0
        %3621 = vmatpush1.bf16.msra.mxu0 0
        %3622 = vmatprep.subr.bf16.mxu0 0
        %3623 = vmatpush1.bf16.msra.mxu0 0
        %3624 = vmatprep.subr.bf16.mxu0 0
        %3625 = vmatpush1.bf16.msra.mxu0 0
        %3626 = vmatprep.subr.bf16.mxu0 0
        %3627 = vmatpush1.bf16.msra.mxu0 0
        %3628 = vmatprep.subr.bf16.mxu0 0
        %3629 = vmatpush1.bf16.msra.mxu0 0
        %3630 = vmatprep.subr.bf16.mxu0 0
        %3631 = vmatpush1.bf16.msra.mxu0 0
        %3632 = vmatprep.subr.bf16.mxu0 0
        %3633 = vmatpush1.bf16.msra.mxu0 0
        %3634 = vmatprep.subr.bf16.mxu0 0
        %3635 = vmatpush1.bf16.msra.mxu0 0
        %3636 = vmatprep.subr.bf16.mxu0 0
        %3637 = vmatpush1.bf16.msra.mxu0 0
        %3638 = vmatprep.mubr.bf16.mxu0 0
        %3639 = vmatmul.mubr.bf16.gmra.mrb[0].mxu0 %v3559
        %v3640 = vpop.f32.mrb[0].mxu0
        %v3641 = vadd.f32 0.0, %v3640
        %v3642 = vpop.f32.mrb[0].mxu0
        %v3643 = vpop.f32.mrb[0].mxu0
        %v3644 = vadd.f32 0.0, %v3643
        %v3645 = vpop.f32.mrb[0].mxu0
        %3646 = vmatprep.mubr.bf16.mxu0 0
        %3647 = vmatmul.mubr.bf16.gmra.mrb[0].mxu0 %v3562
        %v3648 = vpop.f32.mrb[0].mxu0
        %v3649 = vadd.f32 0.0, %v3648
        %v3650 = vpop.f32.mrb[0].mxu0
        %v3651 = vpop.f32.mrb[0].mxu0
        %v3652 = vadd.f32 0.0, %v3651
        %v3653 = vpop.f32.mrb[0].mxu0
        %3654 = vmatprep.mubr.bf16.mxu0 0
        %3655 = vmatmul.mubr.bf16.gmra.mrb[0].mxu0 %v3565
        %v3656 = vpop.f32.mrb[0].mxu0
        %v3657 = vadd.f32 0.0, %v3656
        %v3658 = vpop.f32.mrb[0].mxu0
        %v3659 = vpop.f32.mrb[0].mxu0
        %v3660 = vadd.f32 0.0, %v3659
        %v3661 = vpop.f32.mrb[0].mxu0
        %3662 = vmatprep.mubr.bf16.mxu0 0
        %3663 = vmatmul.mubr.bf16.gmra.mrb[0].mxu0 %v3568
        %v3664 = vpop.f32.mrb[0].mxu0
        %v3665 = vadd.f32 0.0, %v3664
        %v3666 = vpop.f32.mrb[0].mxu0
        %v3667 = vpop.f32.mrb[0].mxu0
        %v3668 = vadd.f32 0.0, %v3667
        %v3669 = vpop.f32.mrb[0].mxu0
        %3670 = vmatprep.mubr.bf16.mxu0 0
        %3671 = vmatmul.mubr.bf16.gmra.mrb[0].mxu0 %v3571
        %v3672 = vpop.f32.mrb[0].mxu0
        %v3673 = vadd.f32 0.0, %v3672
        %v3674 = vpop.f32.mrb[0].mxu0
        %v3675 = vpop.f32.mrb[0].mxu0
        %v3676 = vadd.f32 0.0, %v3675
        %v3677 = vpop.f32.mrb[0].mxu0
        %3678 = vmatprep.mubr.bf16.mxu0 0
        %3679 = vmatmul.mubr.bf16.gmra.mrb[0].mxu0 %v3574
        %v3680 = vpop.f32.mrb[0].mxu0
        %v3681 = vadd.f32 0.0, %v3680
        %v3682 = vpop.f32.mrb[0].mxu0
        %v3683 = vpop.f32.mrb[0].mxu0
        %v3684 = vadd.f32 0.0, %v3683
        %v3685 = vpop.f32.mrb[0].mxu0
        %3686 = vmatprep.mubr.bf16.mxu0 0
        %3687 = vmatmul.mubr.bf16.gmra.mrb[0].mxu0 %v3577
        %v3688 = vpop.f32.mrb[0].mxu0
        %v3689 = vadd.f32 0.0, %v3688
        %v3690 = vpop.f32.mrb[0].mxu0
        %v3691 = vpop.f32.mrb[0].mxu0
        %v3692 = vadd.f32 0.0, %v3691
        %v3693 = vpop.f32.mrb[0].mxu0
        %3694 = vmatprep.mubr.bf16.mxu0 0
        %3695 = vmatmul.mubr.bf16.gmra.mrb[0].mxu0 %v3580
        %v3696 = vpop.f32.mrb[0].mxu0
        %v3697 = vadd.f32 0.0, %v3696
        %v3698 = vpop.f32.mrb[0].mxu0
        %v3699 = vpop.f32.mrb[0].mxu0
        %v3700 = vadd.f32 0.0, %v3699
        %v3701 = vpop.f32.mrb[0].mxu0
        %3702 = vmatprep.mubr.bf16.mxu0 0
        %3703 = vmatmul.mubr.bf16.gmra.mrb[0].mxu0 %v3583
        %v3704 = vpop.f32.mrb[0].mxu0
        %v3705 = vadd.f32 0.0, %v3704
        %v3706 = vpop.f32.mrb[0].mxu0
        %v3707 = vpop.f32.mrb[0].mxu0
        %v3708 = vadd.f32 0.0, %v3707
        %v3709 = vpop.f32.mrb[0].mxu0
        %3710 = vmatprep.mubr.bf16.mxu0 0
        %3711 = vmatmul.mubr.bf16.gmra.mrb[0].mxu0 %v3586
        %v3712 = vpop.f32.mrb[0].mxu0
        %v3713 = vadd.f32 0.0, %v3712
        %v3714 = vpop.f32.mrb[0].mxu0
        %v3715 = vpop.f32.mrb[0].mxu0
        %v3716 = vadd.f32 0.0, %v3715
        %v3717 = vpop.f32.mrb[0].mxu0
        %3718 = vmatprep.mubr.bf16.mxu0 0
        %3719 = vmatmul.mubr.bf16.gmra.mrb[0].mxu0 %v3589
        %v3720 = vpop.f32.mrb[0].mxu0
        %v3721 = vadd.f32 0.0, %v3720
        %v3722 = vpop.f32.mrb[0].mxu0
        %v3723 = vpop.f32.mrb[0].mxu0
        %v3724 = vadd.f32 0.0, %v3723
        %v3725 = vpop.f32.mrb[0].mxu0
        %3726 = vmatprep.mubr.bf16.mxu0 0
        %3727 = vmatmul.mubr.bf16.gmra.mrb[0].mxu0 %v3592
        %v3728 = vpop.f32.mrb[0].mxu0
        %v3729 = vadd.f32 0.0, %v3728
        %v3730 = vpop.f32.mrb[0].mxu0
        %v3731 = vpop.f32.mrb[0].mxu0
        %v3732 = vadd.f32 0.0, %v3731
        %v3733 = vpop.f32.mrb[0].mxu0
        %3734 = vmatprep.mubr.bf16.mxu0 0
        %3735 = vmatmul.mubr.bf16.gmra.mrb[0].mxu0 %v3595
        %v3736 = vpop.f32.mrb[0].mxu0
        %v3737 = vadd.f32 0.0, %v3736
        %v3738 = vpop.f32.mrb[0].mxu0
        %v3739 = vpop.f32.mrb[0].mxu0
        %v3740 = vadd.f32 0.0, %v3739
        %v3741 = vpop.f32.mrb[0].mxu0
        %3742 = vmatprep.mubr.bf16.mxu0 0
        %3743 = vmatmul.mubr.bf16.gmra.mrb[0].mxu0 %v3598
        %v3744 = vpop.f32.mrb[0].mxu0
        %v3745 = vadd.f32 0.0, %v3744
        %v3746 = vpop.f32.mrb[0].mxu0
        %v3747 = vpop.f32.mrb[0].mxu0
        %v3748 = vadd.f32 0.0, %v3747
        %v3749 = vpop.f32.mrb[0].mxu0
        %3750 = vmatprep.mubr.bf16.mxu0 0
        %3751 = vmatmul.mubr.bf16.gmra.mrb[0].mxu0 %v3601
        %v3752 = vpop.f32.mrb[0].mxu0
        %v3753 = vadd.f32 0.0, %v3752
        %v3754 = vpop.f32.mrb[0].mxu0
        %v3755 = vpop.f32.mrb[0].mxu0
        %v3756 = vadd.f32 0.0, %v3755
        %v3757 = vpop.f32.mrb[0].mxu0
        %3758 = vmatprep.mubr.bf16.mxu0 0
        %3759 = vmatmul.mubr.bf16.gmra.mrb[0].mxu0 %v3604
        %v3760 = vpop.f32.mrb[0].mxu0
        %v3761 = vadd.f32 0.0, %v3760
        %v3762 = vpop.f32.mrb[0].mxu0
        %v3763 = vpop.f32.mrb[0].mxu0
        %v3764 = vadd.f32 0.0, %v3763
        %v3765 = vpop.f32.mrb[0].mxu0
        %3766 = vdwg.mxu0
        %v3769 = vunpack.c.l.b16 %v3523
        %v3770 = vunpack.c.l.b16 %v3524
        %v3771 = vpack.c.b16 %v3770, %v3769
        %vm3773 = vcmask 130048
        %v3775 = vsel %vm3773, %v3507, 0
        %v3778 = vsel %vm3773, %v3508, 0
        %v3781 = vsel %vm3773, %v3509, 0
        %v3784 = vsel %vm3773, %v3510, 0
        %v3787 = vsel %vm3773, %v3511, 0
        %v3790 = vsel %vm3773, %v3512, 0
        %v3793 = vsel %vm3773, %v3513, 0
        %v3796 = vsel %vm3773, %v3514, 0
        %v3799 = vsel %vm3773, %v3515, 0
        %v3802 = vsel %vm3773, %v3516, 0
        %v3805 = vsel %vm3773, %v3517, 0
        %v3808 = vsel %vm3773, %v3518, 0
        %v3811 = vsel %vm3773, %v3519, 0
        %v3814 = vsel %vm3773, %v3520, 0
        %v3817 = vsel %vm3773, %v3521, 0
        %v3820 = vsel %vm3773, %v3522, 0
        %3822 = vmatprep.subr.bf16.mxu0 0
        %3823 = vmatpush1.bf16.msra.mxu0 %v3771
        %3824 = vmatprep.subr.bf16.mxu0 0
        %3825 = vmatpush1.bf16.msra.mxu0 0
        %3826 = vmatprep.subr.bf16.mxu0 0
        %3827 = vmatpush1.bf16.msra.mxu0 0
        %3828 = vmatprep.subr.bf16.mxu0 0
        %3829 = vmatpush1.bf16.msra.mxu0 0
        %3830 = vmatprep.subr.bf16.mxu0 0
        %3831 = vmatpush1.bf16.msra.mxu0 0
        %3832 = vmatprep.subr.bf16.mxu0 0
        %3833 = vmatpush1.bf16.msra.mxu0 0
        %3834 = vmatprep.subr.bf16.mxu0 0
        %3835 = vmatpush1.bf16.msra.mxu0 0
        %3836 = vmatprep.subr.bf16.mxu0 0
        %3837 = vmatpush1.bf16.msra.mxu0 0
        %3838 = vmatprep.subr.bf16.mxu0 0
        %3839 = vmatpush1.bf16.msra.mxu0 0
        %3840 = vmatprep.subr.bf16.mxu0 0
        %3841 = vmatpush1.bf16.msra.mxu0 0
        %3842 = vmatprep.subr.bf16.mxu0 0
        %3843 = vmatpush1.bf16.msra.mxu0 0
        %3844 = vmatprep.subr.bf16.mxu0 0
        %3845 = vmatpush1.bf16.msra.mxu0 0
        %3846 = vmatprep.subr.bf16.mxu0 0
        %3847 = vmatpush1.bf16.msra.mxu0 0
        %3848 = vmatprep.subr.bf16.mxu0 0
        %3849 = vmatpush1.bf16.msra.mxu0 0
        %3850 = vmatprep.subr.bf16.mxu0 0
        %3851 = vmatpush1.bf16.msra.mxu0 0
        %3852 = vmatprep.subr.bf16.mxu0 0
        %3853 = vmatpush1.bf16.msra.mxu0 0
        %3854 = vmatprep.mubr.bf16.mxu0 0
        %3855 = vmatmul.mubr.bf16.gmra.mrb[0].mxu0 %v3775
        %v3856 = vpop.f32.mrb[0].mxu0
        %v3857 = vadd.f32 %v3641, %v3856
        %v3858 = vpop.f32.mrb[0].mxu0
        %v3859 = vpop.f32.mrb[0].mxu0
        %v3860 = vadd.f32 %v3644, %v3859
        %v3861 = vpop.f32.mrb[0].mxu0
        %3862 = vmatprep.mubr.bf16.mxu0 0
        %3863 = vmatmul.mubr.bf16.gmra.mrb[0].mxu0 %v3778
        %v3864 = vpop.f32.mrb[0].mxu0
        %v3865 = vadd.f32 %v3649, %v3864
        %v3866 = vpop.f32.mrb[0].mxu0
        %v3867 = vpop.f32.mrb[0].mxu0
        %v3868 = vadd.f32 %v3652, %v3867
        %v3869 = vpop.f32.mrb[0].mxu0
        %3870 = vmatprep.mubr.bf16.mxu0 0
        %3871 = vmatmul.mubr.bf16.gmra.mrb[0].mxu0 %v3781
        %v3872 = vpop.f32.mrb[0].mxu0
        %v3873 = vadd.f32 %v3657, %v3872
        %v3874 = vpop.f32.mrb[0].mxu0
        %v3875 = vpop.f32.mrb[0].mxu0
        %v3876 = vadd.f32 %v3660, %v3875
        %v3877 = vpop.f32.mrb[0].mxu0
        %3878 = vmatprep.mubr.bf16.mxu0 0
        %3879 = vmatmul.mubr.bf16.gmra.mrb[0].mxu0 %v3784
        %v3880 = vpop.f32.mrb[0].mxu0
        %v3881 = vadd.f32 %v3665, %v3880
        %v3882 = vpop.f32.mrb[0].mxu0
        %v3883 = vpop.f32.mrb[0].mxu0
        %v3884 = vadd.f32 %v3668, %v3883
        %v3885 = vpop.f32.mrb[0].mxu0
        %3886 = vmatprep.mubr.bf16.mxu0 0
        %3887 = vmatmul.mubr.bf16.gmra.mrb[0].mxu0 %v3787
        %v3888 = vpop.f32.mrb[0].mxu0
        %v3889 = vadd.f32 %v3673, %v3888
        %v3890 = vpop.f32.mrb[0].mxu0
        %v3891 = vpop.f32.mrb[0].mxu0
        %v3892 = vadd.f32 %v3676, %v3891
        %v3893 = vpop.f32.mrb[0].mxu0
        %3894 = vmatprep.mubr.bf16.mxu0 0
        %3895 = vmatmul.mubr.bf16.gmra.mrb[0].mxu0 %v3790
        %v3896 = vpop.f32.mrb[0].mxu0
        %v3897 = vadd.f32 %v3681, %v3896
        %v3898 = vpop.f32.mrb[0].mxu0
        %v3899 = vpop.f32.mrb[0].mxu0
        %v3900 = vadd.f32 %v3684, %v3899
        %v3901 = vpop.f32.mrb[0].mxu0
        %3902 = vmatprep.mubr.bf16.mxu0 0
        %3903 = vmatmul.mubr.bf16.gmra.mrb[0].mxu0 %v3793
        %v3904 = vpop.f32.mrb[0].mxu0
        %v3905 = vadd.f32 %v3689, %v3904
        %v3906 = vpop.f32.mrb[0].mxu0
        %v3907 = vpop.f32.mrb[0].mxu0
        %v3908 = vadd.f32 %v3692, %v3907
        %v3909 = vpop.f32.mrb[0].mxu0
        %3910 = vmatprep.mubr.bf16.mxu0 0
        %3911 = vmatmul.mubr.bf16.gmra.mrb[0].mxu0 %v3796
        %v3912 = vpop.f32.mrb[0].mxu0
        %v3913 = vadd.f32 %v3697, %v3912
        %v3914 = vpop.f32.mrb[0].mxu0
        %v3915 = vpop.f32.mrb[0].mxu0
        %v3916 = vadd.f32 %v3700, %v3915
        %v3917 = vpop.f32.mrb[0].mxu0
        %3918 = vmatprep.mubr.bf16.mxu0 0
        %3919 = vmatmul.mubr.bf16.gmra.mrb[0].mxu0 %v3799
        %v3920 = vpop.f32.mrb[0].mxu0
        %v3921 = vadd.f32 %v3705, %v3920
        %v3922 = vpop.f32.mrb[0].mxu0
        %v3923 = vpop.f32.mrb[0].mxu0
        %v3924 = vadd.f32 %v3708, %v3923
        %v3925 = vpop.f32.mrb[0].mxu0
        %3926 = vmatprep.mubr.bf16.mxu0 0
        %3927 = vmatmul.mubr.bf16.gmra.mrb[0].mxu0 %v3802
        %v3928 = vpop.f32.mrb[0].mxu0
        %v3929 = vadd.f32 %v3713, %v3928
        %v3930 = vpop.f32.mrb[0].mxu0
        %v3931 = vpop.f32.mrb[0].mxu0
        %v3932 = vadd.f32 %v3716, %v3931
        %v3933 = vpop.f32.mrb[0].mxu0
        %3934 = vmatprep.mubr.bf16.mxu0 0
        %3935 = vmatmul.mubr.bf16.gmra.mrb[0].mxu0 %v3805
        %v3936 = vpop.f32.mrb[0].mxu0
        %v3937 = vadd.f32 %v3721, %v3936
        %v3938 = vpop.f32.mrb[0].mxu0
        %v3939 = vpop.f32.mrb[0].mxu0
        %v3940 = vadd.f32 %v3724, %v3939
        %v3941 = vpop.f32.mrb[0].mxu0
        %3942 = vmatprep.mubr.bf16.mxu0 0
        %3943 = vmatmul.mubr.bf16.gmra.mrb[0].mxu0 %v3808
        %v3944 = vpop.f32.mrb[0].mxu0
        %v3945 = vadd.f32 %v3729, %v3944
        %v3946 = vpop.f32.mrb[0].mxu0
        %v3947 = vpop.f32.mrb[0].mxu0
        %v3948 = vadd.f32 %v3732, %v3947
        %v3949 = vpop.f32.mrb[0].mxu0
        %3950 = vmatprep.mubr.bf16.mxu0 0
        %3951 = vmatmul.mubr.bf16.gmra.mrb[0].mxu0 %v3811
        %v3952 = vpop.f32.mrb[0].mxu0
        %v3953 = vadd.f32 %v3737, %v3952
        %v3954 = vpop.f32.mrb[0].mxu0
        %v3955 = vpop.f32.mrb[0].mxu0
        %v3956 = vadd.f32 %v3740, %v3955
        %v3957 = vpop.f32.mrb[0].mxu0
        %3958 = vmatprep.mubr.bf16.mxu0 0
        %3959 = vmatmul.mubr.bf16.gmra.mrb[0].mxu0 %v3814
        %v3960 = vpop.f32.mrb[0].mxu0
        %v3961 = vadd.f32 %v3745, %v3960
        %v3962 = vpop.f32.mrb[0].mxu0
        %v3963 = vpop.f32.mrb[0].mxu0
        %v3964 = vadd.f32 %v3748, %v3963
        %v3965 = vpop.f32.mrb[0].mxu0
        %3966 = vmatprep.mubr.bf16.mxu0 0
        %3967 = vmatmul.mubr.bf16.gmra.mrb[0].mxu0 %v3817
        %v3968 = vpop.f32.mrb[0].mxu0
        %v3969 = vadd.f32 %v3753, %v3968
        %v3970 = vpop.f32.mrb[0].mxu0
        %v3971 = vpop.f32.mrb[0].mxu0
        %v3972 = vadd.f32 %v3756, %v3971
        %v3973 = vpop.f32.mrb[0].mxu0
        %3974 = vmatprep.mubr.bf16.mxu0 0
        %3975 = vmatmul.mubr.bf16.gmra.mrb[0].mxu0 %v3820
        %v3976 = vpop.f32.mrb[0].mxu0
        %v3977 = vadd.f32 %v3761, %v3976
        %v3978 = vpop.f32.mrb[0].mxu0
        %v3979 = vpop.f32.mrb[0].mxu0
        %v3980 = vadd.f32 %v3764, %v3979
        %v3981 = vpop.f32.mrb[0].mxu0
        %3982 = vdwg.mxu0
        %v3983 = vld [vmem:[%s8] sm:$0x1]
        %v3985 = vlaneseq
        %v3986 = vshrl.u32 %v3985, 7
        %v3987 = vsub.s32 0, %v3986
        %v3988 = vrot.slane %v3983, %v3987
        %v3990 = vadd.f32 %v3857, %v3988
        %v3991 = vadd.f32 %v3860, %v3988
        %v3992 = vadd.f32 %v3865, %v3988
        %v3993 = vadd.f32 %v3868, %v3988
        %v3994 = vadd.f32 %v3873, %v3988
        %v3995 = vadd.f32 %v3876, %v3988
        %v3996 = vadd.f32 %v3881, %v3988
        %v3997 = vadd.f32 %v3884, %v3988
        %v3998 = vadd.f32 %v3889, %v3988
        %v3999 = vadd.f32 %v3892, %v3988
        %v4000 = vadd.f32 %v3897, %v3988
        %v4001 = vadd.f32 %v3900, %v3988
        %v4002 = vadd.f32 %v3905, %v3988
        %v4003 = vadd.f32 %v3908, %v3988
        %v4004 = vadd.f32 %v3913, %v3988
        %v4005 = vadd.f32 %v3916, %v3988
        %v4006 = vadd.f32 %v3921, %v3988
        %v4007 = vadd.f32 %v3924, %v3988
        %v4008 = vadd.f32 %v3929, %v3988
        %v4009 = vadd.f32 %v3932, %v3988
        %v4010 = vadd.f32 %v3937, %v3988
        %v4011 = vadd.f32 %v3940, %v3988
        %v4012 = vadd.f32 %v3945, %v3988
        %v4013 = vadd.f32 %v3948, %v3988
        %v4014 = vadd.f32 %v3953, %v3988
        %v4015 = vadd.f32 %v3956, %v3988
        %v4016 = vadd.f32 %v3961, %v3988
        %v4017 = vadd.f32 %v3964, %v3988
        %v4018 = vadd.f32 %v3969, %v3988
        %v4019 = vadd.f32 %v3972, %v3988
        %v4020 = vadd.f32 %v3977, %v3988
        %v4021 = vadd.f32 %v3980, %v3988
        %v4022 = vmax.f32 %v3990, 0.0
        %v4023 = vmax.f32 %v3991, 0.0
        %v4024 = vmax.f32 %v3992, 0.0
        %v4025 = vmax.f32 %v3993, 0.0
        %v4026 = vmax.f32 %v3994, 0.0
        %v4027 = vmax.f32 %v3995, 0.0
        %v4028 = vmax.f32 %v3996, 0.0
        %v4029 = vmax.f32 %v3997, 0.0
        %v4030 = vmax.f32 %v3998, 0.0
        %v4031 = vmax.f32 %v3999, 0.0
        %v4032 = vmax.f32 %v4000, 0.0
        %v4033 = vmax.f32 %v4001, 0.0
        %v4034 = vmax.f32 %v4002, 0.0
        %v4035 = vmax.f32 %v4003, 0.0
        %v4036 = vmax.f32 %v4004, 0.0
        %v4037 = vmax.f32 %v4005, 0.0
        %v4038 = vmax.f32 %v4006, 0.0
        %v4039 = vmax.f32 %v4007, 0.0
        %v4040 = vmax.f32 %v4008, 0.0
        %v4041 = vmax.f32 %v4009, 0.0
        %v4042 = vmax.f32 %v4010, 0.0
        %v4043 = vmax.f32 %v4011, 0.0
        %v4044 = vmax.f32 %v4012, 0.0
        %v4045 = vmax.f32 %v4013, 0.0
        %v4046 = vmax.f32 %v4014, 0.0
        %v4047 = vmax.f32 %v4015, 0.0
        %v4048 = vmax.f32 %v4016, 0.0
        %v4049 = vmax.f32 %v4017, 0.0
        %v4050 = vmax.f32 %v4018, 0.0
        %v4051 = vmax.f32 %v4019, 0.0
        %v4052 = vmax.f32 %v4020, 0.0
        %v4053 = vmax.f32 %v4021, 0.0
        %v4054 = vpack.c.bf16 %v4023, %v4022
        %v4055 = vpack.c.bf16 %v4025, %v4024
        %v4056 = vpack.c.bf16 %v4027, %v4026
        %v4057 = vpack.c.bf16 %v4029, %v4028
        %v4058 = vpack.c.bf16 %v4031, %v4030
        %v4059 = vpack.c.bf16 %v4033, %v4032
        %v4060 = vpack.c.bf16 %v4035, %v4034
        %v4061 = vpack.c.bf16 %v4037, %v4036
        %v4062 = vpack.c.bf16 %v4039, %v4038
        %v4063 = vpack.c.bf16 %v4041, %v4040
        %v4064 = vpack.c.bf16 %v4043, %v4042
        %v4065 = vpack.c.bf16 %v4045, %v4044
        %v4066 = vpack.c.bf16 %v4047, %v4046
        %v4067 = vpack.c.bf16 %v4049, %v4048
        %v4068 = vpack.c.bf16 %v4051, %v4050
        %v4069 = vpack.c.bf16 %v4053, %v4052
        %v4070 = vld [vmem:[%s9] sm:$0xf]
        %v4071 = vld [vmem:[%s9 + $0x4] sm:$0xf]
        %v4072 = vld [vmem:[%s9 + $0x8] sm:$0xf]
        %v4073 = vld [vmem:[%s9 + $0xc] sm:$0xf]
        %v4074 = vld [vmem:[%s9 + $0x10] sm:$0xf]
        %v4075 = vld [vmem:[%s9 + $0x14] sm:$0xf]
        %v4076 = vld [vmem:[%s9 + $0x18] sm:$0xf]
        %v4077 = vld [vmem:[%s9 + $0x1c] sm:$0xf]
        %v4078 = vld [vmem:[%s9 + $0x20] sm:$0xf]
        %v4079 = vld [vmem:[%s9 + $0x24] sm:$0xf]
        %v4080 = vld [vmem:[%s9 + $0x28] sm:$0xf]
        %v4081 = vld [vmem:[%s9 + $0x2c] sm:$0xf]
        %v4082 = vld [vmem:[%s9 + $0x30] sm:$0xf]
        %v4083 = vld [vmem:[%s9 + $0x34] sm:$0xf]
        %v4084 = vld [vmem:[%s9 + $0x38] sm:$0xf]
        %v4085 = vld [vmem:[%s9 + $0x3c] sm:$0xf]
        %v4086 = vld [vmem:[%s10] sm:$0x1]
        %v4088 = vlaneseq
        %v4089 = vshrl.u32 %v4088, 7
        %v4090 = vsub.s32 0, %v4089
        %v4091 = vrot.slane %v4086, %v4090
        %v4109 = vunpack.c.l.b16 %v4070
        %v4110 = vunpack.c.l.b16 %v4071
        %v4111 = vunpack.c.l.b16 %v4072
        %v4112 = vunpack.c.l.b16 %v4073
        %v4113 = vunpack.c.l.b16 %v4074
        %v4114 = vunpack.c.l.b16 %v4075
        %v4115 = vunpack.c.l.b16 %v4076
        %v4116 = vunpack.c.l.b16 %v4077
        %v4117 = vunpack.c.l.b16 %v4078
        %v4118 = vunpack.c.l.b16 %v4079
        %v4119 = vunpack.c.l.b16 %v4080
        %v4120 = vunpack.c.l.b16 %v4081
        %v4121 = vunpack.c.l.b16 %v4082
        %v4122 = vunpack.c.l.b16 %v4083
        %v4123 = vunpack.c.l.b16 %v4084
        %v4124 = vunpack.c.l.b16 %v4085
        %v4125 = vpack.c.b16 %v4110, %v4109
        %v4126 = vpack.c.b16 %v4112, %v4111
        %v4127 = vpack.c.b16 %v4114, %v4113
        %v4128 = vpack.c.b16 %v4116, %v4115
        %v4129 = vpack.c.b16 %v4118, %v4117
        %v4130 = vpack.c.b16 %v4120, %v4119
        %v4131 = vpack.c.b16 %v4122, %v4121
        %v4132 = vpack.c.b16 %v4124, %v4123
        %4141 = vmatprep.subr.bf16.mxu0 0
        %4142 = vmatpush1.bf16.msra.mxu0 %v4125
        %4143 = vmatprep.subr.bf16.mxu0 0
        %4144 = vmatpush1.bf16.msra.mxu0 %v4126
        %4145 = vmatprep.subr.bf16.mxu0 0
        %4146 = vmatpush1.bf16.msra.mxu0 %v4127
        %4147 = vmatprep.subr.bf16.mxu0 0
        %4148 = vmatpush1.bf16.msra.mxu0 %v4128
        %4149 = vmatprep.subr.bf16.mxu0 0
        %4150 = vmatpush1.bf16.msra.mxu0 %v4129
        %4151 = vmatprep.subr.bf16.mxu0 0
        %4152 = vmatpush1.bf16.msra.mxu0 %v4130
        %4153 = vmatprep.subr.bf16.mxu0 0
        %4154 = vmatpush1.bf16.msra.mxu0 %v4131
        %4155 = vmatprep.subr.bf16.mxu0 0
        %4156 = vmatpush1.bf16.msra.mxu0 %v4132
        %4157 = vmatprep.subr.bf16.mxu0 0
        %4158 = vmatpush1.bf16.msra.mxu0 0
        %4159 = vmatprep.subr.bf16.mxu0 0
        %4160 = vmatpush1.bf16.msra.mxu0 0
        %4161 = vmatprep.subr.bf16.mxu0 0
        %4162 = vmatpush1.bf16.msra.mxu0 0
        %4163 = vmatprep.subr.bf16.mxu0 0
        %4164 = vmatpush1.bf16.msra.mxu0 0
        %4165 = vmatprep.subr.bf16.mxu0 0
        %4166 = vmatpush1.bf16.msra.mxu0 0
        %4167 = vmatprep.subr.bf16.mxu0 0
        %4168 = vmatpush1.bf16.msra.mxu0 0
        %4169 = vmatprep.subr.bf16.mxu0 0
        %4170 = vmatpush1.bf16.msra.mxu0 0
        %4171 = vmatprep.subr.bf16.mxu0 0
        %4172 = vmatpush1.bf16.msra.mxu0 0
        %4173 = vmatprep.mubr.bf16.mxu0 0
        %4174 = vmatmul.mubr.bf16.gmra.mrb[0].mxu0 %v4054
        %v4175 = vpop.f32.mrb[0].mxu0
        %v4176 = vadd.f32 %v4091, %v4175
        %v4177 = vpop.f32.mrb[0].mxu0
        %v4178 = vpop.f32.mrb[0].mxu0
        %v4179 = vadd.f32 %v4091, %v4178
        %v4180 = vpop.f32.mrb[0].mxu0
        %4181 = vmatprep.mubr.bf16.mxu0 0
        %4182 = vmatmul.mubr.bf16.gmra.mrb[0].mxu0 %v4055
        %v4183 = vpop.f32.mrb[0].mxu0
        %v4184 = vadd.f32 %v4091, %v4183
        %v4185 = vpop.f32.mrb[0].mxu0
        %v4186 = vpop.f32.mrb[0].mxu0
        %v4187 = vadd.f32 %v4091, %v4186
        %v4188 = vpop.f32.mrb[0].mxu0
        %4189 = vmatprep.mubr.bf16.mxu0 0
        %4190 = vmatmul.mubr.bf16.gmra.mrb[0].mxu0 %v4056
        %v4191 = vpop.f32.mrb[0].mxu0
        %v4192 = vadd.f32 %v4091, %v4191
        %v4193 = vpop.f32.mrb[0].mxu0
        %v4194 = vpop.f32.mrb[0].mxu0
        %v4195 = vadd.f32 %v4091, %v4194
        %v4196 = vpop.f32.mrb[0].mxu0
        %4197 = vmatprep.mubr.bf16.mxu0 0
        %4198 = vmatmul.mubr.bf16.gmra.mrb[0].mxu0 %v4057
        %v4199 = vpop.f32.mrb[0].mxu0
        %v4200 = vadd.f32 %v4091, %v4199
        %v4201 = vpop.f32.mrb[0].mxu0
        %v4202 = vpop.f32.mrb[0].mxu0
        %v4203 = vadd.f32 %v4091, %v4202
        %v4204 = vpop.f32.mrb[0].mxu0
        %4205 = vmatprep.mubr.bf16.mxu0 0
        %4206 = vmatmul.mubr.bf16.gmra.mrb[0].mxu0 %v4058
        %v4207 = vpop.f32.mrb[0].mxu0
        %v4208 = vadd.f32 %v4091, %v4207
        %v4209 = vpop.f32.mrb[0].mxu0
        %v4210 = vpop.f32.mrb[0].mxu0
        %v4211 = vadd.f32 %v4091, %v4210
        %v4212 = vpop.f32.mrb[0].mxu0
        %4213 = vmatprep.mubr.bf16.mxu0 0
        %4214 = vmatmul.mubr.bf16.gmra.mrb[0].mxu0 %v4059
        %v4215 = vpop.f32.mrb[0].mxu0
        %v4216 = vadd.f32 %v4091, %v4215
        %v4217 = vpop.f32.mrb[0].mxu0
        %v4218 = vpop.f32.mrb[0].mxu0
        %v4219 = vadd.f32 %v4091, %v4218
        %v4220 = vpop.f32.mrb[0].mxu0
        %4221 = vmatprep.mubr.bf16.mxu0 0
        %4222 = vmatmul.mubr.bf16.gmra.mrb[0].mxu0 %v4060
        %v4223 = vpop.f32.mrb[0].mxu0
        %v4224 = vadd.f32 %v4091, %v4223
        %v4225 = vpop.f32.mrb[0].mxu0
        %v4226 = vpop.f32.mrb[0].mxu0
        %v4227 = vadd.f32 %v4091, %v4226
        %v4228 = vpop.f32.mrb[0].mxu0
        %4229 = vmatprep.mubr.bf16.mxu0 0
        %4230 = vmatmul.mubr.bf16.gmra.mrb[0].mxu0 %v4061
        %v4231 = vpop.f32.mrb[0].mxu0
        %v4232 = vadd.f32 %v4091, %v4231
        %v4233 = vpop.f32.mrb[0].mxu0
        %v4234 = vpop.f32.mrb[0].mxu0
        %v4235 = vadd.f32 %v4091, %v4234
        %v4236 = vpop.f32.mrb[0].mxu0
        %4237 = vmatprep.mubr.bf16.mxu0 0
        %4238 = vmatmul.mubr.bf16.gmra.mrb[0].mxu0 %v4062
        %v4239 = vpop.f32.mrb[0].mxu0
        %v4240 = vadd.f32 %v4091, %v4239
        %v4241 = vpop.f32.mrb[0].mxu0
        %v4242 = vpop.f32.mrb[0].mxu0
        %v4243 = vadd.f32 %v4091, %v4242
        %v4244 = vpop.f32.mrb[0].mxu0
        %4245 = vmatprep.mubr.bf16.mxu0 0
        %4246 = vmatmul.mubr.bf16.gmra.mrb[0].mxu0 %v4063
        %v4247 = vpop.f32.mrb[0].mxu0
        %v4248 = vadd.f32 %v4091, %v4247
        %v4249 = vpop.f32.mrb[0].mxu0
        %v4250 = vpop.f32.mrb[0].mxu0
        %v4251 = vadd.f32 %v4091, %v4250
        %v4252 = vpop.f32.mrb[0].mxu0
        %4253 = vmatprep.mubr.bf16.mxu0 0
        %4254 = vmatmul.mubr.bf16.gmra.mrb[0].mxu0 %v4064
        %v4255 = vpop.f32.mrb[0].mxu0
        %v4256 = vadd.f32 %v4091, %v4255
        %v4257 = vpop.f32.mrb[0].mxu0
        %v4258 = vpop.f32.mrb[0].mxu0
        %v4259 = vadd.f32 %v4091, %v4258
        %v4260 = vpop.f32.mrb[0].mxu0
        %4261 = vmatprep.mubr.bf16.mxu0 0
        %4262 = vmatmul.mubr.bf16.gmra.mrb[0].mxu0 %v4065
        %v4263 = vpop.f32.mrb[0].mxu0
        %v4264 = vadd.f32 %v4091, %v4263
        %v4265 = vpop.f32.mrb[0].mxu0
        %v4266 = vpop.f32.mrb[0].mxu0
        %v4267 = vadd.f32 %v4091, %v4266
        %v4268 = vpop.f32.mrb[0].mxu0
        %4269 = vmatprep.mubr.bf16.mxu0 0
        %4270 = vmatmul.mubr.bf16.gmra.mrb[0].mxu0 %v4066
        %v4271 = vpop.f32.mrb[0].mxu0
        %v4272 = vadd.f32 %v4091, %v4271
        %v4273 = vpop.f32.mrb[0].mxu0
        %v4274 = vpop.f32.mrb[0].mxu0
        %v4275 = vadd.f32 %v4091, %v4274
        %v4276 = vpop.f32.mrb[0].mxu0
        %4277 = vmatprep.mubr.bf16.mxu0 0
        %4278 = vmatmul.mubr.bf16.gmra.mrb[0].mxu0 %v4067
        %v4279 = vpop.f32.mrb[0].mxu0
        %v4280 = vadd.f32 %v4091, %v4279
        %v4281 = vpop.f32.mrb[0].mxu0
        %v4282 = vpop.f32.mrb[0].mxu0
        %v4283 = vadd.f32 %v4091, %v4282
        %v4284 = vpop.f32.mrb[0].mxu0
        %4285 = vmatprep.mubr.bf16.mxu0 0
        %4286 = vmatmul.mubr.bf16.gmra.mrb[0].mxu0 %v4068
        %v4287 = vpop.f32.mrb[0].mxu0
        %v4288 = vadd.f32 %v4091, %v4287
        %v4289 = vpop.f32.mrb[0].mxu0
        %v4290 = vpop.f32.mrb[0].mxu0
        %v4291 = vadd.f32 %v4091, %v4290
        %v4292 = vpop.f32.mrb[0].mxu0
        %4293 = vmatprep.mubr.bf16.mxu0 0
        %4294 = vmatmul.mubr.bf16.gmra.mrb[0].mxu0 %v4069
        %v4295 = vpop.f32.mrb[0].mxu0
        %v4296 = vadd.f32 %v4091, %v4295
        %v4297 = vpop.f32.mrb[0].mxu0
        %v4298 = vpop.f32.mrb[0].mxu0
        %v4299 = vadd.f32 %v4091, %v4298
        %v4300 = vpop.f32.mrb[0].mxu0
        %4301 = vdwg.mxu0
        %v4302 = vsel %vm3557, %v4176, 0.0
        %4303 = vadd.xlane.f32.xlu0 %v4302
        %v4304 = vpop.xlane.xlu0 %4303
        %v4305 = vsel %vm3557, %v4179, 0.0
        %4306 = vadd.xlane.f32.xlu0 %v4305
        %v4307 = vpop.xlane.xlu0 %4306
        %v4308 = vsel %vm3557, %v4184, 0.0
        %4309 = vadd.xlane.f32.xlu0 %v4308
        %v4310 = vpop.xlane.xlu0 %4309
        %v4311 = vsel %vm3557, %v4187, 0.0
        %4312 = vadd.xlane.f32.xlu0 %v4311
        %v4313 = vpop.xlane.xlu0 %4312
        %v4314 = vsel %vm3557, %v4192, 0.0
        %4315 = vadd.xlane.f32.xlu0 %v4314
        %v4316 = vpop.xlane.xlu0 %4315
        %v4317 = vsel %vm3557, %v4195, 0.0
        %4318 = vadd.xlane.f32.xlu0 %v4317
        %v4319 = vpop.xlane.xlu0 %4318
        %v4320 = vsel %vm3557, %v4200, 0.0
        %4321 = vadd.xlane.f32.xlu0 %v4320
        %v4322 = vpop.xlane.xlu0 %4321
        %v4323 = vsel %vm3557, %v4203, 0.0
        %4324 = vadd.xlane.f32.xlu0 %v4323
        %v4325 = vpop.xlane.xlu0 %4324
        %v4326 = vsel %vm3557, %v4208, 0.0
        %4327 = vadd.xlane.f32.xlu0 %v4326
        %v4328 = vpop.xlane.xlu0 %4327
        %v4329 = vsel %vm3557, %v4211, 0.0
        %4330 = vadd.xlane.f32.xlu0 %v4329
        %v4331 = vpop.xlane.xlu0 %4330
        %v4332 = vsel %vm3557, %v4216, 0.0
        %4333 = vadd.xlane.f32.xlu0 %v4332
        %v4334 = vpop.xlane.xlu0 %4333
        %v4335 = vsel %vm3557, %v4219, 0.0
        %4336 = vadd.xlane.f32.xlu0 %v4335
        %v4337 = vpop.xlane.xlu0 %4336
        %v4338 = vsel %vm3557, %v4224, 0.0
        %4339 = vadd.xlane.f32.xlu0 %v4338
        %v4340 = vpop.xlane.xlu0 %4339
        %v4341 = vsel %vm3557, %v4227, 0.0
        %4342 = vadd.xlane.f32.xlu0 %v4341
        %v4343 = vpop.xlane.xlu0 %4342
        %v4344 = vsel %vm3557, %v4232, 0.0
        %4345 = vadd.xlane.f32.xlu0 %v4344
        %v4346 = vpop.xlane.xlu0 %4345
        %v4347 = vsel %vm3557, %v4235, 0.0
        %4348 = vadd.xlane.f32.xlu0 %v4347
        %v4349 = vpop.xlane.xlu0 %4348
        %v4350 = vsel %vm3557, %v4240, 0.0
        %4351 = vadd.xlane.f32.xlu0 %v4350
        %v4352 = vpop.xlane.xlu0 %4351
        %v4353 = vsel %vm3557, %v4243, 0.0
        %4354 = vadd.xlane.f32.xlu0 %v4353
        %v4355 = vpop.xlane.xlu0 %4354
        %v4356 = vsel %vm3557, %v4248, 0.0
        %4357 = vadd.xlane.f32.xlu0 %v4356
        %v4358 = vpop.xlane.xlu0 %4357
        %v4359 = vsel %vm3557, %v4251, 0.0
        %4360 = vadd.xlane.f32.xlu0 %v4359
        %v4361 = vpop.xlane.xlu0 %4360
        %v4362 = vsel %vm3557, %v4256, 0.0
        %4363 = vadd.xlane.f32.xlu0 %v4362
        %v4364 = vpop.xlane.xlu0 %4363
        %v4365 = vsel %vm3557, %v4259, 0.0
        %4366 = vadd.xlane.f32.xlu0 %v4365
        %v4367 = vpop.xlane.xlu0 %4366
        %v4368 = vsel %vm3557, %v4264, 0.0
        %4369 = vadd.xlane.f32.xlu0 %v4368
        %v4370 = vpop.xlane.xlu0 %4369
        %v4371 = vsel %vm3557, %v4267, 0.0
        %4372 = vadd.xlane.f32.xlu0 %v4371
        %v4373 = vpop.xlane.xlu0 %4372
        %v4374 = vsel %vm3557, %v4272, 0.0
        %4375 = vadd.xlane.f32.xlu0 %v4374
        %v4376 = vpop.xlane.xlu0 %4375
        %v4377 = vsel %vm3557, %v4275, 0.0
        %4378 = vadd.xlane.f32.xlu0 %v4377
        %v4379 = vpop.xlane.xlu0 %4378
        %v4380 = vsel %vm3557, %v4280, 0.0
        %4381 = vadd.xlane.f32.xlu0 %v4380
        %v4382 = vpop.xlane.xlu0 %4381
        %v4383 = vsel %vm3557, %v4283, 0.0
        %4384 = vadd.xlane.f32.xlu0 %v4383
        %v4385 = vpop.xlane.xlu0 %4384
        %v4386 = vsel %vm3557, %v4288, 0.0
        %4387 = vadd.xlane.f32.xlu0 %v4386
        %v4388 = vpop.xlane.xlu0 %4387
        %v4389 = vsel %vm3557, %v4291, 0.0
        %4390 = vadd.xlane.f32.xlu0 %v4389
        %v4391 = vpop.xlane.xlu0 %4390
        %v4392 = vsel %vm3557, %v4296, 0.0
        %4393 = vadd.xlane.f32.xlu0 %v4392
        %v4394 = vpop.xlane.xlu0 %4393
        %v4395 = vsel %vm3557, %v4299, 0.0
        %4396 = vadd.xlane.f32.xlu0 %v4395
        %v4397 = vpop.xlane.xlu0 %4396
        %v4398 = vrcp.pop 32.0
        %v4399 = vmul.f32 %v4304, %v4398
        %v4400 = vmul.f32 %v4307, %v4398
        %v4401 = vmul.f32 %v4310, %v4398
        %v4402 = vmul.f32 %v4313, %v4398
        %v4403 = vmul.f32 %v4316, %v4398
        %v4404 = vmul.f32 %v4319, %v4398
        %v4405 = vmul.f32 %v4322, %v4398
        %v4406 = vmul.f32 %v4325, %v4398
        %v4407 = vmul.f32 %v4328, %v4398
        %v4408 = vmul.f32 %v4331, %v4398
        %v4409 = vmul.f32 %v4334, %v4398
        %v4410 = vmul.f32 %v4337, %v4398
        %v4411 = vmul.f32 %v4340, %v4398
        %v4412 = vmul.f32 %v4343, %v4398
        %v4413 = vmul.f32 %v4346, %v4398
        %v4414 = vmul.f32 %v4349, %v4398
        %v4415 = vmul.f32 %v4352, %v4398
        %v4416 = vmul.f32 %v4355, %v4398
        %v4417 = vmul.f32 %v4358, %v4398
        %v4418 = vmul.f32 %v4361, %v4398
        %v4419 = vmul.f32 %v4364, %v4398
        %v4420 = vmul.f32 %v4367, %v4398
        %v4421 = vmul.f32 %v4370, %v4398
        %v4422 = vmul.f32 %v4373, %v4398
        %v4423 = vmul.f32 %v4376, %v4398
        %v4424 = vmul.f32 %v4379, %v4398
        %v4425 = vmul.f32 %v4382, %v4398
        %v4426 = vmul.f32 %v4385, %v4398
        %v4427 = vmul.f32 %v4388, %v4398
        %v4428 = vmul.f32 %v4391, %v4398
        %v4429 = vmul.f32 %v4394, %v4398
        %v4430 = vmul.f32 %v4397, %v4398
        %v4431 = vsub.f32 %v4176, %v4399
        %v4432 = vsub.f32 %v4179, %v4400
        %v4433 = vsub.f32 %v4184, %v4401
        %v4434 = vsub.f32 %v4187, %v4402
        %v4435 = vsub.f32 %v4192, %v4403
        %v4436 = vsub.f32 %v4195, %v4404
        %v4437 = vsub.f32 %v4200, %v4405
        %v4438 = vsub.f32 %v4203, %v4406
        %v4439 = vsub.f32 %v4208, %v4407
        %v4440 = vsub.f32 %v4211, %v4408
        %v4441 = vsub.f32 %v4216, %v4409
        %v4442 = vsub.f32 %v4219, %v4410
        %v4443 = vsub.f32 %v4224, %v4411
        %v4444 = vsub.f32 %v4227, %v4412
        %v4445 = vsub.f32 %v4232, %v4413
        %v4446 = vsub.f32 %v4235, %v4414
        %v4447 = vsub.f32 %v4240, %v4415
        %v4448 = vsub.f32 %v4243, %v4416
        %v4449 = vsub.f32 %v4248, %v4417
        %v4450 = vsub.f32 %v4251, %v4418
        %v4451 = vsub.f32 %v4256, %v4419
        %v4452 = vsub.f32 %v4259, %v4420
        %v4453 = vsub.f32 %v4264, %v4421
        %v4454 = vsub.f32 %v4267, %v4422
        %v4455 = vsub.f32 %v4272, %v4423
        %v4456 = vsub.f32 %v4275, %v4424
        %v4457 = vsub.f32 %v4280, %v4425
        %v4458 = vsub.f32 %v4283, %v4426
        %v4459 = vsub.f32 %v4288, %v4427
        %v4460 = vsub.f32 %v4291, %v4428
        %v4461 = vsub.f32 %v4296, %v4429
        %v4462 = vsub.f32 %v4299, %v4430
        %v4463 = vmul.f32 %v4431, %v4431
        %v4464 = vmul.f32 %v4432, %v4432
        %v4465 = vmul.f32 %v4433, %v4433
        %v4466 = vmul.f32 %v4434, %v4434
        %v4467 = vmul.f32 %v4435, %v4435
        %v4468 = vmul.f32 %v4436, %v4436
        %v4469 = vmul.f32 %v4437, %v4437
        %v4470 = vmul.f32 %v4438, %v4438
        %v4471 = vmul.f32 %v4439, %v4439
        %v4472 = vmul.f32 %v4440, %v4440
        %v4473 = vmul.f32 %v4441, %v4441
        %v4474 = vmul.f32 %v4442, %v4442
        %v4475 = vmul.f32 %v4443, %v4443
        %v4476 = vmul.f32 %v4444, %v4444
        %v4477 = vmul.f32 %v4445, %v4445
        %v4478 = vmul.f32 %v4446, %v4446
        %v4479 = vmul.f32 %v4447, %v4447
        %v4480 = vmul.f32 %v4448, %v4448
        %v4481 = vmul.f32 %v4449, %v4449
        %v4482 = vmul.f32 %v4450, %v4450
        %v4483 = vmul.f32 %v4451, %v4451
        %v4484 = vmul.f32 %v4452, %v4452
        %v4485 = vmul.f32 %v4453, %v4453
        %v4486 = vmul.f32 %v4454, %v4454
        %v4487 = vmul.f32 %v4455, %v4455
        %v4488 = vmul.f32 %v4456, %v4456
        %v4489 = vmul.f32 %v4457, %v4457
        %v4490 = vmul.f32 %v4458, %v4458
        %v4491 = vmul.f32 %v4459, %v4459
        %v4492 = vmul.f32 %v4460, %v4460
        %v4493 = vmul.f32 %v4461, %v4461
        %v4494 = vmul.f32 %v4462, %v4462
        %v4495 = vsel %vm3557, %v4463, 0.0
        %4496 = vadd.xlane.f32.xlu0 %v4495
        %v4497 = vpop.xlane.xlu0 %4496
        %v4498 = vsel %vm3557, %v4464, 0.0
        %4499 = vadd.xlane.f32.xlu0 %v4498
        %v4500 = vpop.xlane.xlu0 %4499
        %v4501 = vsel %vm3557, %v4465, 0.0
        %4502 = vadd.xlane.f32.xlu0 %v4501
        %v4503 = vpop.xlane.xlu0 %4502
        %v4504 = vsel %vm3557, %v4466, 0.0
        %4505 = vadd.xlane.f32.xlu0 %v4504
        %v4506 = vpop.xlane.xlu0 %4505
        %v4507 = vsel %vm3557, %v4467, 0.0
        %4508 = vadd.xlane.f32.xlu0 %v4507
        %v4509 = vpop.xlane.xlu0 %4508
        %v4510 = vsel %vm3557, %v4468, 0.0
        %4511 = vadd.xlane.f32.xlu0 %v4510
        %v4512 = vpop.xlane.xlu0 %4511
        %v4513 = vsel %vm3557, %v4469, 0.0
        %4514 = vadd.xlane.f32.xlu0 %v4513
        %v4515 = vpop.xlane.xlu0 %4514
        %v4516 = vsel %vm3557, %v4470, 0.0
        %4517 = vadd.xlane.f32.xlu0 %v4516
        %v4518 = vpop.xlane.xlu0 %4517
        %v4519 = vsel %vm3557, %v4471, 0.0
        %4520 = vadd.xlane.f32.xlu0 %v4519
        %v4521 = vpop.xlane.xlu0 %4520
        %v4522 = vsel %vm3557, %v4472, 0.0
        %4523 = vadd.xlane.f32.xlu0 %v4522
        %v4524 = vpop.xlane.xlu0 %4523
        %v4525 = vsel %vm3557, %v4473, 0.0
        %4526 = vadd.xlane.f32.xlu0 %v4525
        %v4527 = vpop.xlane.xlu0 %4526
        %v4528 = vsel %vm3557, %v4474, 0.0
        %4529 = vadd.xlane.f32.xlu0 %v4528
        %v4530 = vpop.xlane.xlu0 %4529
        %v4531 = vsel %vm3557, %v4475, 0.0
        %4532 = vadd.xlane.f32.xlu0 %v4531
        %v4533 = vpop.xlane.xlu0 %4532
        %v4534 = vsel %vm3557, %v4476, 0.0
        %4535 = vadd.xlane.f32.xlu0 %v4534
        %v4536 = vpop.xlane.xlu0 %4535
        %v4537 = vsel %vm3557, %v4477, 0.0
        %4538 = vadd.xlane.f32.xlu0 %v4537
        %v4539 = vpop.xlane.xlu0 %4538
        %v4540 = vsel %vm3557, %v4478, 0.0
        %4541 = vadd.xlane.f32.xlu0 %v4540
        %v4542 = vpop.xlane.xlu0 %4541
        %v4543 = vsel %vm3557, %v4479, 0.0
        %4544 = vadd.xlane.f32.xlu0 %v4543
        %v4545 = vpop.xlane.xlu0 %4544
        %v4546 = vsel %vm3557, %v4480, 0.0
        %4547 = vadd.xlane.f32.xlu0 %v4546
        %v4548 = vpop.xlane.xlu0 %4547
        %v4549 = vsel %vm3557, %v4481, 0.0
        %4550 = vadd.xlane.f32.xlu0 %v4549
        %v4551 = vpop.xlane.xlu0 %4550
        %v4552 = vsel %vm3557, %v4482, 0.0
        %4553 = vadd.xlane.f32.xlu0 %v4552
        %v4554 = vpop.xlane.xlu0 %4553
        %v4555 = vsel %vm3557, %v4483, 0.0
        %4556 = vadd.xlane.f32.xlu0 %v4555
        %v4557 = vpop.xlane.xlu0 %4556
        %v4558 = vsel %vm3557, %v4484, 0.0
        %4559 = vadd.xlane.f32.xlu0 %v4558
        %v4560 = vpop.xlane.xlu0 %4559
        %v4561 = vsel %vm3557, %v4485, 0.0
        %4562 = vadd.xlane.f32.xlu0 %v4561
        %v4563 = vpop.xlane.xlu0 %4562
        %v4564 = vsel %vm3557, %v4486, 0.0
        %4565 = vadd.xlane.f32.xlu0 %v4564
        %v4566 = vpop.xlane.xlu0 %4565
        %v4567 = vsel %vm3557, %v4487, 0.0
        %4568 = vadd.xlane.f32.xlu0 %v4567
        %v4569 = vpop.xlane.xlu0 %4568
        %v4570 = vsel %vm3557, %v4488, 0.0
        %4571 = vadd.xlane.f32.xlu0 %v4570
        %v4572 = vpop.xlane.xlu0 %4571
        %v4573 = vsel %vm3557, %v4489, 0.0
        %4574 = vadd.xlane.f32.xlu0 %v4573
        %v4575 = vpop.xlane.xlu0 %4574
        %v4576 = vsel %vm3557, %v4490, 0.0
        %4577 = vadd.xlane.f32.xlu0 %v4576
        %v4578 = vpop.xlane.xlu0 %4577
        %v4579 = vsel %vm3557, %v4491, 0.0
        %4580 = vadd.xlane.f32.xlu0 %v4579
        %v4581 = vpop.xlane.xlu0 %4580
        %v4582 = vsel %vm3557, %v4492, 0.0
        %4583 = vadd.xlane.f32.xlu0 %v4582
        %v4584 = vpop.xlane.xlu0 %4583
        %v4585 = vsel %vm3557, %v4493, 0.0
        %4586 = vadd.xlane.f32.xlu0 %v4585
        %v4587 = vpop.xlane.xlu0 %4586
        %v4588 = vsel %vm3557, %v4494, 0.0
        %4589 = vadd.xlane.f32.xlu0 %v4588
        %v4590 = vpop.xlane.xlu0 %4589
        %v4591 = vmul.f32 %v4497, %v4398
        %v4592 = vmul.f32 %v4500, %v4398
        %v4593 = vmul.f32 %v4503, %v4398
        %v4594 = vmul.f32 %v4506, %v4398
        %v4595 = vmul.f32 %v4509, %v4398
        %v4596 = vmul.f32 %v4512, %v4398
        %v4597 = vmul.f32 %v4515, %v4398
        %v4598 = vmul.f32 %v4518, %v4398
        %v4599 = vmul.f32 %v4521, %v4398
        %v4600 = vmul.f32 %v4524, %v4398
        %v4601 = vmul.f32 %v4527, %v4398
        %v4602 = vmul.f32 %v4530, %v4398
        %v4603 = vmul.f32 %v4533, %v4398
        %v4604 = vmul.f32 %v4536, %v4398
        %v4605 = vmul.f32 %v4539, %v4398
        %v4606 = vmul.f32 %v4542, %v4398
        %v4607 = vmul.f32 %v4545, %v4398
        %v4608 = vmul.f32 %v4548, %v4398
        %v4609 = vmul.f32 %v4551, %v4398
        %v4610 = vmul.f32 %v4554, %v4398
        %v4611 = vmul.f32 %v4557, %v4398
        %v4612 = vmul.f32 %v4560, %v4398
        %v4613 = vmul.f32 %v4563, %v4398
        %v4614 = vmul.f32 %v4566, %v4398
        %v4615 = vmul.f32 %v4569, %v4398
        %v4616 = vmul.f32 %v4572, %v4398
        %v4617 = vmul.f32 %v4575, %v4398
        %v4618 = vmul.f32 %v4578, %v4398
        %v4619 = vmul.f32 %v4581, %v4398
        %v4620 = vmul.f32 %v4584, %v4398
        %v4621 = vmul.f32 %v4587, %v4398
        %v4622 = vmul.f32 %v4590, %v4398
        %v4623 = vadd.f32 %v4591, 1e-05
        %v4624 = vadd.f32 %v4592, 1e-05
        %v4625 = vadd.f32 %v4593, 1e-05
        %v4626 = vadd.f32 %v4594, 1e-05
        %v4627 = vadd.f32 %v4595, 1e-05
        %v4628 = vadd.f32 %v4596, 1e-05
        %v4629 = vadd.f32 %v4597, 1e-05
        %v4630 = vadd.f32 %v4598, 1e-05
        %v4631 = vadd.f32 %v4599, 1e-05
        %v4632 = vadd.f32 %v4600, 1e-05
        %v4633 = vadd.f32 %v4601, 1e-05
        %v4634 = vadd.f32 %v4602, 1e-05
        %v4635 = vadd.f32 %v4603, 1e-05
        %v4636 = vadd.f32 %v4604, 1e-05
        %v4637 = vadd.f32 %v4605, 1e-05
        %v4638 = vadd.f32 %v4606, 1e-05
        %v4639 = vadd.f32 %v4607, 1e-05
        %v4640 = vadd.f32 %v4608, 1e-05
        %v4641 = vadd.f32 %v4609, 1e-05
        %v4642 = vadd.f32 %v4610, 1e-05
        %v4643 = vadd.f32 %v4611, 1e-05
        %v4644 = vadd.f32 %v4612, 1e-05
        %v4645 = vadd.f32 %v4613, 1e-05
        %v4646 = vadd.f32 %v4614, 1e-05
        %v4647 = vadd.f32 %v4615, 1e-05
        %v4648 = vadd.f32 %v4616, 1e-05
        %v4649 = vadd.f32 %v4617, 1e-05
        %v4650 = vadd.f32 %v4618, 1e-05
        %v4651 = vadd.f32 %v4619, 1e-05
        %v4652 = vadd.f32 %v4620, 1e-05
        %v4653 = vadd.f32 %v4621, 1e-05
        %v4654 = vadd.f32 %v4622, 1e-05
        %v4655 = vrsqrt.pop %v4623
        %v4656 = vrsqrt.pop %v4624
        %v4657 = vrsqrt.pop %v4625
        %v4658 = vrsqrt.pop %v4626
        %v4659 = vrsqrt.pop %v4627
        %v4660 = vrsqrt.pop %v4628
        %v4661 = vrsqrt.pop %v4629
        %v4662 = vrsqrt.pop %v4630
        %v4663 = vrsqrt.pop %v4631
        %v4664 = vrsqrt.pop %v4632
        %v4665 = vrsqrt.pop %v4633
        %v4666 = vrsqrt.pop %v4634
        %v4667 = vrsqrt.pop %v4635
        %v4668 = vrsqrt.pop %v4636
        %v4669 = vrsqrt.pop %v4637
        %v4670 = vrsqrt.pop %v4638
        %v4671 = vrsqrt.pop %v4639
        %v4672 = vrsqrt.pop %v4640
        %v4673 = vrsqrt.pop %v4641
        %v4674 = vrsqrt.pop %v4642
        %v4675 = vrsqrt.pop %v4643
        %v4676 = vrsqrt.pop %v4644
        %v4677 = vrsqrt.pop %v4645
        %v4678 = vrsqrt.pop %v4646
        %v4679 = vrsqrt.pop %v4647
        %v4680 = vrsqrt.pop %v4648
        %v4681 = vrsqrt.pop %v4649
        %v4682 = vrsqrt.pop %v4650
        %v4683 = vrsqrt.pop %v4651
        %v4684 = vrsqrt.pop %v4652
        %v4685 = vrsqrt.pop %v4653
        %v4686 = vrsqrt.pop %v4654
        %v4687 = vmul.f32 %v4431, %v4655
        %v4688 = vmul.f32 %v4432, %v4656
        %v4689 = vmul.f32 %v4433, %v4657
        %v4690 = vmul.f32 %v4434, %v4658
        %v4691 = vmul.f32 %v4435, %v4659
        %v4692 = vmul.f32 %v4436, %v4660
        %v4693 = vmul.f32 %v4437, %v4661
        %v4694 = vmul.f32 %v4438, %v4662
        %v4695 = vmul.f32 %v4439, %v4663
        %v4696 = vmul.f32 %v4440, %v4664
        %v4697 = vmul.f32 %v4441, %v4665
        %v4698 = vmul.f32 %v4442, %v4666
        %v4699 = vmul.f32 %v4443, %v4667
        %v4700 = vmul.f32 %v4444, %v4668
        %v4701 = vmul.f32 %v4445, %v4669
        %v4702 = vmul.f32 %v4446, %v4670
        %v4703 = vmul.f32 %v4447, %v4671
        %v4704 = vmul.f32 %v4448, %v4672
        %v4705 = vmul.f32 %v4449, %v4673
        %v4706 = vmul.f32 %v4450, %v4674
        %v4707 = vmul.f32 %v4451, %v4675
        %v4708 = vmul.f32 %v4452, %v4676
        %v4709 = vmul.f32 %v4453, %v4677
        %v4710 = vmul.f32 %v4454, %v4678
        %v4711 = vmul.f32 %v4455, %v4679
        %v4712 = vmul.f32 %v4456, %v4680
        %v4713 = vmul.f32 %v4457, %v4681
        %v4714 = vmul.f32 %v4458, %v4682
        %v4715 = vmul.f32 %v4459, %v4683
        %v4716 = vmul.f32 %v4460, %v4684
        %v4717 = vmul.f32 %v4461, %v4685
        %v4718 = vmul.f32 %v4462, %v4686
        %v4719 = vld [vmem:[%s11] sm:$0x1]
        %v4721 = vlaneseq
        %v4722 = vshrl.u32 %v4721, 7
        %v4723 = vsub.s32 0, %v4722
        %v4724 = vrot.slane %v4719, %v4723
        %v4726 = vmul.f32 %v4687, %v4724
        %v4727 = vmul.f32 %v4688, %v4724
        %v4728 = vmul.f32 %v4689, %v4724
        %v4729 = vmul.f32 %v4690, %v4724
        %v4730 = vmul.f32 %v4691, %v4724
        %v4731 = vmul.f32 %v4692, %v4724
        %v4732 = vmul.f32 %v4693, %v4724
        %v4733 = vmul.f32 %v4694, %v4724
        %v4734 = vmul.f32 %v4695, %v4724
        %v4735 = vmul.f32 %v4696, %v4724
        %v4736 = vmul.f32 %v4697, %v4724
        %v4737 = vmul.f32 %v4698, %v4724
        %v4738 = vmul.f32 %v4699, %v4724
        %v4739 = vmul.f32 %v4700, %v4724
        %v4740 = vmul.f32 %v4701, %v4724
        %v4741 = vmul.f32 %v4702, %v4724
        %v4742 = vmul.f32 %v4703, %v4724
        %v4743 = vmul.f32 %v4704, %v4724
        %v4744 = vmul.f32 %v4705, %v4724
        %v4745 = vmul.f32 %v4706, %v4724
        %v4746 = vmul.f32 %v4707, %v4724
        %v4747 = vmul.f32 %v4708, %v4724
        %v4748 = vmul.f32 %v4709, %v4724
        %v4749 = vmul.f32 %v4710, %v4724
        %v4750 = vmul.f32 %v4711, %v4724
        %v4751 = vmul.f32 %v4712, %v4724
        %v4752 = vmul.f32 %v4713, %v4724
        %v4753 = vmul.f32 %v4714, %v4724
        %v4754 = vmul.f32 %v4715, %v4724
        %v4755 = vmul.f32 %v4716, %v4724
        %v4756 = vmul.f32 %v4717, %v4724
        %v4757 = vmul.f32 %v4718, %v4724
        %v4758 = vld [vmem:[%s12] sm:$0x1]
        %v4760 = vlaneseq
        %v4761 = vshrl.u32 %v4760, 7
        %v4762 = vsub.s32 0, %v4761
        %v4763 = vrot.slane %v4758, %v4762
        %v4765 = vadd.f32 %v4726, %v4763
        %v4766 = vadd.f32 %v4727, %v4763
        %v4767 = vadd.f32 %v4728, %v4763
        %v4768 = vadd.f32 %v4729, %v4763
        %v4769 = vadd.f32 %v4730, %v4763
        %v4770 = vadd.f32 %v4731, %v4763
        %v4771 = vadd.f32 %v4732, %v4763
        %v4772 = vadd.f32 %v4733, %v4763
        %v4773 = vadd.f32 %v4734, %v4763
        %v4774 = vadd.f32 %v4735, %v4763
        %v4775 = vadd.f32 %v4736, %v4763
        %v4776 = vadd.f32 %v4737, %v4763
        %v4777 = vadd.f32 %v4738, %v4763
        %v4778 = vadd.f32 %v4739, %v4763
        %v4779 = vadd.f32 %v4740, %v4763
        %v4780 = vadd.f32 %v4741, %v4763
        %v4781 = vadd.f32 %v4742, %v4763
        %v4782 = vadd.f32 %v4743, %v4763
        %v4783 = vadd.f32 %v4744, %v4763
        %v4784 = vadd.f32 %v4745, %v4763
        %v4785 = vadd.f32 %v4746, %v4763
        %v4786 = vadd.f32 %v4747, %v4763
        %v4787 = vadd.f32 %v4748, %v4763
        %v4788 = vadd.f32 %v4749, %v4763
        %v4789 = vadd.f32 %v4750, %v4763
        %v4790 = vadd.f32 %v4751, %v4763
        %v4791 = vadd.f32 %v4752, %v4763
        %v4792 = vadd.f32 %v4753, %v4763
        %v4793 = vadd.f32 %v4754, %v4763
        %v4794 = vadd.f32 %v4755, %v4763
        %v4795 = vadd.f32 %v4756, %v4763
        %v4796 = vadd.f32 %v4757, %v4763
        %s4797 = smul.u32 %s31, 256
        %v4798 = vstv %s4797
        %v4799 = vadd.s32 %v4798, %v653
        %v4800 = vadd.s32 %v4798, %v654
        %v4801 = vld [vmem:[%s3] sm:$0x7]
        %4802 = vset.pattern.permute.xlu0 0
        %4803 = vperm.xlu0 %4802, %v4801
        %v4804 = vpop.permute.xlu0 %4803
        %vm4805 = vcmp.ge.s32.totalorder %v4799, %v4804
        %vm4806 = vcmp.ge.s32.totalorder %v4800, %v4804
        %v4807 = vld [vmem:[%s4] sm:$0x7]
        %4808 = vset.pattern.permute.xlu0 0
        %4809 = vperm.xlu0 %4808, %v4807
        %v4810 = vpop.permute.xlu0 %4809
        %vm4811 = vcmp.lt.s32.totalorder %v4799, %v4810
        %vm4812 = vcmp.lt.s32.totalorder %v4800, %v4810
        %vm4813 = vmand %vm4805, %vm4811
        %vm4814 = vmand %vm4806, %vm4812
        %v4815 = vsel %vm4813, 1, 0
        %v4816 = vsel %vm4814, 1, 0
        %v4817 = vcvt.s32.f32 %v4815
        %v4818 = vcvt.s32.f32 %v4816
        %v4819 = vld [vmem:[%s5] sm:$0x7]
        %4821 = vset.pattern.permute.xlu0 0
        %4822 = vperm.xlu0 %4821, %v4819
        %v4823 = vpop.permute.xlu0 %4822
        %v4825 = vmul.f32 %v4817, %v4823
        %v4826 = vmul.f32 %v4818, %v4823
        %v4827 = vld [vmem:[#allocation2] sm:$0x7]
        %4828 = vmatprep.subr.mxu0 0.0
        %4829 = vmatpush1.msra.mxu0 %v4765
        %4830 = vmatprep.subr.mxu0 0.0
        %4831 = vmatpush1.msra.mxu0 %v4766
        %4832 = vmatprep.subr.mxu0 0.0
        %4833 = vmatpush1.msra.mxu0 %v4767
        %4834 = vmatprep.subr.mxu0 0.0
        %4835 = vmatpush1.msra.mxu0 %v4768
        %4836 = vmatprep.subr.mxu0 0.0
        %4837 = vmatpush1.msra.mxu0 %v4769
        %4838 = vmatprep.subr.mxu0 0.0
        %4839 = vmatpush1.msra.mxu0 %v4770
        %4840 = vmatprep.subr.mxu0 0.0
        %4841 = vmatpush1.msra.mxu0 %v4771
        %4842 = vmatprep.subr.mxu0 0.0
        %4843 = vmatpush1.msra.mxu0 %v4772
        %4844 = vmatprep.subr.mxu0 0.0
        %4845 = vmatpush1.msra.mxu0 %v4773
        %4846 = vmatprep.subr.mxu0 0.0
        %4847 = vmatpush1.msra.mxu0 %v4774
        %4848 = vmatprep.subr.mxu0 0.0
        %4849 = vmatpush1.msra.mxu0 %v4775
        %4850 = vmatprep.subr.mxu0 0.0
        %4851 = vmatpush1.msra.mxu0 %v4776
        %4852 = vmatprep.subr.mxu0 0.0
        %4853 = vmatpush1.msra.mxu0 %v4777
        %4854 = vmatprep.subr.mxu0 0.0
        %4855 = vmatpush1.msra.mxu0 %v4778
        %4856 = vmatprep.subr.mxu0 0.0
        %4857 = vmatpush1.msra.mxu0 %v4779
        %4858 = vmatprep.subr.mxu0 0.0
        %4859 = vmatpush1.msra.mxu0 %v4780
        %4860 = vmatprep.subr.mxu0 0.0
        %4861 = vmatpush1.msra.mxu0 %v4781
        %4862 = vmatprep.subr.mxu0 0.0
        %4863 = vmatpush1.msra.mxu0 %v4782
        %4864 = vmatprep.subr.mxu0 0.0
        %4865 = vmatpush1.msra.mxu0 %v4783
        %4866 = vmatprep.subr.mxu0 0.0
        %4867 = vmatpush1.msra.mxu0 %v4784
        %4868 = vmatprep.subr.mxu0 0.0
        %4869 = vmatpush1.msra.mxu0 %v4785
        %4870 = vmatprep.subr.mxu0 0.0
        %4871 = vmatpush1.msra.mxu0 %v4786
        %4872 = vmatprep.subr.mxu0 0.0
        %4873 = vmatpush1.msra.mxu0 %v4787
        %4874 = vmatprep.subr.mxu0 0.0
        %4875 = vmatpush1.msra.mxu0 %v4788
        %4876 = vmatprep.subr.mxu0 0.0
        %4877 = vmatpush1.msra.mxu0 %v4789
        %4878 = vmatprep.subr.mxu0 0.0
        %4879 = vmatpush1.msra.mxu0 %v4790
        %4880 = vmatprep.subr.mxu0 0.0
        %4881 = vmatpush1.msra.mxu0 %v4791
        %4882 = vmatprep.subr.mxu0 0.0
        %4883 = vmatpush1.msra.mxu0 %v4792
        %4884 = vmatprep.subr.mxu0 0.0
        %4885 = vmatpush1.msra.mxu0 %v4793
        %4886 = vmatprep.subr.mxu0 0.0
        %4887 = vmatpush1.msra.mxu0 %v4794
        %4888 = vmatprep.subr.mxu0 0.0
        %4889 = vmatpush1.msra.mxu0 %v4795
        %4890 = vmatprep.subr.mxu0 0.0
        %4891 = vmatpush1.msra.mxu0 %v4796
        %4892 = vmatprep.mubr.f32.mxu0 %v4826
        %4893 = vmatmul.mubr.f32.gmra.mrb[0].mxu0 %v4825
        %v4894 = vpop.f32.mrb[0].mxu0
        %v4895 = vadd.f32 0.0, %v4894
        %v4896 = vpop.f32.mrb[0].mxu0
        %4897 = vdwg.mxu0
        %v4898 = vadd.f32 %v4827, %v4895
        %vm4899 = vcmask 256000
        %4900 = vst.msk [vmem:[#allocation2] sm:$0x7] %vm4899, %v4898
        %p4901 = scmp.eq.s32.totalorder %s31, 1
        // Predicated region
        $region101: #{ffn_forward.1} parent=95 // pred_check
          %p4902 = pneg %p4901
        $region102: #{ffn_forward.1} parent=95 // pred_check_branch
          %4904 = sbr.rel (%p4902) target = $region104
        $region103: #{ffn_forward.1} parent=95 // pred_region
          %v4905 = vld [vmem:[#allocation2] sm:$0x7]
          %v4906 = vld [vmem:[%s14] sm:$0xff]
          %v4907 = vld [vmem:[%s14 + $0x8] sm:$0xff]
          %v4908 = vld [vmem:[%s14 + $0x10] sm:$0xff]
          %v4909 = vld [vmem:[%s14 + $0x18] sm:$0xff]
          %v4910 = vld [vmem:[%s13] sm:$0x7]
          %v4911 = vld [vmem:[%s15] sm:$0xff]
          %vm4912 = vcmask 64512
          %v4914 = vsel %vm4912, %v4910, 0
          %4916 = vmatprep.subr.mxu0 0.0
          %4917 = vmatpush1.msra.mxu0 %v4911
          %4918 = vmatprep.subr.mxu0 0.0
          %4919 = vmatpush1.msra.mxu0 0.0
          %4920 = vmatprep.subr.mxu0 0.0
          %4921 = vmatpush1.msra.mxu0 0.0
          %4922 = vmatprep.subr.mxu0 0.0
          %4923 = vmatpush1.msra.mxu0 0.0
          %4924 = vmatprep.subr.mxu0 0.0
          %4925 = vmatpush1.msra.mxu0 0.0
          %4926 = vmatprep.subr.mxu0 0.0
          %4927 = vmatpush1.msra.mxu0 0.0
          %4928 = vmatprep.subr.mxu0 0.0
          %4929 = vmatpush1.msra.mxu0 0.0
          %4930 = vmatprep.subr.mxu0 0.0
          %4931 = vmatpush1.msra.mxu0 0.0
          %4932 = vmatprep.subr.mxu0 0.0
          %4933 = vmatpush1.msra.mxu0 0.0
          %4934 = vmatprep.subr.mxu0 0.0
          %4935 = vmatpush1.msra.mxu0 0.0
          %4936 = vmatprep.subr.mxu0 0.0
          %4937 = vmatpush1.msra.mxu0 0.0
          %4938 = vmatprep.subr.mxu0 0.0
          %4939 = vmatpush1.msra.mxu0 0.0
          %4940 = vmatprep.subr.mxu0 0.0
          %4941 = vmatpush1.msra.mxu0 0.0
          %4942 = vmatprep.subr.mxu0 0.0
          %4943 = vmatpush1.msra.mxu0 0.0
          %4944 = vmatprep.subr.mxu0 0.0
          %4945 = vmatpush1.msra.mxu0 0.0
          %4946 = vmatprep.subr.mxu0 0.0
          %4947 = vmatpush1.msra.mxu0 0.0
          %4948 = vmatprep.subr.mxu0 0.0
          %4949 = vmatpush1.msra.mxu0 0.0
          %4950 = vmatprep.subr.mxu0 0.0
          %4951 = vmatpush1.msra.mxu0 0.0
          %4952 = vmatprep.subr.mxu0 0.0
          %4953 = vmatpush1.msra.mxu0 0.0
          %4954 = vmatprep.subr.mxu0 0.0
          %4955 = vmatpush1.msra.mxu0 0.0
          %4956 = vmatprep.subr.mxu0 0.0
          %4957 = vmatpush1.msra.mxu0 0.0
          %4958 = vmatprep.subr.mxu0 0.0
          %4959 = vmatpush1.msra.mxu0 0.0
          %4960 = vmatprep.subr.mxu0 0.0
          %4961 = vmatpush1.msra.mxu0 0.0
          %4962 = vmatprep.subr.mxu0 0.0
          %4963 = vmatpush1.msra.mxu0 0.0
          %4964 = vmatprep.subr.mxu0 0.0
          %4965 = vmatpush1.msra.mxu0 0.0
          %4966 = vmatprep.subr.mxu0 0.0
          %4967 = vmatpush1.msra.mxu0 0.0
          %4968 = vmatprep.subr.mxu0 0.0
          %4969 = vmatpush1.msra.mxu0 0.0
          %4970 = vmatprep.subr.mxu0 0.0
          %4971 = vmatpush1.msra.mxu0 0.0
          %4972 = vmatprep.subr.mxu0 0.0
          %4973 = vmatpush1.msra.mxu0 0.0
          %4974 = vmatprep.subr.mxu0 0.0
          %4975 = vmatpush1.msra.mxu0 0.0
          %4976 = vmatprep.subr.mxu0 0.0
          %4977 = vmatpush1.msra.mxu0 0.0
          %4978 = vmatprep.subr.mxu0 0.0
          %4979 = vmatpush1.msra.mxu0 0.0
          %4980 = vmatprep.mubr.f32.mxu0 0.0
          %4981 = vmatmul.mubr.f32.gmra.mrb[0].mxu0 %v4914
          %v4982 = vpop.f32.mrb[0].mxu0
          %v4983 = vadd.f32 0.0, %v4982
          %v4984 = vpop.f32.mrb[0].mxu0
          %4985 = vdwg.mxu0
          %v4987 = vsel %vm3557, %v4905, 0
          %4989 = vmatprep.subr.mxu0 0.0
          %4990 = vmatpush1.msra.mxu0 %v4906
          %4991 = vmatprep.subr.mxu0 0.0
          %4992 = vmatpush1.msra.mxu0 %v4907
          %4993 = vmatprep.subr.mxu0 0.0
          %4994 = vmatpush1.msra.mxu0 %v4908
          %4995 = vmatprep.subr.mxu0 0.0
          %4996 = vmatpush1.msra.mxu0 %v4909
          %4997 = vmatprep.subr.mxu0 0.0
          %4998 = vmatpush1.msra.mxu0 0.0
          %4999 = vmatprep.subr.mxu0 0.0
          %5000 = vmatpush1.msra.mxu0 0.0
          %5001 = vmatprep.subr.mxu0 0.0
          %5002 = vmatpush1.msra.mxu0 0.0
          %5003 = vmatprep.subr.mxu0 0.0
          %5004 = vmatpush1.msra.mxu0 0.0
          %5005 = vmatprep.subr.mxu0 0.0
          %5006 = vmatpush1.msra.mxu0 0.0
          %5007 = vmatprep.subr.mxu0 0.0
          %5008 = vmatpush1.msra.mxu0 0.0
          %5009 = vmatprep.subr.mxu0 0.0
          %5010 = vmatpush1.msra.mxu0 0.0
          %5011 = vmatprep.subr.mxu0 0.0
          %5012 = vmatpush1.msra.mxu0 0.0
          %5013 = vmatprep.subr.mxu0 0.0
          %5014 = vmatpush1.msra.mxu0 0.0
          %5015 = vmatprep.subr.mxu0 0.0
          %5016 = vmatpush1.msra.mxu0 0.0
          %5017 = vmatprep.subr.mxu0 0.0
          %5018 = vmatpush1.msra.mxu0 0.0
          %5019 = vmatprep.subr.mxu0 0.0
          %5020 = vmatpush1.msra.mxu0 0.0
          %5021 = vmatprep.subr.mxu0 0.0
          %5022 = vmatpush1.msra.mxu0 0.0
          %5023 = vmatprep.subr.mxu0 0.0
          %5024 = vmatpush1.msra.mxu0 0.0
          %5025 = vmatprep.subr.mxu0 0.0
          %5026 = vmatpush1.msra.mxu0 0.0
          %5027 = vmatprep.subr.mxu0 0.0
          %5028 = vmatpush1.msra.mxu0 0.0
          %5029 = vmatprep.subr.mxu0 0.0
          %5030 = vmatpush1.msra.mxu0 0.0
          %5031 = vmatprep.subr.mxu0 0.0
          %5032 = vmatpush1.msra.mxu0 0.0
          %5033 = vmatprep.subr.mxu0 0.0
          %5034 = vmatpush1.msra.mxu0 0.0
          %5035 = vmatprep.subr.mxu0 0.0
          %5036 = vmatpush1.msra.mxu0 0.0
          %5037 = vmatprep.subr.mxu0 0.0
          %5038 = vmatpush1.msra.mxu0 0.0
          %5039 = vmatprep.subr.mxu0 0.0
          %5040 = vmatpush1.msra.mxu0 0.0
          %5041 = vmatprep.subr.mxu0 0.0
          %5042 = vmatpush1.msra.mxu0 0.0
          %5043 = vmatprep.subr.mxu0 0.0
          %5044 = vmatpush1.msra.mxu0 0.0
          %5045 = vmatprep.subr.mxu0 0.0
          %5046 = vmatpush1.msra.mxu0 0.0
          %5047 = vmatprep.subr.mxu0 0.0
          %5048 = vmatpush1.msra.mxu0 0.0
          %5049 = vmatprep.subr.mxu0 0.0
          %5050 = vmatpush1.msra.mxu0 0.0
          %5051 = vmatprep.subr.mxu0 0.0
          %5052 = vmatpush1.msra.mxu0 0.0
          %5053 = vmatprep.mubr.f32.mxu0 0.0
          %5054 = vmatmul.mubr.f32.gmra.mrb[0].mxu0 %v4987
          %v5055 = vpop.f32.mrb[0].mxu0
          %v5056 = vadd.f32 %v4983, %v5055
          %v5057 = vpop.f32.mrb[0].mxu0
          %5058 = vdwg.mxu0
          %v5059 = vld [vmem:[%s16] sm:$0x1]
          %v5061 = vlaneseq
          %v5062 = vshrl.u32 %v5061, 7
          %v5063 = vsub.s32 0, %v5062
          %v5064 = vrot.slane %v5059, %v5063
          %v5066 = vadd.f32 %v5056, %v5064
          %v5067 = vmax.f32 %v5066, 0.0
          %v5068 = vld [vmem:[%s17] sm:$0xff]
          %v5069 = vld [vmem:[%s17 + $0x8] sm:$0xff]
          %v5070 = vld [vmem:[%s17 + $0x10] sm:$0xff]
          %v5071 = vld [vmem:[%s17 + $0x18] sm:$0xff]
          %v5072 = vld [vmem:[%s17 + $0x20] sm:$0xff]
          %v5073 = vld [vmem:[%s17 + $0x28] sm:$0xff]
          %v5074 = vld [vmem:[%s17 + $0x30] sm:$0xff]
          %v5075 = vld [vmem:[%s17 + $0x38] sm:$0xff]
          %v5076 = vld [vmem:[%s18] sm:$0x1]
          %v5078 = vlaneseq
          %v5079 = vshrl.u32 %v5078, 7
          %v5080 = vsub.s32 0, %v5079
          %v5081 = vrot.slane %v5076, %v5080
          %vm5083 = vcmask 523264
          %v5085 = vsel %vm5083, %v5067, 0
          %5087 = vmatprep.subr.mxu0 0.0
          %5088 = vmatpush1.msra.mxu0 %v5068
          %5089 = vmatprep.subr.mxu0 0.0
          %5090 = vmatpush1.msra.mxu0 %v5069
          %5091 = vmatprep.subr.mxu0 0.0
          %5092 = vmatpush1.msra.mxu0 %v5070
          %5093 = vmatprep.subr.mxu0 0.0
          %5094 = vmatpush1.msra.mxu0 %v5071
          %5095 = vmatprep.subr.mxu0 0.0
          %5096 = vmatpush1.msra.mxu0 %v5072
          %5097 = vmatprep.subr.mxu0 0.0
          %5098 = vmatpush1.msra.mxu0 %v5073
          %5099 = vmatprep.subr.mxu0 0.0
          %5100 = vmatpush1.msra.mxu0 %v5074
          %5101 = vmatprep.subr.mxu0 0.0
          %5102 = vmatpush1.msra.mxu0 %v5075
          %5103 = vmatprep.subr.mxu0 0.0
          %5104 = vmatpush1.msra.mxu0 0.0
          %5105 = vmatprep.subr.mxu0 0.0
          %5106 = vmatpush1.msra.mxu0 0.0
          %5107 = vmatprep.subr.mxu0 0.0
          %5108 = vmatpush1.msra.mxu0 0.0
          %5109 = vmatprep.subr.mxu0 0.0
          %5110 = vmatpush1.msra.mxu0 0.0
          %5111 = vmatprep.subr.mxu0 0.0
          %5112 = vmatpush1.msra.mxu0 0.0
          %5113 = vmatprep.subr.mxu0 0.0
          %5114 = vmatpush1.msra.mxu0 0.0
          %5115 = vmatprep.subr.mxu0 0.0
          %5116 = vmatpush1.msra.mxu0 0.0
          %5117 = vmatprep.subr.mxu0 0.0
          %5118 = vmatpush1.msra.mxu0 0.0
          %5119 = vmatprep.subr.mxu0 0.0
          %5120 = vmatpush1.msra.mxu0 0.0
          %5121 = vmatprep.subr.mxu0 0.0
          %5122 = vmatpush1.msra.mxu0 0.0
          %5123 = vmatprep.subr.mxu0 0.0
          %5124 = vmatpush1.msra.mxu0 0.0
          %5125 = vmatprep.subr.mxu0 0.0
          %5126 = vmatpush1.msra.mxu0 0.0
          %5127 = vmatprep.subr.mxu0 0.0
          %5128 = vmatpush1.msra.mxu0 0.0
          %5129 = vmatprep.subr.mxu0 0.0
          %5130 = vmatpush1.msra.mxu0 0.0
          %5131 = vmatprep.subr.mxu0 0.0
          %5132 = vmatpush1.msra.mxu0 0.0
          %5133 = vmatprep.subr.mxu0 0.0
          %5134 = vmatpush1.msra.mxu0 0.0
          %5135 = vmatprep.subr.mxu0 0.0
          %5136 = vmatpush1.msra.mxu0 0.0
          %5137 = vmatprep.subr.mxu0 0.0
          %5138 = vmatpush1.msra.mxu0 0.0
          %5139 = vmatprep.subr.mxu0 0.0
          %5140 = vmatpush1.msra.mxu0 0.0
          %5141 = vmatprep.subr.mxu0 0.0
          %5142 = vmatpush1.msra.mxu0 0.0
          %5143 = vmatprep.subr.mxu0 0.0
          %5144 = vmatpush1.msra.mxu0 0.0
          %5145 = vmatprep.subr.mxu0 0.0
          %5146 = vmatpush1.msra.mxu0 0.0
          %5147 = vmatprep.subr.mxu0 0.0
          %5148 = vmatpush1.msra.mxu0 0.0
          %5149 = vmatprep.subr.mxu0 0.0
          %5150 = vmatpush1.msra.mxu0 0.0
          %5151 = vmatprep.mubr.f32.mxu0 0.0
          %5152 = vmatmul.mubr.f32.gmra.mrb[0].mxu0 %v5085
          %v5153 = vpop.f32.mrb[0].mxu0
          %v5154 = vadd.f32 %v5081, %v5153
          %v5155 = vpop.f32.mrb[0].mxu0
          %5156 = vdwg.mxu0
          %v5157 = vxor.u32 %v5154, 2147483648
          %v5158 = vmul.f32 %v5157, 1.442695
          %v5159 = vpow.pop %v5158
          %v5160 = vadd.f32 %v5159, 1.0
          %v5161 = vrcp.pop %v5160
          %v5162 = vmul.f32 1.0, %v5161
          %vm5163 = vcmask 18432
          %5164 = vst.msk [vmem:[#allocation3] sm:$0x7] %vm5163, %v5162
        $region104: #{ffn_forward.1} parent=95 // pred_fallthru
          _
        // Predicated region
        $region105: #{ffn_forward.1} parent=95 // pred_check
          %p5165 = pneg %p453
        $region106: #{ffn_forward.1} parent=95 // pred_check_branch
          %5167 = sbr.rel (%p5165) target = $region108
        $region107: #{ffn_forward.1} parent=95 // pred_region
          %s5169 = ssub.s32 64, 64
          %5170 = vsyncadd [#allocation4], %s5169
          %s5172 = sshll.u32 [#allocation3], 4
          %s5173 = int_to_ptr.vmem [resolvable:$true] %s5172
          %5175 = dma.vmem_to_hbm [thread:$0]  %s5173, 64, %s19, [#allocation4]
        $region108: #{ffn_forward.1} parent=95 // pred_fallthru
          _
        // Predicated region
        $region109: #{ffn_forward.1} parent=95 // pred_check
          %p5176 = pneg %p453
        $region110: #{ffn_forward.1} parent=95 // pred_check_branch
          %5178 = sbr.rel (%p5176) target = $region112
        $region111: #{ffn_forward.1} parent=95 // pred_region
          %5179 = dma.done [#allocation4], 64
        $region112: #{ffn_forward.1} parent=95 // pred_fallthru
          _
      $region96: #{ffn_forward.1} parent=5 // pred_fallthru
        _
      %p5180 = scmp.le.s32.totalorder 2, %s26
      // Predicated region
      $region113: #{ffn_forward.1} parent=5 // pred_check
        %p5181 = pneg %p5180
      $region114: #{ffn_forward.1} parent=5 // pred_check_branch
        %5183 = sbr.rel (%p5181) target = $region116
      $region115: #{ffn_forward.1} parent=5 // pred_region
        %s5184 = ssub.s32 %s26, 2
      $region116: #{ffn_forward.1} parent=5 // pred_fallthru
        _
    $region6: #{ffn_forward.1} parent=1 // loop_footer
      %s30 = sadd.s32 1, %s26
    $region7: #{ffn_forward.1} parent=1 // loop_footer_branch
      %25 = sbr.rel target = $region3
    $region8: #{ffn_forward.1} parent=1 // loop_exit
      _
    %5185 = vsyncpa [#allocation4], 1
    %s5186 = scalar_lea.sflag [#allocation4], 1
    %5187 = vsyncpa %s5186, 1

</llo_original>
